<compile_context>
chip_gen: v6e
topology: v6e:2x2x1
jax: 0.10.0
libtpu: 0.0.40
codegen_flags: <defaults>
</compile_context>

<pallas_src>
import numpy as np
import jax
import jax.numpy as jnp
from jax.experimental import pallas as pl
from jax.experimental.pallas import tpu as pltpu

EPS = 1e-5
H = W = 7
HW = H * W                  # 49
C_SQ = 5 * HW               # 245  (square branch / MRC output, flattened)
C_HV = 5 * 3 * 7            # 105  (horizontal / vertical branch, flattened)

# Lane-padded dims (all multiples of 128).
B_PAD_MIN = 8               # f32 sublane tile
D_IN = 256                  # 245 real cols, 11 zero-padded
D_S1 = 512                  # stage-1: [sq 0:245 | pad | h 256:361 | pad | v 384:489 | pad]
D_S2 = 768                  # stage-2: [sq 0:245 | pad | h 256:501 | pad | v 512:757 | pad]
D_GLU = 256                 # GLU pre-act: a-half 0:96 (pad to 128), b-half 128:224 (pad to 256)
D_OUT = 128                 # 2 real logits in lanes 0:2


# ---------------- deterministic synthetic parameters -------------------------
def init_params(seed=0):
    rng = np.random.RandomState(seed)

    def u(*shape, scale=0.25):
        return rng.uniform(-scale, scale, size=shape).astype(np.float32)

    mrc = []
    for cin in (3, 5, 5, 5):
        p = dict(
            w1=u(15, cin, 1, 1),
            g1=rng.uniform(0.5, 1.5, 15).astype(np.float32), be1=u(15, scale=0.1),
            w2_1=u(5, 5, 3, 3), b2_1=u(5, scale=0.1),
            g2_1=rng.uniform(0.5, 1.5, 5).astype(np.float32), be2_1=u(5, scale=0.1),
            w2_2=u(5, 5, 3, 3), b2_2=u(5, scale=0.1),
            g2_2=rng.uniform(0.5, 1.5, 5).astype(np.float32), be2_2=u(5, scale=0.1),
            w2_3=u(5, 5, 3, 3), b2_3=u(5, scale=0.1),
            g2_3=rng.uniform(0.5, 1.5, 5).astype(np.float32), be2_3=u(5, scale=0.1),
        )
        mrc.append(p)
    return dict(mrc=mrc,
                W1=u(10, 341), b1=u(10, scale=0.1),
                W2=u(2, 10), b2=u(2, scale=0.1))


# ---------------- lowering: conv / slicing / DCT -> dense matrices -----------
def conv1x1_branch_mats(W1, s, t):
    """1x1 conv (no bias) + folded BN + the three channel/spatial slices of MRC.
    Returns matrices in (in, out) layout."""
    Cin = W1.shape[1]
    nin = Cin * HW
    T_sq = np.zeros((nin, C_SQ), np.float32); b_sq = np.zeros(C_SQ, np.float32)
    T_h = np.zeros((nin, C_HV), np.float32);  b_h = np.zeros(C_HV, np.float32)
    T_v = np.zeros((nin, C_HV), np.float32);  b_v = np.zeros(C_HV, np.float32)
    # square: channels 0..4, full 7x7
    for o in range(5):
        for p in range(HW):
            row = o * HW + p
            b_sq[row] = t[o]
            for c in range(Cin):
                T_sq[c * HW + p, row] = s[o] * W1[o, c]
    # horizontal: channels 5..9, rows 2..4, all cols
    for ol in range(5):
        o = 5 + ol
        for hh in range(2, 5):
            for ww in range(7):
                row = ol * 21 + (hh - 2) * 7 + ww
                b_h[row] = t[o]
                p = hh * 7 + ww
                for c in range(Cin):
                    T_h[c * HW + p, row] = s[o] * W1[o, c]
    # vertical: channels 10..14, all rows, cols 2..4
    for ol in range(5):
        o = 10 + ol
        for hh in range(7):
            for ww in range(2, 5):
                row = ol * 21 + hh * 3 + (ww - 2)
                b_v[row] = t[o]
                p = hh * 7 + ww
                for c in range(Cin):
                    T_v[c * HW + p, row] = s[o] * W1[o, c]
    return T_sq, b_sq, T_h, b_h, T_v, b_v


def conv3x3_mat(Wc, bias, s, t, Hh, Ww):
    """3x3 conv, padding=1, with bias, BN folded. (in, out) layout."""
    n = 5 * Hh * Ww
    T = np.zeros((n, n), np.float32)
    b = np.zeros(n, np.float32)
    for o in range(5):
        for i in range(Hh):
            for j in range(Ww):
                row = o * Hh * Ww + i * Ww + j
                b[row] = s[o] * bias[o] + t[o]
                for c in range(5):
                    for di in range(3):
                        for dj in range(3):
                            ii, jj = i + di - 1, j + dj - 1
                            if 0 <= ii < Hh and 0 <= jj < Ww:
                                T[c * Hh * Ww + ii * Ww + jj, row] += s[o] * Wc[o, c, di, dj]
    return T, b


def scatter_mats():
    """horizontal_final[:, :, 2:5, :] = h ; vertical_final[:, :, :, 2:5] = v."""
    Sh = np.zeros((C_HV, C_SQ), np.float32)
    Sv = np.zeros((C_HV, C_SQ), np.float32)
    for c in range(5):
        for hh in range(2, 5):
            for ww in range(7):
                Sh[c * 21 + (hh - 2) * 7 + ww, c * 49 + hh * 7 + ww] = 1.0
        for hh in range(7):
            for ww in range(2, 5):
                Sv[c * 21 + hh * 3 + (ww - 2), c * 49 + hh * 7 + ww] = 1.0
    return Sh, Sv


def interp_dct_matrix():
    """M = (orthonormal 8x8 DCT-II) @ (bilinear resize 7->8, align_corners)."""
    R = np.zeros((8, 7), np.float64)
    for j in range(8):
        pos = j * 6.0 / 7.0
        i0 = min(int(np.floor(pos)), 6)
        i1 = min(i0 + 1, 6)
        f = pos - i0
        R[j, i0] += 1.0 - f
        R[j, i1] += f
    D = np.zeros((8, 8), np.float64)
    for k in range(8):
        a = np.sqrt(1.0 / 8) if k == 0 else np.sqrt(2.0 / 8)
        for n in range(8):
            D[k, n] = a * np.cos(np.pi * (2 * n + 1) * k / 16.0)
    return (D @ R).astype(np.float32)        # (8, 7)


def dct_mats(M):
    """Per-channel 2D DCT of the resized 8x8 image, split into GLU halves.
    Ta/Tb are (3*49, 96): input is the flattened 3x7x7 image."""
    Mk = np.kron(M, M).astype(np.float32)     # (64, 49): flat(8x8) <- flat(7x7)
    Ta = np.zeros((3 * HW, 96), np.float32)
    Tb = np.zeros((3 * HW, 96), np.float32)
    for c in range(3):
        for k in range(32):
            Ta[c * 49:(c + 1) * 49, c * 32 + k] = Mk[k, :]
            Tb[c * 49:(c + 1) * 49, c * 32 + k] = Mk[32 + k, :]
    return Ta, Tb


def build_lowered(params, M):
    """Fold BN, scatter (Sh/Sv), the W1/W2 Linear pair and all lane padding
    host-side.  Every padded weight row/col and padded bias entry is exactly
    zero, so padded lanes stay zero through the whole relu chain."""
    Sh, Sv = scatter_mats()
    w1_l, b1_l, w2_l, b2_l = [], [], [], []
    for p in params['mrc']:
        # ----- stage 1: 1x1 conv + BN + slicing, three branches fused ---------
        s1 = p['g1'] / np.sqrt(1.0 + EPS)
        t1 = p['be1']
        Tsq, bsq, Th, bh, Tv, bv = conv1x1_branch_mats(p['w1'][:, :, 0, 0], s1, t1)
        nin = Tsq.shape[0]
        W1c = np.zeros((D_IN, D_S1), np.float32)
        b1c = np.zeros((1, D_S1), np.float32)
        W1c[:nin, 0:245] = Tsq;    b1c[0, 0:245] = bsq
        W1c[:nin, 256:361] = Th;   b1c[0, 256:361] = bh
        W1c[:nin, 384:489] = Tv;   b1c[0, 384:489] = bv
        w1_l.append(W1c); b1_l.append(b1c)

        # ----- stage 2: 3x3 convs + BN, scatter folded, block-diagonal --------
        s = p['g2_1'] / np.sqrt(1.0 + EPS); t = p['be2_1']
        Tsq2, bsq2 = conv3x3_mat(p['w2_1'], p['b2_1'], s, t, 7, 7)   # (245,245)
        s = p['g2_2'] / np.sqrt(1.0 + EPS); t = p['be2_2']
        Th2, bh2 = conv3x3_mat(p['w2_2'], p['b2_2'], s, t, 3, 7)     # (105,105)
        s = p['g2_3'] / np.sqrt(1.0 + EPS); t = p['be2_3']
        Tv2, bv2 = conv3x3_mat(p['w2_3'], p['b2_3'], s, t, 7, 3)     # (105,105)

        Th2s, bh2s = Th2 @ Sh, bh2 @ Sh        # (105,245), (245,)
        Tv2s, bv2s = Tv2 @ Sv, bv2 @ Sv

        W2c = np.zeros((D_S1, D_S2), np.float32)
        b2c = np.zeros((1, D_S2), np.float32)
        W2c[0:245, 0:245] = Tsq2;       b2c[0, 0:245] = bsq2
        W2c[256:361, 256:501] = Th2s;   b2c[0, 256:501] = bh2s
        W2c[384:489, 512:757] = Tv2s;   b2c[0, 512:757] = bv2s
        w2_l.append(W2c); b2_l.append(b2c)

    # ----- DCT branch: resize + 2D DCT, both GLU halves in one weight ---------
    Ta, Tb = dct_mats(M)                       # (147, 96) each
    Tab = np.zeros((D_IN, D_GLU), np.float32)
    Tab[:3 * HW, 0:96] = Ta
    Tab[:3 * HW, 128:224] = Tb

    # ----- final Linear pair folded: out = glo@Wg + glu@Wd + bf ---------------
    W1, b1 = params['W1'], params['b1']        # (10,341), (10,)
    W2, b2 = params['W2'], params['b2']        # (2,10),  (2,)
    Wg_full = W1[:, :245].T @ W2.T             # (245, 2)
    Wd_full = W1[:, 245:].T @ W2.T             # (96, 2)
    bf_full = b1 @ W2.T + b2                   # (2,)
    Wg = np.zeros((D_IN, D_OUT), np.float32);   Wg[:245, :2] = Wg_full
    Wd = np.zeros((128, D_OUT), np.float32);    Wd[:96, :2] = Wd_full
    bf = np.zeros((1, D_OUT), np.float32);      bf[0, :2] = bf_full

    lowered = dict(
        w1c=np.stack(w1_l), b1c=np.stack(b1_l),
        w2c=np.stack(w2_l), b2c=np.stack(b2_l),
        tab=Tab, wg=Wg, wd=Wd, bf=bf,
    )
    return {k: jnp.asarray(v) for k, v in lowered.items()}


# ---------------- the Pallas kernel ------------------------------------------
def ddnet_kernel(x_ref, w1_ref, b1_ref, w2_ref, b2_ref,
                 tab_ref, wg_ref, wd_ref, bf_ref, out_ref):
    def dot(a, b):
        return jnp.dot(a, b, preferred_element_type=jnp.float32)

    relu = lambda v: jnp.maximum(v, 0.0)

    x = x_ref[...]                               # (B_pad, 256) zero-padded input
    cur = x
    for blk in range(4):                         # statically unrolled MRC stack
        s1 = relu(dot(cur, w1_ref[blk]) + b1_ref[blk])        # (B, 512)
        s2 = relu(dot(s1, w2_ref[blk]) + b2_ref[blk])         # (B, 768)
        # scatter already folded into w2/b2: just sum the three 256-wide slabs
        cur = s2[:, 0:256] + s2[:, 256:512] + s2[:, 512:768]  # (B, 256)

    # DCT branch: resize(7->8, bilinear, align_corners) + 2D DCT + GLU,
    # both halves from one matmul, lane-aligned split at 128.
    y = dot(x, tab_ref[...])                                  # (B, 256)
    glu = y[:, 0:128] * jax.nn.sigmoid(y[:, 128:256])         # (B, 128)

    # folded linear1+linear2 (no nonlinearity between them)
    out_ref[...] = dot(cur, wg_ref[...]) + dot(glu, wd_ref[...]) + bf_ref[...]


def ddnet_forward(x, lowered):
    B = x.shape[0]
    b_pad = max(B_PAD_MIN, -(-B // 8) * 8)       # pad batch to f32 sublane tile
    x_flat = x.reshape(B, 3 * HW).astype(jnp.float32)
    x_pad = jnp.zeros((b_pad, D_IN), jnp.float32).at[:B, :3 * HW].set(x_flat)

    args = [x_pad, lowered['w1c'], lowered['b1c'], lowered['w2c'], lowered['b2c'],
            lowered['tab'], lowered['wg'], lowered['wd'], lowered['bf']]
    vspec = pl.BlockSpec(memory_space=pltpu.MemorySpace.VMEM)
    # NOTE: for large batches a batch-parallel grid (resident weights via
    # index_map -> block 0, dimension_semantics=("parallel",)) would let v7x
    # use both TensorCores; unnecessary at the tiny batches exercised here.
    out = pl.pallas_call(
        ddnet_kernel,
        out_shape=jax.ShapeDtypeStruct((b_pad, D_OUT), jnp.float32),
        in_specs=[vspec] * len(args),
        out_specs=vspec,
        compiler_params=pltpu.CompilerParams(vmem_limit_bytes=32 * 1024 * 1024),
    )(*args)
    return out[:B, :2]


# ---------------- plain-JAX reference (original conv semantics) --------------
def _conv(x, w, b, pad):
    out = jax.lax.conv_general_dilated(
        x, w, (1, 1), ((pad, pad), (pad, pad)),
        dimension_numbers=('NCHW', 'OIHW', 'NCHW'))
    if b is not None:
        out = out + b[None, :, None, None]
    return out


def _bn(x, gamma, beta):
    return x * (gamma / np.sqrt(1.0 + EPS))[None, :, None, None] + beta[None, :, None, None]


def mrc_ref(x, p):
    ori = jax.nn.relu(_bn(_conv(x, p['w1'], None, 0), p['g1'], p['be1']))
    sq_in = ori[:, 0:5]
    h_in = ori[:, 5:10, 2:5, :]
    v_in = ori[:, 10:15, :, 2:5]
    sq = jax.nn.relu(_bn(_conv(sq_in, p['w2_1'], p['b2_1'], 1), p['g2_1'], p['be2_1']))
    hz = jax.nn.relu(_bn(_conv(h_in, p['w2_2'], p['b2_2'], 1), p['g2_2'], p['be2_2']))
    vt = jax.nn.relu(_bn(_conv(v_in, p['w2_3'], p['b2_3'], 1), p['g2_3'], p['be2_3']))
    hf = jnp.zeros((x.shape[0], 5, 7, 7)).at[:, :, 2:5, :].set(hz)
    vf = jnp.zeros((x.shape[0], 5, 7, 7)).at[:, :, :, 2:5].set(vt)
    return sq + hf + vf


def ddnet_ref(x, params, M):
    m = x
    for i in range(4):
        m = mrc_ref(m, params['mrc'][i])
    glo = m.reshape(x.shape[0], 245)
    x8 = jnp.einsum('ui,bcij,vj->bcuv', M, x, M)       # resize + 2D DCT
    d = x8.reshape(x.shape[0], 3, 64)
    a, b = d[:, :, :32], d[:, :, 32:]
    glu = (a * jax.nn.sigmoid(b)).reshape(x.shape[0], 96)
    feat = jnp.concatenate([glo, glu], axis=1)          # (B, 341)
    o1 = feat @ params['W1'].T + params['b1']
    return o1 @ params['W2'].T + params['b2']


# ---------------- main --------------------------------------------------------
if __name__ == "__main__":
    B = 2
    key = jax.random.PRNGKey(0)
    x = jax.random.normal(key, (B, 3, 7, 7), dtype=jnp.float32)

    params = init_params(seed=0)
    M = interp_dct_matrix()
    lowered = build_lowered(params, M)

    out = ddnet_forward(x, lowered)
    out = jax.block_until_ready(out)
    assert out.shape == (B, 2)

    ref = np.asarray(ddnet_ref(x, params, jnp.asarray(M)))
    np.testing.assert_allclose(np.asarray(out), ref, rtol=5e-3, atol=5e-3)

    print("KERNEL_OK")
</pallas_src>

<mosaic_0001>
module attributes {stable_mosaic.version = 11 : i64} {
  func.func @ddnet_kernel(%arg0: memref<8x256xf32, #tpu.memory_space<vmem>>, %arg1: memref<4x256x512xf32, #tpu.memory_space<vmem>>, %arg2: memref<4x1x512xf32, #tpu.memory_space<vmem>>, %arg3: memref<4x512x768xf32, #tpu.memory_space<vmem>>, %arg4: memref<4x1x768xf32, #tpu.memory_space<vmem>>, %arg5: memref<256x256xf32, #tpu.memory_space<vmem>>, %arg6: memref<256x128xf32, #tpu.memory_space<vmem>>, %arg7: memref<128x128xf32, #tpu.memory_space<vmem>>, %arg8: memref<1x128xf32, #tpu.memory_space<vmem>>, %arg9: memref<8x128xf32, #tpu.memory_space<vmem>>) attributes {dimension_semantics = [], scalar_prefetch = 0 : i64, scratch_operands = 0 : i64, tpu.core_type = #tpu.core_type<tc>} {
    %c0 = arith.constant 0 : index
    %c0_0 = arith.constant 0 : index
    %0 = vector.load %arg0[%c0, %c0_0] : memref<8x256xf32, #tpu.memory_space<vmem>>, vector<8x256xf32>
    %c0_1 = arith.constant 0 : index
    %c0_2 = arith.constant 0 : index
    %c0_3 = arith.constant 0 : index
    %1 = vector.load %arg1[%c0_1, %c0_2, %c0_3] : memref<4x256x512xf32, #tpu.memory_space<vmem>>, vector<1x256x512xf32>
    %2 = vector.shape_cast %1 : vector<1x256x512xf32> to vector<256x512xf32>
    %cst = arith.constant dense<0.000000e+00> : vector<8x512xf32>
    %3 = tpu.matmul %0, %2, %cst {dimension_numbers = #tpu.dot_dimension_numbers<[1], [0], [0], [1], [0, 0, 1, 1], [], []>} : vector<8x256xf32>, vector<256x512xf32>, vector<8x512xf32> -> vector<8x512xf32>
    %c0_4 = arith.constant 0 : index
    %c0_5 = arith.constant 0 : index
    %c0_6 = arith.constant 0 : index
    %4 = vector.load %arg2[%c0_4, %c0_5, %c0_6] : memref<4x1x512xf32, #tpu.memory_space<vmem>>, vector<1x1x512xf32>
    %5 = vector.shape_cast %4 : vector<1x1x512xf32> to vector<1x512xf32>
    %6 = vector.broadcast %5 : vector<1x512xf32> to vector<8x512xf32>
    %7 = arith.addf %3, %6 : vector<8x512xf32>
    %cst_7 = arith.constant 0.000000e+00 : f32
    %8 = vector.broadcast %cst_7 : f32 to vector<8x512xf32>
    %9 = arith.maximumf %7, %8 : vector<8x512xf32>
    %c0_8 = arith.constant 0 : index
    %c0_9 = arith.constant 0 : index
    %c0_10 = arith.constant 0 : index
    %10 = vector.load %arg3[%c0_8, %c0_9, %c0_10] : memref<4x512x768xf32, #tpu.memory_space<vmem>>, vector<1x512x768xf32>
    %11 = vector.shape_cast %10 : vector<1x512x768xf32> to vector<512x768xf32>
    %cst_11 = arith.constant dense<0.000000e+00> : vector<8x768xf32>
    %12 = tpu.matmul %9, %11, %cst_11 {dimension_numbers = #tpu.dot_dimension_numbers<[1], [0], [0], [1], [0, 0, 1, 1], [], []>} : vector<8x512xf32>, vector<512x768xf32>, vector<8x768xf32> -> vector<8x768xf32>
    %c0_12 = arith.constant 0 : index
    %c0_13 = arith.constant 0 : index
    %c0_14 = arith.constant 0 : index
    %13 = vector.load %arg4[%c0_12, %c0_13, %c0_14] : memref<4x1x768xf32, #tpu.memory_space<vmem>>, vector<1x1x768xf32>
    %14 = vector.shape_cast %13 : vector<1x1x768xf32> to vector<1x768xf32>
    %15 = vector.broadcast %14 : vector<1x768xf32> to vector<8x768xf32>
    %16 = arith.addf %12, %15 : vector<8x768xf32>
    %cst_15 = arith.constant 0.000000e+00 : f32
    %17 = vector.broadcast %cst_15 : f32 to vector<8x768xf32>
    %18 = arith.maximumf %16, %17 : vector<8x768xf32>
    %19 = vector.extract_strided_slice %18 {offsets = [0, 0], sizes = [8, 256], strides = [1, 1]} : vector<8x768xf32> to vector<8x256xf32>
    %20 = vector.extract_strided_slice %18 {offsets = [0, 256], sizes = [8, 256], strides = [1, 1]} : vector<8x768xf32> to vector<8x256xf32>
    %21 = arith.addf %19, %20 : vector<8x256xf32>
    %22 = vector.extract_strided_slice %18 {offsets = [0, 512], sizes = [8, 256], strides = [1, 1]} : vector<8x768xf32> to vector<8x256xf32>
    %23 = arith.addf %21, %22 : vector<8x256xf32>
    %c1 = arith.constant 1 : index
    %c0_16 = arith.constant 0 : index
    %c0_17 = arith.constant 0 : index
    %24 = vector.load %arg1[%c1, %c0_16, %c0_17] : memref<4x256x512xf32, #tpu.memory_space<vmem>>, vector<1x256x512xf32>
    %25 = vector.shape_cast %24 : vector<1x256x512xf32> to vector<256x512xf32>
    %cst_18 = arith.constant dense<0.000000e+00> : vector<8x512xf32>
    %26 = tpu.matmul %23, %25, %cst_18 {dimension_numbers = #tpu.dot_dimension_numbers<[1], [0], [0], [1], [0, 0, 1, 1], [], []>} : vector<8x256xf32>, vector<256x512xf32>, vector<8x512xf32> -> vector<8x512xf32>
    %c1_19 = arith.constant 1 : index
    %c0_20 = arith.constant 0 : index
    %c0_21 = arith.constant 0 : index
    %27 = vector.load %arg2[%c1_19, %c0_20, %c0_21] : memref<4x1x512xf32, #tpu.memory_space<vmem>>, vector<1x1x512xf32>
    %28 = vector.shape_cast %27 : vector<1x1x512xf32> to vector<1x512xf32>
    %29 = vector.broadcast %28 : vector<1x512xf32> to vector<8x512xf32>
    %30 = arith.addf %26, %29 : vector<8x512xf32>
    %cst_22 = arith.constant 0.000000e+00 : f32
    %31 = vector.broadcast %cst_22 : f32 to vector<8x512xf32>
    %32 = arith.maximumf %30, %31 : vector<8x512xf32>
    %c1_23 = arith.constant 1 : index
    %c0_24 = arith.constant 0 : index
    %c0_25 = arith.constant 0 : index
    %33 = vector.load %arg3[%c1_23, %c0_24, %c0_25] : memref<4x512x768xf32, #tpu.memory_space<vmem>>, vector<1x512x768xf32>
    %34 = vector.shape_cast %33 : vector<1x512x768xf32> to vector<512x768xf32>
    %cst_26 = arith.constant dense<0.000000e+00> : vector<8x768xf32>
    %35 = tpu.matmul %32, %34, %cst_26 {dimension_numbers = #tpu.dot_dimension_numbers<[1], [0], [0], [1], [0, 0, 1, 1], [], []>} : vector<8x512xf32>, vector<512x768xf32>, vector<8x768xf32> -> vector<8x768xf32>
    %c1_27 = arith.constant 1 : index
    %c0_28 = arith.constant 0 : index
    %c0_29 = arith.constant 0 : index
    %36 = vector.load %arg4[%c1_27, %c0_28, %c0_29] : memref<4x1x768xf32, #tpu.memory_space<vmem>>, vector<1x1x768xf32>
    %37 = vector.shape_cast %36 : vector<1x1x768xf32> to vector<1x768xf32>
    %38 = vector.broadcast %37 : vector<1x768xf32> to vector<8x768xf32>
    %39 = arith.addf %35, %38 : vector<8x768xf32>
    %cst_30 = arith.constant 0.000000e+00 : f32
    %40 = vector.broadcast %cst_30 : f32 to vector<8x768xf32>
    %41 = arith.maximumf %39, %40 : vector<8x768xf32>
    %42 = vector.extract_strided_slice %41 {offsets = [0, 0], sizes = [8, 256], strides = [1, 1]} : vector<8x768xf32> to vector<8x256xf32>
    %43 = vector.extract_strided_slice %41 {offsets = [0, 256], sizes = [8, 256], strides = [1, 1]} : vector<8x768xf32> to vector<8x256xf32>
    %44 = arith.addf %42, %43 : vector<8x256xf32>
    %45 = vector.extract_strided_slice %41 {offsets = [0, 512], sizes = [8, 256], strides = [1, 1]} : vector<8x768xf32> to vector<8x256xf32>
    %46 = arith.addf %44, %45 : vector<8x256xf32>
    %c2 = arith.constant 2 : index
    %c0_31 = arith.constant 0 : index
    %c0_32 = arith.constant 0 : index
    %47 = vector.load %arg1[%c2, %c0_31, %c0_32] : memref<4x256x512xf32, #tpu.memory_space<vmem>>, vector<1x256x512xf32>
    %48 = vector.shape_cast %47 : vector<1x256x512xf32> to vector<256x512xf32>
    %cst_33 = arith.constant dense<0.000000e+00> : vector<8x512xf32>
    %49 = tpu.matmul %46, %48, %cst_33 {dimension_numbers = #tpu.dot_dimension_numbers<[1], [0], [0], [1], [0, 0, 1, 1], [], []>} : vector<8x256xf32>, vector<256x512xf32>, vector<8x512xf32> -> vector<8x512xf32>
    %c2_34 = arith.constant 2 : index
    %c0_35 = arith.constant 0 : index
    %c0_36 = arith.constant 0 : index
    %50 = vector.load %arg2[%c2_34, %c0_35, %c0_36] : memref<4x1x512xf32, #tpu.memory_space<vmem>>, vector<1x1x512xf32>
    %51 = vector.shape_cast %50 : vector<1x1x512xf32> to vector<1x512xf32>
    %52 = vector.broadcast %51 : vector<1x512xf32> to vector<8x512xf32>
    %53 = arith.addf %49, %52 : vector<8x512xf32>
    %cst_37 = arith.constant 0.000000e+00 : f32
    %54 = vector.broadcast %cst_37 : f32 to vector<8x512xf32>
    %55 = arith.maximumf %53, %54 : vector<8x512xf32>
    %c2_38 = arith.constant 2 : index
    %c0_39 = arith.constant 0 : index
    %c0_40 = arith.constant 0 : index
    %56 = vector.load %arg3[%c2_38, %c0_39, %c0_40] : memref<4x512x768xf32, #tpu.memory_space<vmem>>, vector<1x512x768xf32>
    %57 = vector.shape_cast %56 : vector<1x512x768xf32> to vector<512x768xf32>
    %cst_41 = arith.constant dense<0.000000e+00> : vector<8x768xf32>
    %58 = tpu.matmul %55, %57, %cst_41 {dimension_numbers = #tpu.dot_dimension_numbers<[1], [0], [0], [1], [0, 0, 1, 1], [], []>} : vector<8x512xf32>, vector<512x768xf32>, vector<8x768xf32> -> vector<8x768xf32>
    %c2_42 = arith.constant 2 : index
    %c0_43 = arith.constant 0 : index
    %c0_44 = arith.constant 0 : index
    %59 = vector.load %arg4[%c2_42, %c0_43, %c0_44] : memref<4x1x768xf32, #tpu.memory_space<vmem>>, vector<1x1x768xf32>
    %60 = vector.shape_cast %59 : vector<1x1x768xf32> to vector<1x768xf32>
    %61 = vector.broadcast %60 : vector<1x768xf32> to vector<8x768xf32>
    %62 = arith.addf %58, %61 : vector<8x768xf32>
    %cst_45 = arith.constant 0.000000e+00 : f32
    %63 = vector.broadcast %cst_45 : f32 to vector<8x768xf32>
    %64 = arith.maximumf %62, %63 : vector<8x768xf32>
    %65 = vector.extract_strided_slice %64 {offsets = [0, 0], sizes = [8, 256], strides = [1, 1]} : vector<8x768xf32> to vector<8x256xf32>
    %66 = vector.extract_strided_slice %64 {offsets = [0, 256], sizes = [8, 256], strides = [1, 1]} : vector<8x768xf32> to vector<8x256xf32>
    %67 = arith.addf %65, %66 : vector<8x256xf32>
    %68 = vector.extract_strided_slice %64 {offsets = [0, 512], sizes = [8, 256], strides = [1, 1]} : vector<8x768xf32> to vector<8x256xf32>
    %69 = arith.addf %67, %68 : vector<8x256xf32>
    %c3 = arith.constant 3 : index
    %c0_46 = arith.constant 0 : index
    %c0_47 = arith.constant 0 : index
    %70 = vector.load %arg1[%c3, %c0_46, %c0_47] : memref<4x256x512xf32, #tpu.memory_space<vmem>>, vector<1x256x512xf32>
    %71 = vector.shape_cast %70 : vector<1x256x512xf32> to vector<256x512xf32>
    %cst_48 = arith.constant dense<0.000000e+00> : vector<8x512xf32>
    %72 = tpu.matmul %69, %71, %cst_48 {dimension_numbers = #tpu.dot_dimension_numbers<[1], [0], [0], [1], [0, 0, 1, 1], [], []>} : vector<8x256xf32>, vector<256x512xf32>, vector<8x512xf32> -> vector<8x512xf32>
    %c3_49 = arith.constant 3 : index
    %c0_50 = arith.constant 0 : index
    %c0_51 = arith.constant 0 : index
    %73 = vector.load %arg2[%c3_49, %c0_50, %c0_51] : memref<4x1x512xf32, #tpu.memory_space<vmem>>, vector<1x1x512xf32>
    %74 = vector.shape_cast %73 : vector<1x1x512xf32> to vector<1x512xf32>
    %75 = vector.broadcast %74 : vector<1x512xf32> to vector<8x512xf32>
    %76 = arith.addf %72, %75 : vector<8x512xf32>
    %cst_52 = arith.constant 0.000000e+00 : f32
    %77 = vector.broadcast %cst_52 : f32 to vector<8x512xf32>
    %78 = arith.maximumf %76, %77 : vector<8x512xf32>
    %c3_53 = arith.constant 3 : index
    %c0_54 = arith.constant 0 : index
    %c0_55 = arith.constant 0 : index
    %79 = vector.load %arg3[%c3_53, %c0_54, %c0_55] : memref<4x512x768xf32, #tpu.memory_space<vmem>>, vector<1x512x768xf32>
    %80 = vector.shape_cast %79 : vector<1x512x768xf32> to vector<512x768xf32>
    %cst_56 = arith.constant dense<0.000000e+00> : vector<8x768xf32>
    %81 = tpu.matmul %78, %80, %cst_56 {dimension_numbers = #tpu.dot_dimension_numbers<[1], [0], [0], [1], [0, 0, 1, 1], [], []>} : vector<8x512xf32>, vector<512x768xf32>, vector<8x768xf32> -> vector<8x768xf32>
    %c3_57 = arith.constant 3 : index
    %c0_58 = arith.constant 0 : index
    %c0_59 = arith.constant 0 : index
    %82 = vector.load %arg4[%c3_57, %c0_58, %c0_59] : memref<4x1x768xf32, #tpu.memory_space<vmem>>, vector<1x1x768xf32>
    %83 = vector.shape_cast %82 : vector<1x1x768xf32> to vector<1x768xf32>
    %84 = vector.broadcast %83 : vector<1x768xf32> to vector<8x768xf32>
    %85 = arith.addf %81, %84 : vector<8x768xf32>
    %cst_60 = arith.constant 0.000000e+00 : f32
    %86 = vector.broadcast %cst_60 : f32 to vector<8x768xf32>
    %87 = arith.maximumf %85, %86 : vector<8x768xf32>
    %88 = vector.extract_strided_slice %87 {offsets = [0, 0], sizes = [8, 256], strides = [1, 1]} : vector<8x768xf32> to vector<8x256xf32>
    %89 = vector.extract_strided_slice %87 {offsets = [0, 256], sizes = [8, 256], strides = [1, 1]} : vector<8x768xf32> to vector<8x256xf32>
    %90 = arith.addf %88, %89 : vector<8x256xf32>
    %91 = vector.extract_strided_slice %87 {offsets = [0, 512], sizes = [8, 256], strides = [1, 1]} : vector<8x768xf32> to vector<8x256xf32>
    %92 = arith.addf %90, %91 : vector<8x256xf32>
    %c0_61 = arith.constant 0 : index
    %c0_62 = arith.constant 0 : index
    %93 = vector.load %arg5[%c0_61, %c0_62] : memref<256x256xf32, #tpu.memory_space<vmem>>, vector<256x256xf32>
    %cst_63 = arith.constant dense<0.000000e+00> : vector<8x256xf32>
    %94 = tpu.matmul %0, %93, %cst_63 {dimension_numbers = #tpu.dot_dimension_numbers<[1], [0], [0], [1], [0, 0, 1, 1], [], []>} : vector<8x256xf32>, vector<256x256xf32>, vector<8x256xf32> -> vector<8x256xf32>
    %95 = vector.extract_strided_slice %94 {offsets = [0, 0], sizes = [8, 128], strides = [1, 1]} : vector<8x256xf32> to vector<8x128xf32>
    %96 = vector.extract_strided_slice %94 {offsets = [0, 128], sizes = [8, 128], strides = [1, 1]} : vector<8x256xf32> to vector<8x128xf32>
    %97 = arith.negf %96 : vector<8x128xf32>
    %98 = math.exp %97 : vector<8x128xf32>
    %cst_64 = arith.constant 1.000000e+00 : f32
    %99 = vector.broadcast %cst_64 : f32 to vector<8x128xf32>
    %100 = arith.addf %99, %98 : vector<8x128xf32>
    %101 = arith.divf %99, %100 : vector<8x128xf32>
    %102 = arith.mulf %95, %101 : vector<8x128xf32>
    %c0_65 = arith.constant 0 : index
    %c0_66 = arith.constant 0 : index
    %103 = vector.load %arg6[%c0_65, %c0_66] : memref<256x128xf32, #tpu.memory_space<vmem>>, vector<256x128xf32>
    %cst_67 = arith.constant dense<0.000000e+00> : vector<8x128xf32>
    %104 = tpu.matmul %92, %103, %cst_67 {dimension_numbers = #tpu.dot_dimension_numbers<[1], [0], [0], [1], [0, 0, 1, 1], [], []>} : vector<8x256xf32>, vector<256x128xf32>, vector<8x128xf32> -> vector<8x128xf32>
    %c0_68 = arith.constant 0 : index
    %c0_69 = arith.constant 0 : index
    %105 = vector.load %arg7[%c0_68, %c0_69] : memref<128x128xf32, #tpu.memory_space<vmem>>, vector<128x128xf32>
    %cst_70 = arith.constant dense<0.000000e+00> : vector<8x128xf32>
    %106 = tpu.matmul %102, %105, %cst_70 {dimension_numbers = #tpu.dot_dimension_numbers<[1], [0], [0], [1], [0, 0, 1, 1], [], []>} : vector<8x128xf32>, vector<128x128xf32>, vector<8x128xf32> -> vector<8x128xf32>
    %107 = arith.addf %104, %106 : vector<8x128xf32>
    %c0_71 = arith.constant 0 : index
    %c0_72 = arith.constant 0 : index
    %108 = vector.load %arg8[%c0_71, %c0_72] : memref<1x128xf32, #tpu.memory_space<vmem>>, vector<1x128xf32>
    %109 = vector.broadcast %108 : vector<1x128xf32> to vector<8x128xf32>
    %110 = arith.addf %107, %109 : vector<8x128xf32>
    %c0_73 = arith.constant 0 : index
    %c0_74 = arith.constant 0 : index
    %111 = vector.load %arg9[%c0_73, %c0_74] : memref<8x128xf32, #tpu.memory_space<vmem>>, vector<8x128xf32>
    tpu.vector_store %arg9[%c0_73, %c0_74], %110 {strides = array<i32>} : memref<8x128xf32, #tpu.memory_space<vmem>>, vector<8x128xf32>,
    return
  }
}

</mosaic_0001>

<llo_original>
// kernel: tpu_custom_call.1
$region0: #{tpu_custom_call.1}
  #allocation0 [shape = 'u32[]', space=smem, size = 0x4, offset = 0x4, fixed_abs, tag = 'smem constant byte address 0x4 - core index']
  #allocation1 [shape = 'u32[144,128]{1,0:T(1,128)}', space=vmem, size = 0x12000, scoped, tag = 'internal scratch']
  %s0 = inlined_call_operand.hbm [shape: f32[8,256], index: 0, kind: input, shape index: {}]
  %s1 = inlined_call_operand.hbm [shape: f32[4,256,512], index: 1, kind: input, shape index: {}]
  %s2 = inlined_call_operand.hbm [shape: f32[4,1,512], index: 2, kind: input, shape index: {}]
  %s3 = inlined_call_operand.hbm [shape: f32[4,512,768], index: 3, kind: input, shape index: {}]
  %s4 = inlined_call_operand.hbm [shape: f32[4,1,768], index: 4, kind: input, shape index: {}]
  %s5 = inlined_call_operand.hbm [shape: f32[256,256], index: 5, kind: input, shape index: {}]
  %s6 = inlined_call_operand.hbm [shape: f32[256,128], index: 6, kind: input, shape index: {}]
  %s7 = inlined_call_operand.hbm [shape: f32[128,128], index: 7, kind: input, shape index: {}]
  %s8 = inlined_call_operand.hbm [shape: f32[1,128], index: 8, kind: input, shape index: {}]
  %s9 = inlined_call_operand.hbm [shape: f32[8,128], index: 9, kind: output, shape index: {}]
  %s10 = sld [smem:[#allocation0]]
  $region82: #{tpu_custom_call.1} parent=0
    _
  %s12 = ssub.s32 1, %s10
  %s13 = scalar_select 0, %s12, %s10
  $region1: #{tpu_custom_call.1} parent=0
    #allocation2 [shape = 'u8[8192]{0}', space=vmem, size = 0x2000, scoped, tag = 'input window, operand 0, single buffered']
    #allocation3 [shape = 's32[1]{0}', space=sflag, size = 0x4, scoped, tag = 'scoped memory for tpu_custom_call.1']
    #allocation4 [shape = 's32[1]{0}', space=sflag, size = 0x4, scoped, tag = 'scoped memory for tpu_custom_call.1']
    #allocation5 [shape = 'u8[2097152]{0}', space=vmem, size = 0x200000, scoped, tag = 'input window, operand 1, single buffered']
    #allocation6 [shape = 's32[1]{0}', space=sflag, size = 0x4, scoped, tag = 'scoped memory for tpu_custom_call.1']
    #allocation7 [shape = 'u8[8192]{0}', space=vmem, size = 0x2000, scoped, tag = 'input window, operand 2, single buffered']
    #allocation8 [shape = 'u8[6291456]{0}', space=vmem, size = 0x600000, scoped, tag = 'input window, operand 3, single buffered']
    #allocation9 [shape = 's32[1]{0}', space=sflag, size = 0x4, scoped, tag = 'scoped memory for tpu_custom_call.1']
    #allocation10 [shape = 'u8[12288]{0}', space=vmem, size = 0x3000, scoped, tag = 'input window, operand 4, single buffered']
    #allocation11 [shape = 'u8[262144]{0}', space=vmem, size = 0x40000, scoped, tag = 'input window, operand 5, single buffered']
    #allocation12 [shape = 's32[1]{0}', space=sflag, size = 0x4, scoped, tag = 'scoped memory for tpu_custom_call.1']
    #allocation13 [shape = 'u8[131072]{0}', space=vmem, size = 0x20000, scoped, tag = 'input window, operand 6, single buffered']
    #allocation14 [shape = 'u8[65536]{0}', space=vmem, size = 0x10000, scoped, tag = 'input window, operand 7, single buffered']
    #allocation15 [shape = 's32[1]{0}', space=sflag, size = 0x4, scoped, tag = 'scoped memory for tpu_custom_call.1']
    #allocation16 [shape = 'u8[512]{0}', space=vmem, size = 0x400, scoped, tag = 'input window, operand 8, single buffered']
    #allocation17 [shape = 'u8[4096]{0}', space=vmem, size = 0x1000, scoped, tag = 'output window, operand 0, single buffered']
    %14 = vsyncpa [#allocation3], 0
    %15 = vsyncpa [#allocation6], 0
    %16 = vsyncpa [#allocation9], 0
    %17 = vsyncpa [#allocation12], 0
    %18 = vsyncpa [#allocation15], 0
    %19 = vsyncpa [#allocation4], 0
    // Predicated region
    $region2: #{tpu_custom_call.1} parent=1 // pred_check
      _
    $region3: #{tpu_custom_call.1} parent=1 // pred_check_branch
      %21 = sbr.rel (0) target = $region5
    $region4: #{tpu_custom_call.1} parent=1 // pred_region
      %s23 = ssub.s32 256, 256
      %24 = vsyncadd [#allocation3], %s23
      %s26 = sshll.u32 [#allocation2], 4
      %s27 = int_to_ptr.vmem [resolvable:$true] %s26
      %29 = dma.hbm_to_vmem [thread:$0]  %s0, 256, %s27, [#allocation3]
    $region5: #{tpu_custom_call.1} parent=1 // pred_fallthru
      _
    // Predicated region
    $region6: #{tpu_custom_call.1} parent=1 // pred_check
      _
    $region7: #{tpu_custom_call.1} parent=1 // pred_check_branch
      %31 = sbr.rel (0) target = $region9
    $region8: #{tpu_custom_call.1} parent=1 // pred_region
      %s33 = ssub.s32 65536, 65536
      %34 = vsyncadd [#allocation6], %s33
      %s35 = sshll.u32 [#allocation5], 4
      %s36 = int_to_ptr.vmem [resolvable:$true] %s35
      %41 = dma.hbm_to_vmem [thread:$0]  %s1, 65536, %s36, [#allocation6], 512, 512, 32
    $region9: #{tpu_custom_call.1} parent=1 // pred_fallthru
      _
    // Predicated region
    $region10: #{tpu_custom_call.1} parent=1 // pred_check
      _
    $region11: #{tpu_custom_call.1} parent=1 // pred_check_branch
      %43 = sbr.rel (0) target = $region13
    $region12: #{tpu_custom_call.1} parent=1 // pred_region
      %s45 = ssub.s32 256, 256
      %46 = vsyncadd [#allocation6], %s45
      %s47 = sshll.u32 [#allocation7], 4
      %s48 = int_to_ptr.vmem [resolvable:$true] %s47
      %53 = dma.hbm_to_vmem [thread:$0]  %s2, 256, %s48, [#allocation6], 64, 64, 4
    $region13: #{tpu_custom_call.1} parent=1 // pred_fallthru
      _
    // Predicated region
    $region14: #{tpu_custom_call.1} parent=1 // pred_check
      _
    $region15: #{tpu_custom_call.1} parent=1 // pred_check_branch
      %55 = sbr.rel (0) target = $region17
    $region16: #{tpu_custom_call.1} parent=1 // pred_region
      %s57 = ssub.s32 196608, 196608
      %58 = vsyncadd [#allocation9], %s57
      %s59 = sshll.u32 [#allocation8], 4
      %s60 = int_to_ptr.vmem [resolvable:$true] %s59
      %65 = dma.hbm_to_vmem [thread:$0]  %s3, 196608, %s60, [#allocation9], 768, 768, 48
    $region17: #{tpu_custom_call.1} parent=1 // pred_fallthru
      _
    // Predicated region
    $region18: #{tpu_custom_call.1} parent=1 // pred_check
      _
    $region19: #{tpu_custom_call.1} parent=1 // pred_check_branch
      %67 = sbr.rel (0) target = $region21
    $region20: #{tpu_custom_call.1} parent=1 // pred_region
      %s69 = ssub.s32 384, 384
      %70 = vsyncadd [#allocation9], %s69
      %s71 = sshll.u32 [#allocation10], 4
      %s72 = int_to_ptr.vmem [resolvable:$true] %s71
      %77 = dma.hbm_to_vmem [thread:$0]  %s4, 384, %s72, [#allocation9], 96, 96, 6
    $region21: #{tpu_custom_call.1} parent=1 // pred_fallthru
      _
    // Predicated region
    $region22: #{tpu_custom_call.1} parent=1 // pred_check
      _
    $region23: #{tpu_custom_call.1} parent=1 // pred_check_branch
      %79 = sbr.rel (0) target = $region25
    $region24: #{tpu_custom_call.1} parent=1 // pred_region
      %s81 = ssub.s32 8192, 8192
      %82 = vsyncadd [#allocation12], %s81
      %s83 = sshll.u32 [#allocation11], 4
      %s84 = int_to_ptr.vmem [resolvable:$true] %s83
      %89 = dma.hbm_to_vmem [thread:$0]  %s5, 8192, %s84, [#allocation12], 256, 256, 16
    $region25: #{tpu_custom_call.1} parent=1 // pred_fallthru
      _
    // Predicated region
    $region26: #{tpu_custom_call.1} parent=1 // pred_check
      _
    $region27: #{tpu_custom_call.1} parent=1 // pred_check_branch
      %91 = sbr.rel (0) target = $region29
    $region28: #{tpu_custom_call.1} parent=1 // pred_region
      %s93 = ssub.s32 4096, 4096
      %94 = vsyncadd [#allocation12], %s93
      %s95 = sshll.u32 [#allocation13], 4
      %s96 = int_to_ptr.vmem [resolvable:$true] %s95
      %101 = dma.hbm_to_vmem [thread:$0]  %s6, 4096, %s96, [#allocation12], 128, 128, 8
    $region29: #{tpu_custom_call.1} parent=1 // pred_fallthru
      _
    // Predicated region
    $region30: #{tpu_custom_call.1} parent=1 // pred_check
      _
    $region31: #{tpu_custom_call.1} parent=1 // pred_check_branch
      %103 = sbr.rel (0) target = $region33
    $region32: #{tpu_custom_call.1} parent=1 // pred_region
      %s105 = ssub.s32 2048, 2048
      %106 = vsyncadd [#allocation15], %s105
      %s107 = sshll.u32 [#allocation14], 4
      %s108 = int_to_ptr.vmem [resolvable:$true] %s107
      %113 = dma.hbm_to_vmem [thread:$0]  %s7, 2048, %s108, [#allocation15], 128, 128, 8
    $region33: #{tpu_custom_call.1} parent=1 // pred_fallthru
      _
    // Predicated region
    $region34: #{tpu_custom_call.1} parent=1 // pred_check
      _
    $region35: #{tpu_custom_call.1} parent=1 // pred_check_branch
      %115 = sbr.rel (0) target = $region37
    $region36: #{tpu_custom_call.1} parent=1 // pred_region
      %s117 = ssub.s32 16, 16
      %118 = vsyncadd [#allocation15], %s117
      %s120 = sshll.u32 [#allocation16], 4
      %s121 = int_to_ptr.vmem [resolvable:$true] %s120
      %123 = dma.hbm_to_vmem [thread:$0]  %s8, 16, %s121, [#allocation15]
    $region37: #{tpu_custom_call.1} parent=1 // pred_fallthru
      _
    // Predicated region
    $region38: #{tpu_custom_call.1} parent=1 // pred_check
      _
    $region39: #{tpu_custom_call.1} parent=1 // pred_check_branch
      %125 = sbr.rel (0) target = $region41
    $region40: #{tpu_custom_call.1} parent=1 // pred_region
      %126 = dma.done [#allocation3], 256
    $region41: #{tpu_custom_call.1} parent=1 // pred_fallthru
      _
    // Predicated region
    $region42: #{tpu_custom_call.1} parent=1 // pred_check
      _
    $region43: #{tpu_custom_call.1} parent=1 // pred_check_branch
      %128 = sbr.rel (0) target = $region45
    $region44: #{tpu_custom_call.1} parent=1 // pred_region
      %129 = dma.done [#allocation6], 65536
    $region45: #{tpu_custom_call.1} parent=1 // pred_fallthru
      _
    // Predicated region
    $region46: #{tpu_custom_call.1} parent=1 // pred_check
      _
    $region47: #{tpu_custom_call.1} parent=1 // pred_check_branch
      %131 = sbr.rel (0) target = $region49
    $region48: #{tpu_custom_call.1} parent=1 // pred_region
      %132 = dma.done [#allocation6], 256
    $region49: #{tpu_custom_call.1} parent=1 // pred_fallthru
      _
    // Predicated region
    $region50: #{tpu_custom_call.1} parent=1 // pred_check
      _
    $region51: #{tpu_custom_call.1} parent=1 // pred_check_branch
      %134 = sbr.rel (0) target = $region53
    $region52: #{tpu_custom_call.1} parent=1 // pred_region
      %135 = dma.done [#allocation9], 196608
    $region53: #{tpu_custom_call.1} parent=1 // pred_fallthru
      _
    // Predicated region
    $region54: #{tpu_custom_call.1} parent=1 // pred_check
      _
    $region55: #{tpu_custom_call.1} parent=1 // pred_check_branch
      %137 = sbr.rel (0) target = $region57
    $region56: #{tpu_custom_call.1} parent=1 // pred_region
      %138 = dma.done [#allocation9], 384
    $region57: #{tpu_custom_call.1} parent=1 // pred_fallthru
      _
    // Predicated region
    $region58: #{tpu_custom_call.1} parent=1 // pred_check
      _
    $region59: #{tpu_custom_call.1} parent=1 // pred_check_branch
      %140 = sbr.rel (0) target = $region61
    $region60: #{tpu_custom_call.1} parent=1 // pred_region
      %141 = dma.done [#allocation12], 8192
    $region61: #{tpu_custom_call.1} parent=1 // pred_fallthru
      _
    // Predicated region
    $region62: #{tpu_custom_call.1} parent=1 // pred_check
      _
    $region63: #{tpu_custom_call.1} parent=1 // pred_check_branch
      %143 = sbr.rel (0) target = $region65
    $region64: #{tpu_custom_call.1} parent=1 // pred_region
      %144 = dma.done [#allocation12], 4096
    $region65: #{tpu_custom_call.1} parent=1 // pred_fallthru
      _
    // Predicated region
    $region66: #{tpu_custom_call.1} parent=1 // pred_check
      _
    $region67: #{tpu_custom_call.1} parent=1 // pred_check_branch
      %146 = sbr.rel (0) target = $region69
    $region68: #{tpu_custom_call.1} parent=1 // pred_region
      %147 = dma.done [#allocation15], 2048
    $region69: #{tpu_custom_call.1} parent=1 // pred_fallthru
      _
    // Predicated region
    $region70: #{tpu_custom_call.1} parent=1 // pred_check
      _
    $region71: #{tpu_custom_call.1} parent=1 // pred_check_branch
      %149 = sbr.rel (0) target = $region73
    $region72: #{tpu_custom_call.1} parent=1 // pred_region
      %150 = dma.done [#allocation15], 16
    $region73: #{tpu_custom_call.1} parent=1 // pred_fallthru
      _
    %v151 = vld [vmem:[#allocation2] sm:$0xff]
    %v152 = vld [vmem:[#allocation2 + $0x8] sm:$0xff]
    %v153 = vld [vmem:[#allocation5] sm:$0xff]
    %v154 = vld [vmem:[#allocation5 + $0x8] sm:$0xff]
    %v155 = vld [vmem:[#allocation5 + $0x10] sm:$0xff]
    %v156 = vld [vmem:[#allocation5 + $0x18] sm:$0xff]
    %v157 = vld [vmem:[#allocation5 + $0x20] sm:$0xff]
    %v158 = vld [vmem:[#allocation5 + $0x28] sm:$0xff]
    %v159 = vld [vmem:[#allocation5 + $0x30] sm:$0xff]
    %v160 = vld [vmem:[#allocation5 + $0x38] sm:$0xff]
    %v161 = vld [vmem:[#allocation5 + $0x40] sm:$0xff]
    %v162 = vld [vmem:[#allocation5 + $0x48] sm:$0xff]
    %v163 = vld [vmem:[#allocation5 + $0x50] sm:$0xff]
    %v164 = vld [vmem:[#allocation5 + $0x58] sm:$0xff]
    %v165 = vld [vmem:[#allocation5 + $0x60] sm:$0xff]
    %v166 = vld [vmem:[#allocation5 + $0x68] sm:$0xff]
    %v167 = vld [vmem:[#allocation5 + $0x70] sm:$0xff]
    %v168 = vld [vmem:[#allocation5 + $0x78] sm:$0xff]
    %v169 = vld [vmem:[#allocation5 + $0x80] sm:$0xff]
    %v170 = vld [vmem:[#allocation5 + $0x88] sm:$0xff]
    %v171 = vld [vmem:[#allocation5 + $0x90] sm:$0xff]
    %v172 = vld [vmem:[#allocation5 + $0x98] sm:$0xff]
    %v173 = vld [vmem:[#allocation5 + $0xa0] sm:$0xff]
    %v174 = vld [vmem:[#allocation5 + $0xa8] sm:$0xff]
    %v175 = vld [vmem:[#allocation5 + $0xb0] sm:$0xff]
    %v176 = vld [vmem:[#allocation5 + $0xb8] sm:$0xff]
    %v177 = vld [vmem:[#allocation5 + $0xc0] sm:$0xff]
    %v178 = vld [vmem:[#allocation5 + $0xc8] sm:$0xff]
    %v179 = vld [vmem:[#allocation5 + $0xd0] sm:$0xff]
    %v180 = vld [vmem:[#allocation5 + $0xd8] sm:$0xff]
    %v181 = vld [vmem:[#allocation5 + $0xe0] sm:$0xff]
    %v182 = vld [vmem:[#allocation5 + $0xe8] sm:$0xff]
    %v183 = vld [vmem:[#allocation5 + $0xf0] sm:$0xff]
    %v184 = vld [vmem:[#allocation5 + $0xf8] sm:$0xff]
    %v185 = vld [vmem:[#allocation5 + $0x100] sm:$0xff]
    %v186 = vld [vmem:[#allocation5 + $0x108] sm:$0xff]
    %v187 = vld [vmem:[#allocation5 + $0x110] sm:$0xff]
    %v188 = vld [vmem:[#allocation5 + $0x118] sm:$0xff]
    %v189 = vld [vmem:[#allocation5 + $0x120] sm:$0xff]
    %v190 = vld [vmem:[#allocation5 + $0x128] sm:$0xff]
    %v191 = vld [vmem:[#allocation5 + $0x130] sm:$0xff]
    %v192 = vld [vmem:[#allocation5 + $0x138] sm:$0xff]
    %v193 = vld [vmem:[#allocation5 + $0x140] sm:$0xff]
    %v194 = vld [vmem:[#allocation5 + $0x148] sm:$0xff]
    %v195 = vld [vmem:[#allocation5 + $0x150] sm:$0xff]
    %v196 = vld [vmem:[#allocation5 + $0x158] sm:$0xff]
    %v197 = vld [vmem:[#allocation5 + $0x160] sm:$0xff]
    %v198 = vld [vmem:[#allocation5 + $0x168] sm:$0xff]
    %v199 = vld [vmem:[#allocation5 + $0x170] sm:$0xff]
    %v200 = vld [vmem:[#allocation5 + $0x178] sm:$0xff]
    %v201 = vld [vmem:[#allocation5 + $0x180] sm:$0xff]
    %v202 = vld [vmem:[#allocation5 + $0x188] sm:$0xff]
    %v203 = vld [vmem:[#allocation5 + $0x190] sm:$0xff]
    %v204 = vld [vmem:[#allocation5 + $0x198] sm:$0xff]
    %v205 = vld [vmem:[#allocation5 + $0x1a0] sm:$0xff]
    %v206 = vld [vmem:[#allocation5 + $0x1a8] sm:$0xff]
    %v207 = vld [vmem:[#allocation5 + $0x1b0] sm:$0xff]
    %v208 = vld [vmem:[#allocation5 + $0x1b8] sm:$0xff]
    %v209 = vld [vmem:[#allocation5 + $0x1c0] sm:$0xff]
    %v210 = vld [vmem:[#allocation5 + $0x1c8] sm:$0xff]
    %v211 = vld [vmem:[#allocation5 + $0x1d0] sm:$0xff]
    %v212 = vld [vmem:[#allocation5 + $0x1d8] sm:$0xff]
    %v213 = vld [vmem:[#allocation5 + $0x1e0] sm:$0xff]
    %v214 = vld [vmem:[#allocation5 + $0x1e8] sm:$0xff]
    %v215 = vld [vmem:[#allocation5 + $0x1f0] sm:$0xff]
    %v216 = vld [vmem:[#allocation5 + $0x1f8] sm:$0xff]
    %v217 = vld [vmem:[#allocation5 + $0x200] sm:$0xff]
    %v218 = vld [vmem:[#allocation5 + $0x208] sm:$0xff]
    %v219 = vld [vmem:[#allocation5 + $0x210] sm:$0xff]
    %v220 = vld [vmem:[#allocation5 + $0x218] sm:$0xff]
    %v221 = vld [vmem:[#allocation5 + $0x220] sm:$0xff]
    %v222 = vld [vmem:[#allocation5 + $0x228] sm:$0xff]
    %v223 = vld [vmem:[#allocation5 + $0x230] sm:$0xff]
    %v224 = vld [vmem:[#allocation5 + $0x238] sm:$0xff]
    %v225 = vld [vmem:[#allocation5 + $0x240] sm:$0xff]
    %v226 = vld [vmem:[#allocation5 + $0x248] sm:$0xff]
    %v227 = vld [vmem:[#allocation5 + $0x250] sm:$0xff]
    %v228 = vld [vmem:[#allocation5 + $0x258] sm:$0xff]
    %v229 = vld [vmem:[#allocation5 + $0x260] sm:$0xff]
    %v230 = vld [vmem:[#allocation5 + $0x268] sm:$0xff]
    %v231 = vld [vmem:[#allocation5 + $0x270] sm:$0xff]
    %v232 = vld [vmem:[#allocation5 + $0x278] sm:$0xff]
    %v233 = vld [vmem:[#allocation5 + $0x280] sm:$0xff]
    %v234 = vld [vmem:[#allocation5 + $0x288] sm:$0xff]
    %v235 = vld [vmem:[#allocation5 + $0x290] sm:$0xff]
    %v236 = vld [vmem:[#allocation5 + $0x298] sm:$0xff]
    %v237 = vld [vmem:[#allocation5 + $0x2a0] sm:$0xff]
    %v238 = vld [vmem:[#allocation5 + $0x2a8] sm:$0xff]
    %v239 = vld [vmem:[#allocation5 + $0x2b0] sm:$0xff]
    %v240 = vld [vmem:[#allocation5 + $0x2b8] sm:$0xff]
    %v241 = vld [vmem:[#allocation5 + $0x2c0] sm:$0xff]
    %v242 = vld [vmem:[#allocation5 + $0x2c8] sm:$0xff]
    %v243 = vld [vmem:[#allocation5 + $0x2d0] sm:$0xff]
    %v244 = vld [vmem:[#allocation5 + $0x2d8] sm:$0xff]
    %v245 = vld [vmem:[#allocation5 + $0x2e0] sm:$0xff]
    %v246 = vld [vmem:[#allocation5 + $0x2e8] sm:$0xff]
    %v247 = vld [vmem:[#allocation5 + $0x2f0] sm:$0xff]
    %v248 = vld [vmem:[#allocation5 + $0x2f8] sm:$0xff]
    %v249 = vld [vmem:[#allocation5 + $0x300] sm:$0xff]
    %v250 = vld [vmem:[#allocation5 + $0x308] sm:$0xff]
    %v251 = vld [vmem:[#allocation5 + $0x310] sm:$0xff]
    %v252 = vld [vmem:[#allocation5 + $0x318] sm:$0xff]
    %v253 = vld [vmem:[#allocation5 + $0x320] sm:$0xff]
    %v254 = vld [vmem:[#allocation5 + $0x328] sm:$0xff]
    %v255 = vld [vmem:[#allocation5 + $0x330] sm:$0xff]
    %v256 = vld [vmem:[#allocation5 + $0x338] sm:$0xff]
    %v257 = vld [vmem:[#allocation5 + $0x340] sm:$0xff]
    %v258 = vld [vmem:[#allocation5 + $0x348] sm:$0xff]
    %v259 = vld [vmem:[#allocation5 + $0x350] sm:$0xff]
    %v260 = vld [vmem:[#allocation5 + $0x358] sm:$0xff]
    %v261 = vld [vmem:[#allocation5 + $0x360] sm:$0xff]
    %v262 = vld [vmem:[#allocation5 + $0x368] sm:$0xff]
    %v263 = vld [vmem:[#allocation5 + $0x370] sm:$0xff]
    %v264 = vld [vmem:[#allocation5 + $0x378] sm:$0xff]
    %v265 = vld [vmem:[#allocation5 + $0x380] sm:$0xff]
    %v266 = vld [vmem:[#allocation5 + $0x388] sm:$0xff]
    %v267 = vld [vmem:[#allocation5 + $0x390] sm:$0xff]
    %v268 = vld [vmem:[#allocation5 + $0x398] sm:$0xff]
    %v269 = vld [vmem:[#allocation5 + $0x3a0] sm:$0xff]
    %v270 = vld [vmem:[#allocation5 + $0x3a8] sm:$0xff]
    %v271 = vld [vmem:[#allocation5 + $0x3b0] sm:$0xff]
    %v272 = vld [vmem:[#allocation5 + $0x3b8] sm:$0xff]
    %v273 = vld [vmem:[#allocation5 + $0x3c0] sm:$0xff]
    %v274 = vld [vmem:[#allocation5 + $0x3c8] sm:$0xff]
    %v275 = vld [vmem:[#allocation5 + $0x3d0] sm:$0xff]
    %v276 = vld [vmem:[#allocation5 + $0x3d8] sm:$0xff]
    %v277 = vld [vmem:[#allocation5 + $0x3e0] sm:$0xff]
    %v278 = vld [vmem:[#allocation5 + $0x3e8] sm:$0xff]
    %v279 = vld [vmem:[#allocation5 + $0x3f0] sm:$0xff]
    %v280 = vld [vmem:[#allocation5 + $0x3f8] sm:$0xff]
    %v281 = vld [vmem:[#allocation7] sm:$0xf]
    %v283 = vlaneseq
    %v284 = vshrl.u32 %v283, 7
    %v285 = vsub.s32 0, %v284
    %v286 = vrot.slane %v281, %v285
    %v287 = vlaneseq
    %v288 = vshrl.u32 %v287, 7
    %v289 = vsub.s32 1, %v288
    %v290 = vrot.slane %v281, %v289
    %v291 = vlaneseq
    %v292 = vshrl.u32 %v291, 7
    %v293 = vsub.s32 2, %v292
    %v294 = vrot.slane %v281, %v293
    %v295 = vlaneseq
    %v296 = vshrl.u32 %v295, 7
    %v297 = vsub.s32 3, %v296
    %v298 = vrot.slane %v281, %v297
    %303 = vmatprep.subr.mxu0 %v214
    %304 = vmatpush1.msra.mxu0 %v213
    %305 = vmatprep.subr.mxu0 %v210
    %306 = vmatpush1.msra.mxu0 %v209
    %307 = vmatprep.subr.mxu0 %v206
    %308 = vmatpush1.msra.mxu0 %v205
    %309 = vmatprep.subr.mxu0 %v202
    %310 = vmatpush1.msra.mxu0 %v201
    %311 = vmatprep.subr.mxu0 %v198
    %312 = vmatpush1.msra.mxu0 %v197
    %313 = vmatprep.subr.mxu0 %v194
    %314 = vmatpush1.msra.mxu0 %v193
    %315 = vmatprep.subr.mxu0 %v190
    %316 = vmatpush1.msra.mxu0 %v189
    %317 = vmatprep.subr.mxu0 %v186
    %318 = vmatpush1.msra.mxu0 %v185
    %319 = vmatprep.subr.mxu0 %v182
    %320 = vmatpush1.msra.mxu0 %v181
    %321 = vmatprep.subr.mxu0 %v178
    %322 = vmatpush1.msra.mxu0 %v177
    %323 = vmatprep.subr.mxu0 %v174
    %324 = vmatpush1.msra.mxu0 %v173
    %325 = vmatprep.subr.mxu0 %v170
    %326 = vmatpush1.msra.mxu0 %v169
    %327 = vmatprep.subr.mxu0 %v166
    %328 = vmatpush1.msra.mxu0 %v165
    %329 = vmatprep.subr.mxu0 %v162
    %330 = vmatpush1.msra.mxu0 %v161
    %331 = vmatprep.subr.mxu0 %v158
    %332 = vmatpush1.msra.mxu0 %v157
    %333 = vmatprep.subr.mxu0 %v154
    %334 = vmatpush1.msra.mxu0 %v153
    %335 = vmatprep.subr.mxu0 %v278
    %336 = vmatpush2.msra.mxu0 %v277
    %337 = vmatprep.subr.mxu0 %v274
    %338 = vmatpush2.msra.mxu0 %v273
    %339 = vmatprep.subr.mxu0 %v270
    %340 = vmatpush2.msra.mxu0 %v269
    %341 = vmatprep.subr.mxu0 %v266
    %342 = vmatpush2.msra.mxu0 %v265
    %343 = vmatprep.subr.mxu0 %v262
    %344 = vmatpush2.msra.mxu0 %v261
    %345 = vmatprep.subr.mxu0 %v258
    %346 = vmatpush2.msra.mxu0 %v257
    %347 = vmatprep.subr.mxu0 %v254
    %348 = vmatpush2.msra.mxu0 %v253
    %349 = vmatprep.subr.mxu0 %v250
    %350 = vmatpush2.msra.mxu0 %v249
    %351 = vmatprep.subr.mxu0 %v246
    %352 = vmatpush2.msra.mxu0 %v245
    %353 = vmatprep.subr.mxu0 %v242
    %354 = vmatpush2.msra.mxu0 %v241
    %355 = vmatprep.subr.mxu0 %v238
    %356 = vmatpush2.msra.mxu0 %v237
    %357 = vmatprep.subr.mxu0 %v234
    %358 = vmatpush2.msra.mxu0 %v233
    %359 = vmatprep.subr.mxu0 %v230
    %360 = vmatpush2.msra.mxu0 %v229
    %361 = vmatprep.subr.mxu0 %v226
    %362 = vmatpush2.msra.mxu0 %v225
    %363 = vmatprep.subr.mxu0 %v222
    %364 = vmatpush2.msra.mxu0 %v221
    %365 = vmatprep.subr.mxu0 %v218
    %366 = vmatpush2.msra.mxu0 %v217
    %367 = vmatprep.mubr.f32.mxu0 %v152
    %368 = vmatmul.mubr.f32.gmra.mxu0 %v151
    %v369 = vpop.f32.mrf.mxu0
    %v370 = vadd.f32 %v286, %v369
    %v371 = vpop.f32.mrf.mxu0
    %v372 = vadd.f32 %v290, %v371
    %373 = vdwg.mxu0
    %374 = vmatprep.subr.mxu0 %v216
    %375 = vmatpush1.msra.mxu0 %v215
    %376 = vmatprep.subr.mxu0 %v212
    %377 = vmatpush1.msra.mxu0 %v211
    %378 = vmatprep.subr.mxu0 %v208
    %379 = vmatpush1.msra.mxu0 %v207
    %380 = vmatprep.subr.mxu0 %v204
    %381 = vmatpush1.msra.mxu0 %v203
    %382 = vmatprep.subr.mxu0 %v200
    %383 = vmatpush1.msra.mxu0 %v199
    %384 = vmatprep.subr.mxu0 %v196
    %385 = vmatpush1.msra.mxu0 %v195
    %386 = vmatprep.subr.mxu0 %v192
    %387 = vmatpush1.msra.mxu0 %v191
    %388 = vmatprep.subr.mxu0 %v188
    %389 = vmatpush1.msra.mxu0 %v187
    %390 = vmatprep.subr.mxu0 %v184
    %391 = vmatpush1.msra.mxu0 %v183
    %392 = vmatprep.subr.mxu0 %v180
    %393 = vmatpush1.msra.mxu0 %v179
    %394 = vmatprep.subr.mxu0 %v176
    %395 = vmatpush1.msra.mxu0 %v175
    %396 = vmatprep.subr.mxu0 %v172
    %397 = vmatpush1.msra.mxu0 %v171
    %398 = vmatprep.subr.mxu0 %v168
    %399 = vmatpush1.msra.mxu0 %v167
    %400 = vmatprep.subr.mxu0 %v164
    %401 = vmatpush1.msra.mxu0 %v163
    %402 = vmatprep.subr.mxu0 %v160
    %403 = vmatpush1.msra.mxu0 %v159
    %404 = vmatprep.subr.mxu0 %v156
    %405 = vmatpush1.msra.mxu0 %v155
    %406 = vmatprep.subr.mxu0 %v280
    %407 = vmatpush2.msra.mxu0 %v279
    %408 = vmatprep.subr.mxu0 %v276
    %409 = vmatpush2.msra.mxu0 %v275
    %410 = vmatprep.subr.mxu0 %v272
    %411 = vmatpush2.msra.mxu0 %v271
    %412 = vmatprep.subr.mxu0 %v268
    %413 = vmatpush2.msra.mxu0 %v267
    %414 = vmatprep.subr.mxu0 %v264
    %415 = vmatpush2.msra.mxu0 %v263
    %416 = vmatprep.subr.mxu0 %v260
    %417 = vmatpush2.msra.mxu0 %v259
    %418 = vmatprep.subr.mxu0 %v256
    %419 = vmatpush2.msra.mxu0 %v255
    %420 = vmatprep.subr.mxu0 %v252
    %421 = vmatpush2.msra.mxu0 %v251
    %422 = vmatprep.subr.mxu0 %v248
    %423 = vmatpush2.msra.mxu0 %v247
    %424 = vmatprep.subr.mxu0 %v244
    %425 = vmatpush2.msra.mxu0 %v243
    %426 = vmatprep.subr.mxu0 %v240
    %427 = vmatpush2.msra.mxu0 %v239
    %428 = vmatprep.subr.mxu0 %v236
    %429 = vmatpush2.msra.mxu0 %v235
    %430 = vmatprep.subr.mxu0 %v232
    %431 = vmatpush2.msra.mxu0 %v231
    %432 = vmatprep.subr.mxu0 %v228
    %433 = vmatpush2.msra.mxu0 %v227
    %434 = vmatprep.subr.mxu0 %v224
    %435 = vmatpush2.msra.mxu0 %v223
    %436 = vmatprep.subr.mxu0 %v220
    %437 = vmatpush2.msra.mxu0 %v219
    %438 = vmatprep.mubr.f32.mxu0 %v152
    %439 = vmatmul.mubr.f32.gmra.mxu0 %v151
    %v440 = vpop.f32.mrf.mxu0
    %v441 = vadd.f32 %v294, %v440
    %v442 = vpop.f32.mrf.mxu0
    %v443 = vadd.f32 %v298, %v442
    %444 = vdwg.mxu0
    %v445 = vmax.f32 %v370, 0.0
    %v446 = vmax.f32 %v372, 0.0
    %v447 = vmax.f32 %v441, 0.0
    %v448 = vmax.f32 %v443, 0.0
    %v449 = vld [vmem:[#allocation8] sm:$0xff]
    %v450 = vld [vmem:[#allocation8 + $0x8] sm:$0xff]
    %v451 = vld [vmem:[#allocation8 + $0x10] sm:$0xff]
    %v452 = vld [vmem:[#allocation8 + $0x18] sm:$0xff]
    %v453 = vld [vmem:[#allocation8 + $0x20] sm:$0xff]
    %v454 = vld [vmem:[#allocation8 + $0x28] sm:$0xff]
    %v455 = vld [vmem:[#allocation8 + $0x30] sm:$0xff]
    %v456 = vld [vmem:[#allocation8 + $0x38] sm:$0xff]
    %v457 = vld [vmem:[#allocation8 + $0x40] sm:$0xff]
    %v458 = vld [vmem:[#allocation8 + $0x48] sm:$0xff]
    %v459 = vld [vmem:[#allocation8 + $0x50] sm:$0xff]
    %v460 = vld [vmem:[#allocation8 + $0x58] sm:$0xff]
    %v461 = vld [vmem:[#allocation8 + $0x60] sm:$0xff]
    %v462 = vld [vmem:[#allocation8 + $0x68] sm:$0xff]
    %v463 = vld [vmem:[#allocation8 + $0x70] sm:$0xff]
    %v464 = vld [vmem:[#allocation8 + $0x78] sm:$0xff]
    %v465 = vld [vmem:[#allocation8 + $0x80] sm:$0xff]
    %v466 = vld [vmem:[#allocation8 + $0x88] sm:$0xff]
    %v467 = vld [vmem:[#allocation8 + $0x90] sm:$0xff]
    %v468 = vld [vmem:[#allocation8 + $0x98] sm:$0xff]
    %v469 = vld [vmem:[#allocation8 + $0xa0] sm:$0xff]
    %v470 = vld [vmem:[#allocation8 + $0xa8] sm:$0xff]
    %v471 = vld [vmem:[#allocation8 + $0xb0] sm:$0xff]
    %v472 = vld [vmem:[#allocation8 + $0xb8] sm:$0xff]
    %v473 = vld [vmem:[#allocation8 + $0xc0] sm:$0xff]
    %v474 = vld [vmem:[#allocation8 + $0xc8] sm:$0xff]
    %v475 = vld [vmem:[#allocation8 + $0xd0] sm:$0xff]
    %v476 = vld [vmem:[#allocation8 + $0xd8] sm:$0xff]
    %v477 = vld [vmem:[#allocation8 + $0xe0] sm:$0xff]
    %v478 = vld [vmem:[#allocation8 + $0xe8] sm:$0xff]
    %v479 = vld [vmem:[#allocation8 + $0xf0] sm:$0xff]
    %v480 = vld [vmem:[#allocation8 + $0xf8] sm:$0xff]
    %v481 = vld [vmem:[#allocation8 + $0x100] sm:$0xff]
    %v482 = vld [vmem:[#allocation8 + $0x108] sm:$0xff]
    %v483 = vld [vmem:[#allocation8 + $0x110] sm:$0xff]
    %v484 = vld [vmem:[#allocation8 + $0x118] sm:$0xff]
    %v485 = vld [vmem:[#allocation8 + $0x120] sm:$0xff]
    %v486 = vld [vmem:[#allocation8 + $0x128] sm:$0xff]
    %v487 = vld [vmem:[#allocation8 + $0x130] sm:$0xff]
    %v488 = vld [vmem:[#allocation8 + $0x138] sm:$0xff]
    %v489 = vld [vmem:[#allocation8 + $0x140] sm:$0xff]
    %v490 = vld [vmem:[#allocation8 + $0x148] sm:$0xff]
    %v491 = vld [vmem:[#allocation8 + $0x150] sm:$0xff]
    %v492 = vld [vmem:[#allocation8 + $0x158] sm:$0xff]
    %v493 = vld [vmem:[#allocation8 + $0x160] sm:$0xff]
    %v494 = vld [vmem:[#allocation8 + $0x168] sm:$0xff]
    %v495 = vld [vmem:[#allocation8 + $0x170] sm:$0xff]
    %v496 = vld [vmem:[#allocation8 + $0x178] sm:$0xff]
    %v497 = vld [vmem:[#allocation8 + $0x180] sm:$0xff]
    %v498 = vld [vmem:[#allocation8 + $0x188] sm:$0xff]
    %v499 = vld [vmem:[#allocation8 + $0x190] sm:$0xff]
    %v500 = vld [vmem:[#allocation8 + $0x198] sm:$0xff]
    %v501 = vld [vmem:[#allocation8 + $0x1a0] sm:$0xff]
    %v502 = vld [vmem:[#allocation8 + $0x1a8] sm:$0xff]
    %v503 = vld [vmem:[#allocation8 + $0x1b0] sm:$0xff]
    %v504 = vld [vmem:[#allocation8 + $0x1b8] sm:$0xff]
    %v505 = vld [vmem:[#allocation8 + $0x1c0] sm:$0xff]
    %v506 = vld [vmem:[#allocation8 + $0x1c8] sm:$0xff]
    %v507 = vld [vmem:[#allocation8 + $0x1d0] sm:$0xff]
    %v508 = vld [vmem:[#allocation8 + $0x1d8] sm:$0xff]
    %v509 = vld [vmem:[#allocation8 + $0x1e0] sm:$0xff]
    %v510 = vld [vmem:[#allocation8 + $0x1e8] sm:$0xff]
    %v511 = vld [vmem:[#allocation8 + $0x1f0] sm:$0xff]
    %v512 = vld [vmem:[#allocation8 + $0x1f8] sm:$0xff]
    %v513 = vld [vmem:[#allocation8 + $0x200] sm:$0xff]
    %v514 = vld [vmem:[#allocation8 + $0x208] sm:$0xff]
    %v515 = vld [vmem:[#allocation8 + $0x210] sm:$0xff]
    %v516 = vld [vmem:[#allocation8 + $0x218] sm:$0xff]
    %v517 = vld [vmem:[#allocation8 + $0x220] sm:$0xff]
    %v518 = vld [vmem:[#allocation8 + $0x228] sm:$0xff]
    %v519 = vld [vmem:[#allocation8 + $0x230] sm:$0xff]
    %v520 = vld [vmem:[#allocation8 + $0x238] sm:$0xff]
    %v521 = vld [vmem:[#allocation8 + $0x240] sm:$0xff]
    %v522 = vld [vmem:[#allocation8 + $0x248] sm:$0xff]
    %v523 = vld [vmem:[#allocation8 + $0x250] sm:$0xff]
    %v524 = vld [vmem:[#allocation8 + $0x258] sm:$0xff]
    %v525 = vld [vmem:[#allocation8 + $0x260] sm:$0xff]
    %v526 = vld [vmem:[#allocation8 + $0x268] sm:$0xff]
    %v527 = vld [vmem:[#allocation8 + $0x270] sm:$0xff]
    %v528 = vld [vmem:[#allocation8 + $0x278] sm:$0xff]
    %v529 = vld [vmem:[#allocation8 + $0x280] sm:$0xff]
    %v530 = vld [vmem:[#allocation8 + $0x288] sm:$0xff]
    %v531 = vld [vmem:[#allocation8 + $0x290] sm:$0xff]
    %v532 = vld [vmem:[#allocation8 + $0x298] sm:$0xff]
    %v533 = vld [vmem:[#allocation8 + $0x2a0] sm:$0xff]
    %v534 = vld [vmem:[#allocation8 + $0x2a8] sm:$0xff]
    %v535 = vld [vmem:[#allocation8 + $0x2b0] sm:$0xff]
    %v536 = vld [vmem:[#allocation8 + $0x2b8] sm:$0xff]
    %v537 = vld [vmem:[#allocation8 + $0x2c0] sm:$0xff]
    %v538 = vld [vmem:[#allocation8 + $0x2c8] sm:$0xff]
    %v539 = vld [vmem:[#allocation8 + $0x2d0] sm:$0xff]
    %v540 = vld [vmem:[#allocation8 + $0x2d8] sm:$0xff]
    %v541 = vld [vmem:[#allocation8 + $0x2e0] sm:$0xff]
    %v542 = vld [vmem:[#allocation8 + $0x2e8] sm:$0xff]
    %v543 = vld [vmem:[#allocation8 + $0x2f0] sm:$0xff]
    %v544 = vld [vmem:[#allocation8 + $0x2f8] sm:$0xff]
    %v545 = vld [vmem:[#allocation8 + $0x300] sm:$0xff]
    %v546 = vld [vmem:[#allocation8 + $0x308] sm:$0xff]
    %v547 = vld [vmem:[#allocation8 + $0x310] sm:$0xff]
    %v548 = vld [vmem:[#allocation8 + $0x318] sm:$0xff]
    %v549 = vld [vmem:[#allocation8 + $0x320] sm:$0xff]
    %v550 = vld [vmem:[#allocation8 + $0x328] sm:$0xff]
    %v551 = vld [vmem:[#allocation8 + $0x330] sm:$0xff]
    %v552 = vld [vmem:[#allocation8 + $0x338] sm:$0xff]
    %v553 = vld [vmem:[#allocation8 + $0x340] sm:$0xff]
    %v554 = vld [vmem:[#allocation8 + $0x348] sm:$0xff]
    %v555 = vld [vmem:[#allocation8 + $0x350] sm:$0xff]
    %v556 = vld [vmem:[#allocation8 + $0x358] sm:$0xff]
    %v557 = vld [vmem:[#allocation8 + $0x360] sm:$0xff]
    %v558 = vld [vmem:[#allocation8 + $0x368] sm:$0xff]
    %v559 = vld [vmem:[#allocation8 + $0x370] sm:$0xff]
    %v560 = vld [vmem:[#allocation8 + $0x378] sm:$0xff]
    %v561 = vld [vmem:[#allocation8 + $0x380] sm:$0xff]
    %v562 = vld [vmem:[#allocation8 + $0x388] sm:$0xff]
    %v563 = vld [vmem:[#allocation8 + $0x390] sm:$0xff]
    %v564 = vld [vmem:[#allocation8 + $0x398] sm:$0xff]
    %v565 = vld [vmem:[#allocation8 + $0x3a0] sm:$0xff]
    %v566 = vld [vmem:[#allocation8 + $0x3a8] sm:$0xff]
    %v567 = vld [vmem:[#allocation8 + $0x3b0] sm:$0xff]
    %v568 = vld [vmem:[#allocation8 + $0x3b8] sm:$0xff]
    %v569 = vld [vmem:[#allocation8 + $0x3c0] sm:$0xff]
    %v570 = vld [vmem:[#allocation8 + $0x3c8] sm:$0xff]
    %v571 = vld [vmem:[#allocation8 + $0x3d0] sm:$0xff]
    %v572 = vld [vmem:[#allocation8 + $0x3d8] sm:$0xff]
    %v573 = vld [vmem:[#allocation8 + $0x3e0] sm:$0xff]
    %v574 = vld [vmem:[#allocation8 + $0x3e8] sm:$0xff]
    %v575 = vld [vmem:[#allocation8 + $0x3f0] sm:$0xff]
    %v576 = vld [vmem:[#allocation8 + $0x3f8] sm:$0xff]
    %v577 = vld [vmem:[#allocation8 + $0x400] sm:$0xff]
    %v578 = vld [vmem:[#allocation8 + $0x408] sm:$0xff]
    %v579 = vld [vmem:[#allocation8 + $0x410] sm:$0xff]
    %v580 = vld [vmem:[#allocation8 + $0x418] sm:$0xff]
    %v581 = vld [vmem:[#allocation8 + $0x420] sm:$0xff]
    %v582 = vld [vmem:[#allocation8 + $0x428] sm:$0xff]
    %v583 = vld [vmem:[#allocation8 + $0x430] sm:$0xff]
    %v584 = vld [vmem:[#allocation8 + $0x438] sm:$0xff]
    %v585 = vld [vmem:[#allocation8 + $0x440] sm:$0xff]
    %v586 = vld [vmem:[#allocation8 + $0x448] sm:$0xff]
    %v587 = vld [vmem:[#allocation8 + $0x450] sm:$0xff]
    %v588 = vld [vmem:[#allocation8 + $0x458] sm:$0xff]
    %v589 = vld [vmem:[#allocation8 + $0x460] sm:$0xff]
    %v590 = vld [vmem:[#allocation8 + $0x468] sm:$0xff]
    %v591 = vld [vmem:[#allocation8 + $0x470] sm:$0xff]
    %v592 = vld [vmem:[#allocation8 + $0x478] sm:$0xff]
    %v593 = vld [vmem:[#allocation8 + $0x480] sm:$0xff]
    %v594 = vld [vmem:[#allocation8 + $0x488] sm:$0xff]
    %v595 = vld [vmem:[#allocation8 + $0x490] sm:$0xff]
    %v596 = vld [vmem:[#allocation8 + $0x498] sm:$0xff]
    %v597 = vld [vmem:[#allocation8 + $0x4a0] sm:$0xff]
    %v598 = vld [vmem:[#allocation8 + $0x4a8] sm:$0xff]
    %v599 = vld [vmem:[#allocation8 + $0x4b0] sm:$0xff]
    %v600 = vld [vmem:[#allocation8 + $0x4b8] sm:$0xff]
    %v601 = vld [vmem:[#allocation8 + $0x4c0] sm:$0xff]
    %v602 = vld [vmem:[#allocation8 + $0x4c8] sm:$0xff]
    %v603 = vld [vmem:[#allocation8 + $0x4d0] sm:$0xff]
    %v604 = vld [vmem:[#allocation8 + $0x4d8] sm:$0xff]
    %v605 = vld [vmem:[#allocation8 + $0x4e0] sm:$0xff]
    %v606 = vld [vmem:[#allocation8 + $0x4e8] sm:$0xff]
    %v607 = vld [vmem:[#allocation8 + $0x4f0] sm:$0xff]
    %v608 = vld [vmem:[#allocation8 + $0x4f8] sm:$0xff]
    %v609 = vld [vmem:[#allocation8 + $0x500] sm:$0xff]
    %v610 = vld [vmem:[#allocation8 + $0x508] sm:$0xff]
    %v611 = vld [vmem:[#allocation8 + $0x510] sm:$0xff]
    %v612 = vld [vmem:[#allocation8 + $0x518] sm:$0xff]
    %v613 = vld [vmem:[#allocation8 + $0x520] sm:$0xff]
    %v614 = vld [vmem:[#allocation8 + $0x528] sm:$0xff]
    %v615 = vld [vmem:[#allocation8 + $0x530] sm:$0xff]
    %v616 = vld [vmem:[#allocation8 + $0x538] sm:$0xff]
    %v617 = vld [vmem:[#allocation8 + $0x540] sm:$0xff]
    %v618 = vld [vmem:[#allocation8 + $0x548] sm:$0xff]
    %v619 = vld [vmem:[#allocation8 + $0x550] sm:$0xff]
    %v620 = vld [vmem:[#allocation8 + $0x558] sm:$0xff]
    %v621 = vld [vmem:[#allocation8 + $0x560] sm:$0xff]
    %v622 = vld [vmem:[#allocation8 + $0x568] sm:$0xff]
    %v623 = vld [vmem:[#allocation8 + $0x570] sm:$0xff]
    %v624 = vld [vmem:[#allocation8 + $0x578] sm:$0xff]
    %v625 = vld [vmem:[#allocation8 + $0x580] sm:$0xff]
    %v626 = vld [vmem:[#allocation8 + $0x588] sm:$0xff]
    %v627 = vld [vmem:[#allocation8 + $0x590] sm:$0xff]
    %v628 = vld [vmem:[#allocation8 + $0x598] sm:$0xff]
    %v629 = vld [vmem:[#allocation8 + $0x5a0] sm:$0xff]
    %v630 = vld [vmem:[#allocation8 + $0x5a8] sm:$0xff]
    %v631 = vld [vmem:[#allocation8 + $0x5b0] sm:$0xff]
    %v632 = vld [vmem:[#allocation8 + $0x5b8] sm:$0xff]
    %v633 = vld [vmem:[#allocation8 + $0x5c0] sm:$0xff]
    %v634 = vld [vmem:[#allocation8 + $0x5c8] sm:$0xff]
    %v635 = vld [vmem:[#allocation8 + $0x5d0] sm:$0xff]
    %v636 = vld [vmem:[#allocation8 + $0x5d8] sm:$0xff]
    %v637 = vld [vmem:[#allocation8 + $0x5e0] sm:$0xff]
    %v638 = vld [vmem:[#allocation8 + $0x5e8] sm:$0xff]
    %v639 = vld [vmem:[#allocation8 + $0x5f0] sm:$0xff]
    %v640 = vld [vmem:[#allocation8 + $0x5f8] sm:$0xff]
    %v641 = vld [vmem:[#allocation8 + $0x600] sm:$0xff]
    %v642 = vld [vmem:[#allocation8 + $0x608] sm:$0xff]
    %v643 = vld [vmem:[#allocation8 + $0x610] sm:$0xff]
    %v644 = vld [vmem:[#allocation8 + $0x618] sm:$0xff]
    %v645 = vld [vmem:[#allocation8 + $0x620] sm:$0xff]
    %v646 = vld [vmem:[#allocation8 + $0x628] sm:$0xff]
    %v647 = vld [vmem:[#allocation8 + $0x630] sm:$0xff]
    %v648 = vld [vmem:[#allocation8 + $0x638] sm:$0xff]
    %v649 = vld [vmem:[#allocation8 + $0x640] sm:$0xff]
    %v650 = vld [vmem:[#allocation8 + $0x648] sm:$0xff]
    %v651 = vld [vmem:[#allocation8 + $0x650] sm:$0xff]
    %v652 = vld [vmem:[#allocation8 + $0x658] sm:$0xff]
    %v653 = vld [vmem:[#allocation8 + $0x660] sm:$0xff]
    %v654 = vld [vmem:[#allocation8 + $0x668] sm:$0xff]
    %v655 = vld [vmem:[#allocation8 + $0x670] sm:$0xff]
    %v656 = vld [vmem:[#allocation8 + $0x678] sm:$0xff]
    %v657 = vld [vmem:[#allocation8 + $0x680] sm:$0xff]
    %v658 = vld [vmem:[#allocation8 + $0x688] sm:$0xff]
    %v659 = vld [vmem:[#allocation8 + $0x690] sm:$0xff]
    %v660 = vld [vmem:[#allocation8 + $0x698] sm:$0xff]
    %v661 = vld [vmem:[#allocation8 + $0x6a0] sm:$0xff]
    %v662 = vld [vmem:[#allocation8 + $0x6a8] sm:$0xff]
    %v663 = vld [vmem:[#allocation8 + $0x6b0] sm:$0xff]
    %v664 = vld [vmem:[#allocation8 + $0x6b8] sm:$0xff]
    %v665 = vld [vmem:[#allocation8 + $0x6c0] sm:$0xff]
    %v666 = vld [vmem:[#allocation8 + $0x6c8] sm:$0xff]
    %v667 = vld [vmem:[#allocation8 + $0x6d0] sm:$0xff]
    %v668 = vld [vmem:[#allocation8 + $0x6d8] sm:$0xff]
    %v669 = vld [vmem:[#allocation8 + $0x6e0] sm:$0xff]
    %v670 = vld [vmem:[#allocation8 + $0x6e8] sm:$0xff]
    %v671 = vld [vmem:[#allocation8 + $0x6f0] sm:$0xff]
    %v672 = vld [vmem:[#allocation8 + $0x6f8] sm:$0xff]
    %v673 = vld [vmem:[#allocation8 + $0x700] sm:$0xff]
    %v674 = vld [vmem:[#allocation8 + $0x708] sm:$0xff]
    %v675 = vld [vmem:[#allocation8 + $0x710] sm:$0xff]
    %v676 = vld [vmem:[#allocation8 + $0x718] sm:$0xff]
    %v677 = vld [vmem:[#allocation8 + $0x720] sm:$0xff]
    %v678 = vld [vmem:[#allocation8 + $0x728] sm:$0xff]
    %v679 = vld [vmem:[#allocation8 + $0x730] sm:$0xff]
    %v680 = vld [vmem:[#allocation8 + $0x738] sm:$0xff]
    %v681 = vld [vmem:[#allocation8 + $0x740] sm:$0xff]
    %v682 = vld [vmem:[#allocation8 + $0x748] sm:$0xff]
    %v683 = vld [vmem:[#allocation8 + $0x750] sm:$0xff]
    %v684 = vld [vmem:[#allocation8 + $0x758] sm:$0xff]
    %v685 = vld [vmem:[#allocation8 + $0x760] sm:$0xff]
    %v686 = vld [vmem:[#allocation8 + $0x768] sm:$0xff]
    %v687 = vld [vmem:[#allocation8 + $0x770] sm:$0xff]
    %v688 = vld [vmem:[#allocation8 + $0x778] sm:$0xff]
    %v689 = vld [vmem:[#allocation8 + $0x780] sm:$0xff]
    %v690 = vld [vmem:[#allocation8 + $0x788] sm:$0xff]
    %v691 = vld [vmem:[#allocation8 + $0x790] sm:$0xff]
    %v692 = vld [vmem:[#allocation8 + $0x798] sm:$0xff]
    %v693 = vld [vmem:[#allocation8 + $0x7a0] sm:$0xff]
    %v694 = vld [vmem:[#allocation8 + $0x7a8] sm:$0xff]
    %v695 = vld [vmem:[#allocation8 + $0x7b0] sm:$0xff]
    %v696 = vld [vmem:[#allocation8 + $0x7b8] sm:$0xff]
    %v697 = vld [vmem:[#allocation8 + $0x7c0] sm:$0xff]
    %v698 = vld [vmem:[#allocation8 + $0x7c8] sm:$0xff]
    %v699 = vld [vmem:[#allocation8 + $0x7d0] sm:$0xff]
    %v700 = vld [vmem:[#allocation8 + $0x7d8] sm:$0xff]
    %v701 = vld [vmem:[#allocation8 + $0x7e0] sm:$0xff]
    %v702 = vld [vmem:[#allocation8 + $0x7e8] sm:$0xff]
    %v703 = vld [vmem:[#allocation8 + $0x7f0] sm:$0xff]
    %v704 = vld [vmem:[#allocation8 + $0x7f8] sm:$0xff]
    %v705 = vld [vmem:[#allocation8 + $0x800] sm:$0xff]
    %v706 = vld [vmem:[#allocation8 + $0x808] sm:$0xff]
    %v707 = vld [vmem:[#allocation8 + $0x810] sm:$0xff]
    %v708 = vld [vmem:[#allocation8 + $0x818] sm:$0xff]
    %v709 = vld [vmem:[#allocation8 + $0x820] sm:$0xff]
    %v710 = vld [vmem:[#allocation8 + $0x828] sm:$0xff]
    %v711 = vld [vmem:[#allocation8 + $0x830] sm:$0xff]
    %v712 = vld [vmem:[#allocation8 + $0x838] sm:$0xff]
    %v713 = vld [vmem:[#allocation8 + $0x840] sm:$0xff]
    %v714 = vld [vmem:[#allocation8 + $0x848] sm:$0xff]
    %v715 = vld [vmem:[#allocation8 + $0x850] sm:$0xff]
    %v716 = vld [vmem:[#allocation8 + $0x858] sm:$0xff]
    %v717 = vld [vmem:[#allocation8 + $0x860] sm:$0xff]
    %v718 = vld [vmem:[#allocation8 + $0x868] sm:$0xff]
    %v719 = vld [vmem:[#allocation8 + $0x870] sm:$0xff]
    %v720 = vld [vmem:[#allocation8 + $0x878] sm:$0xff]
    %v721 = vld [vmem:[#allocation8 + $0x880] sm:$0xff]
    %v722 = vld [vmem:[#allocation8 + $0x888] sm:$0xff]
    %v723 = vld [vmem:[#allocation8 + $0x890] sm:$0xff]
    %v724 = vld [vmem:[#allocation8 + $0x898] sm:$0xff]
    %v725 = vld [vmem:[#allocation8 + $0x8a0] sm:$0xff]
    %v726 = vld [vmem:[#allocation8 + $0x8a8] sm:$0xff]
    %v727 = vld [vmem:[#allocation8 + $0x8b0] sm:$0xff]
    %v728 = vld [vmem:[#allocation8 + $0x8b8] sm:$0xff]
    %v729 = vld [vmem:[#allocation8 + $0x8c0] sm:$0xff]
    %v730 = vld [vmem:[#allocation8 + $0x8c8] sm:$0xff]
    %v731 = vld [vmem:[#allocation8 + $0x8d0] sm:$0xff]
    %v732 = vld [vmem:[#allocation8 + $0x8d8] sm:$0xff]
    %v733 = vld [vmem:[#allocation8 + $0x8e0] sm:$0xff]
    %v734 = vld [vmem:[#allocation8 + $0x8e8] sm:$0xff]
    %v735 = vld [vmem:[#allocation8 + $0x8f0] sm:$0xff]
    %v736 = vld [vmem:[#allocation8 + $0x8f8] sm:$0xff]
    %v737 = vld [vmem:[#allocation8 + $0x900] sm:$0xff]
    %v738 = vld [vmem:[#allocation8 + $0x908] sm:$0xff]
    %v739 = vld [vmem:[#allocation8 + $0x910] sm:$0xff]
    %v740 = vld [vmem:[#allocation8 + $0x918] sm:$0xff]
    %v741 = vld [vmem:[#allocation8 + $0x920] sm:$0xff]
    %v742 = vld [vmem:[#allocation8 + $0x928] sm:$0xff]
    %v743 = vld [vmem:[#allocation8 + $0x930] sm:$0xff]
    %v744 = vld [vmem:[#allocation8 + $0x938] sm:$0xff]
    %v745 = vld [vmem:[#allocation8 + $0x940] sm:$0xff]
    %v746 = vld [vmem:[#allocation8 + $0x948] sm:$0xff]
    %v747 = vld [vmem:[#allocation8 + $0x950] sm:$0xff]
    %v748 = vld [vmem:[#allocation8 + $0x958] sm:$0xff]
    %v749 = vld [vmem:[#allocation8 + $0x960] sm:$0xff]
    %v750 = vld [vmem:[#allocation8 + $0x968] sm:$0xff]
    %v751 = vld [vmem:[#allocation8 + $0x970] sm:$0xff]
    %v752 = vld [vmem:[#allocation8 + $0x978] sm:$0xff]
    %v753 = vld [vmem:[#allocation8 + $0x980] sm:$0xff]
    %v754 = vld [vmem:[#allocation8 + $0x988] sm:$0xff]
    %v755 = vld [vmem:[#allocation8 + $0x990] sm:$0xff]
    %v756 = vld [vmem:[#allocation8 + $0x998] sm:$0xff]
    %v757 = vld [vmem:[#allocation8 + $0x9a0] sm:$0xff]
    %v758 = vld [vmem:[#allocation8 + $0x9a8] sm:$0xff]
    %v759 = vld [vmem:[#allocation8 + $0x9b0] sm:$0xff]
    %v760 = vld [vmem:[#allocation8 + $0x9b8] sm:$0xff]
    %v761 = vld [vmem:[#allocation8 + $0x9c0] sm:$0xff]
    %v762 = vld [vmem:[#allocation8 + $0x9c8] sm:$0xff]
    %v763 = vld [vmem:[#allocation8 + $0x9d0] sm:$0xff]
    %v764 = vld [vmem:[#allocation8 + $0x9d8] sm:$0xff]
    %v765 = vld [vmem:[#allocation8 + $0x9e0] sm:$0xff]
    %v766 = vld [vmem:[#allocation8 + $0x9e8] sm:$0xff]
    %v767 = vld [vmem:[#allocation8 + $0x9f0] sm:$0xff]
    %v768 = vld [vmem:[#allocation8 + $0x9f8] sm:$0xff]
    %v769 = vld [vmem:[#allocation8 + $0xa00] sm:$0xff]
    %v770 = vld [vmem:[#allocation8 + $0xa08] sm:$0xff]
    %v771 = vld [vmem:[#allocation8 + $0xa10] sm:$0xff]
    %v772 = vld [vmem:[#allocation8 + $0xa18] sm:$0xff]
    %v773 = vld [vmem:[#allocation8 + $0xa20] sm:$0xff]
    %v774 = vld [vmem:[#allocation8 + $0xa28] sm:$0xff]
    %v775 = vld [vmem:[#allocation8 + $0xa30] sm:$0xff]
    %v776 = vld [vmem:[#allocation8 + $0xa38] sm:$0xff]
    %v777 = vld [vmem:[#allocation8 + $0xa40] sm:$0xff]
    %v778 = vld [vmem:[#allocation8 + $0xa48] sm:$0xff]
    %v779 = vld [vmem:[#allocation8 + $0xa50] sm:$0xff]
    %v780 = vld [vmem:[#allocation8 + $0xa58] sm:$0xff]
    %v781 = vld [vmem:[#allocation8 + $0xa60] sm:$0xff]
    %v782 = vld [vmem:[#allocation8 + $0xa68] sm:$0xff]
    %v783 = vld [vmem:[#allocation8 + $0xa70] sm:$0xff]
    %v784 = vld [vmem:[#allocation8 + $0xa78] sm:$0xff]
    %v785 = vld [vmem:[#allocation8 + $0xa80] sm:$0xff]
    %v786 = vld [vmem:[#allocation8 + $0xa88] sm:$0xff]
    %v787 = vld [vmem:[#allocation8 + $0xa90] sm:$0xff]
    %v788 = vld [vmem:[#allocation8 + $0xa98] sm:$0xff]
    %v789 = vld [vmem:[#allocation8 + $0xaa0] sm:$0xff]
    %v790 = vld [vmem:[#allocation8 + $0xaa8] sm:$0xff]
    %v791 = vld [vmem:[#allocation8 + $0xab0] sm:$0xff]
    %v792 = vld [vmem:[#allocation8 + $0xab8] sm:$0xff]
    %v793 = vld [vmem:[#allocation8 + $0xac0] sm:$0xff]
    %v794 = vld [vmem:[#allocation8 + $0xac8] sm:$0xff]
    %v795 = vld [vmem:[#allocation8 + $0xad0] sm:$0xff]
    %v796 = vld [vmem:[#allocation8 + $0xad8] sm:$0xff]
    %v797 = vld [vmem:[#allocation8 + $0xae0] sm:$0xff]
    %v798 = vld [vmem:[#allocation8 + $0xae8] sm:$0xff]
    %v799 = vld [vmem:[#allocation8 + $0xaf0] sm:$0xff]
    %v800 = vld [vmem:[#allocation8 + $0xaf8] sm:$0xff]
    %v801 = vld [vmem:[#allocation8 + $0xb00] sm:$0xff]
    %v802 = vld [vmem:[#allocation8 + $0xb08] sm:$0xff]
    %v803 = vld [vmem:[#allocation8 + $0xb10] sm:$0xff]
    %v804 = vld [vmem:[#allocation8 + $0xb18] sm:$0xff]
    %v805 = vld [vmem:[#allocation8 + $0xb20] sm:$0xff]
    %v806 = vld [vmem:[#allocation8 + $0xb28] sm:$0xff]
    %v807 = vld [vmem:[#allocation8 + $0xb30] sm:$0xff]
    %v808 = vld [vmem:[#allocation8 + $0xb38] sm:$0xff]
    %v809 = vld [vmem:[#allocation8 + $0xb40] sm:$0xff]
    %v810 = vld [vmem:[#allocation8 + $0xb48] sm:$0xff]
    %v811 = vld [vmem:[#allocation8 + $0xb50] sm:$0xff]
    %v812 = vld [vmem:[#allocation8 + $0xb58] sm:$0xff]
    %v813 = vld [vmem:[#allocation8 + $0xb60] sm:$0xff]
    %v814 = vld [vmem:[#allocation8 + $0xb68] sm:$0xff]
    %v815 = vld [vmem:[#allocation8 + $0xb70] sm:$0xff]
    %v816 = vld [vmem:[#allocation8 + $0xb78] sm:$0xff]
    %v817 = vld [vmem:[#allocation8 + $0xb80] sm:$0xff]
    %v818 = vld [vmem:[#allocation8 + $0xb88] sm:$0xff]
    %v819 = vld [vmem:[#allocation8 + $0xb90] sm:$0xff]
    %v820 = vld [vmem:[#allocation8 + $0xb98] sm:$0xff]
    %v821 = vld [vmem:[#allocation8 + $0xba0] sm:$0xff]
    %v822 = vld [vmem:[#allocation8 + $0xba8] sm:$0xff]
    %v823 = vld [vmem:[#allocation8 + $0xbb0] sm:$0xff]
    %v824 = vld [vmem:[#allocation8 + $0xbb8] sm:$0xff]
    %v825 = vld [vmem:[#allocation8 + $0xbc0] sm:$0xff]
    %v826 = vld [vmem:[#allocation8 + $0xbc8] sm:$0xff]
    %v827 = vld [vmem:[#allocation8 + $0xbd0] sm:$0xff]
    %v828 = vld [vmem:[#allocation8 + $0xbd8] sm:$0xff]
    %v829 = vld [vmem:[#allocation8 + $0xbe0] sm:$0xff]
    %v830 = vld [vmem:[#allocation8 + $0xbe8] sm:$0xff]
    %v831 = vld [vmem:[#allocation8 + $0xbf0] sm:$0xff]
    %v832 = vld [vmem:[#allocation8 + $0xbf8] sm:$0xff]
    %v833 = vld [vmem:[#allocation10] sm:$0x3f]
    %v835 = vlaneseq
    %v836 = vshrl.u32 %v835, 7
    %v837 = vsub.s32 0, %v836
    %v838 = vrot.slane %v833, %v837
    %v839 = vlaneseq
    %v840 = vshrl.u32 %v839, 7
    %v841 = vsub.s32 1, %v840
    %v842 = vrot.slane %v833, %v841
    %v843 = vlaneseq
    %v844 = vshrl.u32 %v843, 7
    %v845 = vsub.s32 2, %v844
    %v846 = vrot.slane %v833, %v845
    %v847 = vlaneseq
    %v848 = vshrl.u32 %v847, 7
    %v849 = vsub.s32 3, %v848
    %v850 = vrot.slane %v833, %v849
    %v851 = vlaneseq
    %v852 = vshrl.u32 %v851, 7
    %v853 = vsub.s32 4, %v852
    %v854 = vrot.slane %v833, %v853
    %v855 = vlaneseq
    %v856 = vshrl.u32 %v855, 7
    %v857 = vsub.s32 5, %v856
    %v858 = vrot.slane %v833, %v857
    %865 = vmatprep.subr.mxu0 %v540
    %866 = vmatpush1.msra.mxu0 %v539
    %867 = vmatprep.subr.mxu0 %v534
    %868 = vmatpush1.msra.mxu0 %v533
    %869 = vmatprep.subr.mxu0 %v528
    %870 = vmatpush1.msra.mxu0 %v527
    %871 = vmatprep.subr.mxu0 %v522
    %872 = vmatpush1.msra.mxu0 %v521
    %873 = vmatprep.subr.mxu0 %v516
    %874 = vmatpush1.msra.mxu0 %v515
    %875 = vmatprep.subr.mxu0 %v510
    %876 = vmatpush1.msra.mxu0 %v509
    %877 = vmatprep.subr.mxu0 %v504
    %878 = vmatpush1.msra.mxu0 %v503
    %879 = vmatprep.subr.mxu0 %v498
    %880 = vmatpush1.msra.mxu0 %v497
    %881 = vmatprep.subr.mxu0 %v492
    %882 = vmatpush1.msra.mxu0 %v491
    %883 = vmatprep.subr.mxu0 %v486
    %884 = vmatpush1.msra.mxu0 %v485
    %885 = vmatprep.subr.mxu0 %v480
    %886 = vmatpush1.msra.mxu0 %v479
    %887 = vmatprep.subr.mxu0 %v474
    %888 = vmatpush1.msra.mxu0 %v473
    %889 = vmatprep.subr.mxu0 %v468
    %890 = vmatpush1.msra.mxu0 %v467
    %891 = vmatprep.subr.mxu0 %v462
    %892 = vmatpush1.msra.mxu0 %v461
    %893 = vmatprep.subr.mxu0 %v456
    %894 = vmatpush1.msra.mxu0 %v455
    %895 = vmatprep.subr.mxu0 %v450
    %896 = vmatpush1.msra.mxu0 %v449
    %897 = vmatprep.subr.mxu0 %v636
    %898 = vmatpush2.msra.mxu0 %v635
    %899 = vmatprep.subr.mxu0 %v630
    %900 = vmatpush2.msra.mxu0 %v629
    %901 = vmatprep.subr.mxu0 %v624
    %902 = vmatpush2.msra.mxu0 %v623
    %903 = vmatprep.subr.mxu0 %v618
    %904 = vmatpush2.msra.mxu0 %v617
    %905 = vmatprep.subr.mxu0 %v612
    %906 = vmatpush2.msra.mxu0 %v611
    %907 = vmatprep.subr.mxu0 %v606
    %908 = vmatpush2.msra.mxu0 %v605
    %909 = vmatprep.subr.mxu0 %v600
    %910 = vmatpush2.msra.mxu0 %v599
    %911 = vmatprep.subr.mxu0 %v594
    %912 = vmatpush2.msra.mxu0 %v593
    %913 = vmatprep.subr.mxu0 %v588
    %914 = vmatpush2.msra.mxu0 %v587
    %915 = vmatprep.subr.mxu0 %v582
    %916 = vmatpush2.msra.mxu0 %v581
    %917 = vmatprep.subr.mxu0 %v576
    %918 = vmatpush2.msra.mxu0 %v575
    %919 = vmatprep.subr.mxu0 %v570
    %920 = vmatpush2.msra.mxu0 %v569
    %921 = vmatprep.subr.mxu0 %v564
    %922 = vmatpush2.msra.mxu0 %v563
    %923 = vmatprep.subr.mxu0 %v558
    %924 = vmatpush2.msra.mxu0 %v557
    %925 = vmatprep.subr.mxu0 %v552
    %926 = vmatpush2.msra.mxu0 %v551
    %927 = vmatprep.subr.mxu0 %v546
    %928 = vmatpush2.msra.mxu0 %v545
    %929 = vmatprep.mubr.f32.mxu0 %v446
    %930 = vmatmul.mubr.f32.gmra.mxu0 %v445
    %v931 = vpop.f32.mrf.mxu0
    %v932 = vadd.f32 %v838, %v931
    %v933 = vpop.f32.mrf.mxu0
    %v934 = vadd.f32 %v842, %v933
    %935 = vdwg.mxu0
    %936 = vmatprep.subr.mxu0 %v732
    %937 = vmatpush1.msra.mxu0 %v731
    %938 = vmatprep.subr.mxu0 %v726
    %939 = vmatpush1.msra.mxu0 %v725
    %940 = vmatprep.subr.mxu0 %v720
    %941 = vmatpush1.msra.mxu0 %v719
    %942 = vmatprep.subr.mxu0 %v714
    %943 = vmatpush1.msra.mxu0 %v713
    %944 = vmatprep.subr.mxu0 %v708
    %945 = vmatpush1.msra.mxu0 %v707
    %946 = vmatprep.subr.mxu0 %v702
    %947 = vmatpush1.msra.mxu0 %v701
    %948 = vmatprep.subr.mxu0 %v696
    %949 = vmatpush1.msra.mxu0 %v695
    %950 = vmatprep.subr.mxu0 %v690
    %951 = vmatpush1.msra.mxu0 %v689
    %952 = vmatprep.subr.mxu0 %v684
    %953 = vmatpush1.msra.mxu0 %v683
    %954 = vmatprep.subr.mxu0 %v678
    %955 = vmatpush1.msra.mxu0 %v677
    %956 = vmatprep.subr.mxu0 %v672
    %957 = vmatpush1.msra.mxu0 %v671
    %958 = vmatprep.subr.mxu0 %v666
    %959 = vmatpush1.msra.mxu0 %v665
    %960 = vmatprep.subr.mxu0 %v660
    %961 = vmatpush1.msra.mxu0 %v659
    %962 = vmatprep.subr.mxu0 %v654
    %963 = vmatpush1.msra.mxu0 %v653
    %964 = vmatprep.subr.mxu0 %v648
    %965 = vmatpush1.msra.mxu0 %v647
    %966 = vmatprep.subr.mxu0 %v642
    %967 = vmatpush1.msra.mxu0 %v641
    %968 = vmatprep.subr.mxu0 %v828
    %969 = vmatpush2.msra.mxu0 %v827
    %970 = vmatprep.subr.mxu0 %v822
    %971 = vmatpush2.msra.mxu0 %v821
    %972 = vmatprep.subr.mxu0 %v816
    %973 = vmatpush2.msra.mxu0 %v815
    %974 = vmatprep.subr.mxu0 %v810
    %975 = vmatpush2.msra.mxu0 %v809
    %976 = vmatprep.subr.mxu0 %v804
    %977 = vmatpush2.msra.mxu0 %v803
    %978 = vmatprep.subr.mxu0 %v798
    %979 = vmatpush2.msra.mxu0 %v797
    %980 = vmatprep.subr.mxu0 %v792
    %981 = vmatpush2.msra.mxu0 %v791
    %982 = vmatprep.subr.mxu0 %v786
    %983 = vmatpush2.msra.mxu0 %v785
    %984 = vmatprep.subr.mxu0 %v780
    %985 = vmatpush2.msra.mxu0 %v779
    %986 = vmatprep.subr.mxu0 %v774
    %987 = vmatpush2.msra.mxu0 %v773
    %988 = vmatprep.subr.mxu0 %v768
    %989 = vmatpush2.msra.mxu0 %v767
    %990 = vmatprep.subr.mxu0 %v762
    %991 = vmatpush2.msra.mxu0 %v761
    %992 = vmatprep.subr.mxu0 %v756
    %993 = vmatpush2.msra.mxu0 %v755
    %994 = vmatprep.subr.mxu0 %v750
    %995 = vmatpush2.msra.mxu0 %v749
    %996 = vmatprep.subr.mxu0 %v744
    %997 = vmatpush2.msra.mxu0 %v743
    %998 = vmatprep.subr.mxu0 %v738
    %999 = vmatpush2.msra.mxu0 %v737
    %1000 = vmatprep.mubr.f32.mxu0 %v448
    %1001 = vmatmul.mubr.f32.gmra.mxu0 %v447
    %v1002 = vpop.f32.mrf.mxu0
    %v1003 = vadd.f32 %v932, %v1002
    %v1004 = vpop.f32.mrf.mxu0
    %v1005 = vadd.f32 %v934, %v1004
    %1006 = vdwg.mxu0
    %1007 = vmatprep.subr.mxu0 %v542
    %1008 = vmatpush1.msra.mxu0 %v541
    %1009 = vmatprep.subr.mxu0 %v536
    %1010 = vmatpush1.msra.mxu0 %v535
    %1011 = vmatprep.subr.mxu0 %v530
    %1012 = vmatpush1.msra.mxu0 %v529
    %1013 = vmatprep.subr.mxu0 %v524
    %1014 = vmatpush1.msra.mxu0 %v523
    %1015 = vmatprep.subr.mxu0 %v518
    %1016 = vmatpush1.msra.mxu0 %v517
    %1017 = vmatprep.subr.mxu0 %v512
    %1018 = vmatpush1.msra.mxu0 %v511
    %1019 = vmatprep.subr.mxu0 %v506
    %1020 = vmatpush1.msra.mxu0 %v505
    %1021 = vmatprep.subr.mxu0 %v500
    %1022 = vmatpush1.msra.mxu0 %v499
    %1023 = vmatprep.subr.mxu0 %v494
    %1024 = vmatpush1.msra.mxu0 %v493
    %1025 = vmatprep.subr.mxu0 %v488
    %1026 = vmatpush1.msra.mxu0 %v487
    %1027 = vmatprep.subr.mxu0 %v482
    %1028 = vmatpush1.msra.mxu0 %v481
    %1029 = vmatprep.subr.mxu0 %v476
    %1030 = vmatpush1.msra.mxu0 %v475
    %1031 = vmatprep.subr.mxu0 %v470
    %1032 = vmatpush1.msra.mxu0 %v469
    %1033 = vmatprep.subr.mxu0 %v464
    %1034 = vmatpush1.msra.mxu0 %v463
    %1035 = vmatprep.subr.mxu0 %v458
    %1036 = vmatpush1.msra.mxu0 %v457
    %1037 = vmatprep.subr.mxu0 %v452
    %1038 = vmatpush1.msra.mxu0 %v451
    %1039 = vmatprep.subr.mxu0 %v638
    %1040 = vmatpush2.msra.mxu0 %v637
    %1041 = vmatprep.subr.mxu0 %v632
    %1042 = vmatpush2.msra.mxu0 %v631
    %1043 = vmatprep.subr.mxu0 %v626
    %1044 = vmatpush2.msra.mxu0 %v625
    %1045 = vmatprep.subr.mxu0 %v620
    %1046 = vmatpush2.msra.mxu0 %v619
    %1047 = vmatprep.subr.mxu0 %v614
    %1048 = vmatpush2.msra.mxu0 %v613
    %1049 = vmatprep.subr.mxu0 %v608
    %1050 = vmatpush2.msra.mxu0 %v607
    %1051 = vmatprep.subr.mxu0 %v602
    %1052 = vmatpush2.msra.mxu0 %v601
    %1053 = vmatprep.subr.mxu0 %v596
    %1054 = vmatpush2.msra.mxu0 %v595
    %1055 = vmatprep.subr.mxu0 %v590
    %1056 = vmatpush2.msra.mxu0 %v589
    %1057 = vmatprep.subr.mxu0 %v584
    %1058 = vmatpush2.msra.mxu0 %v583
    %1059 = vmatprep.subr.mxu0 %v578
    %1060 = vmatpush2.msra.mxu0 %v577
    %1061 = vmatprep.subr.mxu0 %v572
    %1062 = vmatpush2.msra.mxu0 %v571
    %1063 = vmatprep.subr.mxu0 %v566
    %1064 = vmatpush2.msra.mxu0 %v565
    %1065 = vmatprep.subr.mxu0 %v560
    %1066 = vmatpush2.msra.mxu0 %v559
    %1067 = vmatprep.subr.mxu0 %v554
    %1068 = vmatpush2.msra.mxu0 %v553
    %1069 = vmatprep.subr.mxu0 %v548
    %1070 = vmatpush2.msra.mxu0 %v547
    %1071 = vmatprep.mubr.f32.mxu0 %v446
    %1072 = vmatmul.mubr.f32.gmra.mxu0 %v445
    %v1073 = vpop.f32.mrf.mxu0
    %v1074 = vadd.f32 %v846, %v1073
    %v1075 = vpop.f32.mrf.mxu0
    %v1076 = vadd.f32 %v850, %v1075
    %1077 = vdwg.mxu0
    %1078 = vmatprep.subr.mxu0 %v734
    %1079 = vmatpush1.msra.mxu0 %v733
    %1080 = vmatprep.subr.mxu0 %v728
    %1081 = vmatpush1.msra.mxu0 %v727
    %1082 = vmatprep.subr.mxu0 %v722
    %1083 = vmatpush1.msra.mxu0 %v721
    %1084 = vmatprep.subr.mxu0 %v716
    %1085 = vmatpush1.msra.mxu0 %v715
    %1086 = vmatprep.subr.mxu0 %v710
    %1087 = vmatpush1.msra.mxu0 %v709
    %1088 = vmatprep.subr.mxu0 %v704
    %1089 = vmatpush1.msra.mxu0 %v703
    %1090 = vmatprep.subr.mxu0 %v698
    %1091 = vmatpush1.msra.mxu0 %v697
    %1092 = vmatprep.subr.mxu0 %v692
    %1093 = vmatpush1.msra.mxu0 %v691
    %1094 = vmatprep.subr.mxu0 %v686
    %1095 = vmatpush1.msra.mxu0 %v685
    %1096 = vmatprep.subr.mxu0 %v680
    %1097 = vmatpush1.msra.mxu0 %v679
    %1098 = vmatprep.subr.mxu0 %v674
    %1099 = vmatpush1.msra.mxu0 %v673
    %1100 = vmatprep.subr.mxu0 %v668
    %1101 = vmatpush1.msra.mxu0 %v667
    %1102 = vmatprep.subr.mxu0 %v662
    %1103 = vmatpush1.msra.mxu0 %v661
    %1104 = vmatprep.subr.mxu0 %v656
    %1105 = vmatpush1.msra.mxu0 %v655
    %1106 = vmatprep.subr.mxu0 %v650
    %1107 = vmatpush1.msra.mxu0 %v649
    %1108 = vmatprep.subr.mxu0 %v644
    %1109 = vmatpush1.msra.mxu0 %v643
    %1110 = vmatprep.subr.mxu0 %v830
    %1111 = vmatpush2.msra.mxu0 %v829
    %1112 = vmatprep.subr.mxu0 %v824
    %1113 = vmatpush2.msra.mxu0 %v823
    %1114 = vmatprep.subr.mxu0 %v818
    %1115 = vmatpush2.msra.mxu0 %v817
    %1116 = vmatprep.subr.mxu0 %v812
    %1117 = vmatpush2.msra.mxu0 %v811
    %1118 = vmatprep.subr.mxu0 %v806
    %1119 = vmatpush2.msra.mxu0 %v805
    %1120 = vmatprep.subr.mxu0 %v800
    %1121 = vmatpush2.msra.mxu0 %v799
    %1122 = vmatprep.subr.mxu0 %v794
    %1123 = vmatpush2.msra.mxu0 %v793
    %1124 = vmatprep.subr.mxu0 %v788
    %1125 = vmatpush2.msra.mxu0 %v787
    %1126 = vmatprep.subr.mxu0 %v782
    %1127 = vmatpush2.msra.mxu0 %v781
    %1128 = vmatprep.subr.mxu0 %v776
    %1129 = vmatpush2.msra.mxu0 %v775
    %1130 = vmatprep.subr.mxu0 %v770
    %1131 = vmatpush2.msra.mxu0 %v769
    %1132 = vmatprep.subr.mxu0 %v764
    %1133 = vmatpush2.msra.mxu0 %v763
    %1134 = vmatprep.subr.mxu0 %v758
    %1135 = vmatpush2.msra.mxu0 %v757
    %1136 = vmatprep.subr.mxu0 %v752
    %1137 = vmatpush2.msra.mxu0 %v751
    %1138 = vmatprep.subr.mxu0 %v746
    %1139 = vmatpush2.msra.mxu0 %v745
    %1140 = vmatprep.subr.mxu0 %v740
    %1141 = vmatpush2.msra.mxu0 %v739
    %1142 = vmatprep.mubr.f32.mxu0 %v448
    %1143 = vmatmul.mubr.f32.gmra.mxu0 %v447
    %v1144 = vpop.f32.mrf.mxu0
    %v1145 = vadd.f32 %v1074, %v1144
    %v1146 = vpop.f32.mrf.mxu0
    %v1147 = vadd.f32 %v1076, %v1146
    %1148 = vdwg.mxu0
    %1149 = vmatprep.subr.mxu0 %v544
    %1150 = vmatpush1.msra.mxu0 %v543
    %1151 = vmatprep.subr.mxu0 %v538
    %1152 = vmatpush1.msra.mxu0 %v537
    %1153 = vmatprep.subr.mxu0 %v532
    %1154 = vmatpush1.msra.mxu0 %v531
    %1155 = vmatprep.subr.mxu0 %v526
    %1156 = vmatpush1.msra.mxu0 %v525
    %1157 = vmatprep.subr.mxu0 %v520
    %1158 = vmatpush1.msra.mxu0 %v519
    %1159 = vmatprep.subr.mxu0 %v514
    %1160 = vmatpush1.msra.mxu0 %v513
    %1161 = vmatprep.subr.mxu0 %v508
    %1162 = vmatpush1.msra.mxu0 %v507
    %1163 = vmatprep.subr.mxu0 %v502
    %1164 = vmatpush1.msra.mxu0 %v501
    %1165 = vmatprep.subr.mxu0 %v496
    %1166 = vmatpush1.msra.mxu0 %v495
    %1167 = vmatprep.subr.mxu0 %v490
    %1168 = vmatpush1.msra.mxu0 %v489
    %1169 = vmatprep.subr.mxu0 %v484
    %1170 = vmatpush1.msra.mxu0 %v483
    %1171 = vmatprep.subr.mxu0 %v478
    %1172 = vmatpush1.msra.mxu0 %v477
    %1173 = vmatprep.subr.mxu0 %v472
    %1174 = vmatpush1.msra.mxu0 %v471
    %1175 = vmatprep.subr.mxu0 %v466
    %1176 = vmatpush1.msra.mxu0 %v465
    %1177 = vmatprep.subr.mxu0 %v460
    %1178 = vmatpush1.msra.mxu0 %v459
    %1179 = vmatprep.subr.mxu0 %v454
    %1180 = vmatpush1.msra.mxu0 %v453
    %1181 = vmatprep.subr.mxu0 %v640
    %1182 = vmatpush2.msra.mxu0 %v639
    %1183 = vmatprep.subr.mxu0 %v634
    %1184 = vmatpush2.msra.mxu0 %v633
    %1185 = vmatprep.subr.mxu0 %v628
    %1186 = vmatpush2.msra.mxu0 %v627
    %1187 = vmatprep.subr.mxu0 %v622
    %1188 = vmatpush2.msra.mxu0 %v621
    %1189 = vmatprep.subr.mxu0 %v616
    %1190 = vmatpush2.msra.mxu0 %v615
    %1191 = vmatprep.subr.mxu0 %v610
    %1192 = vmatpush2.msra.mxu0 %v609
    %1193 = vmatprep.subr.mxu0 %v604
    %1194 = vmatpush2.msra.mxu0 %v603
    %1195 = vmatprep.subr.mxu0 %v598
    %1196 = vmatpush2.msra.mxu0 %v597
    %1197 = vmatprep.subr.mxu0 %v592
    %1198 = vmatpush2.msra.mxu0 %v591
    %1199 = vmatprep.subr.mxu0 %v586
    %1200 = vmatpush2.msra.mxu0 %v585
    %1201 = vmatprep.subr.mxu0 %v580
    %1202 = vmatpush2.msra.mxu0 %v579
    %1203 = vmatprep.subr.mxu0 %v574
    %1204 = vmatpush2.msra.mxu0 %v573
    %1205 = vmatprep.subr.mxu0 %v568
    %1206 = vmatpush2.msra.mxu0 %v567
    %1207 = vmatprep.subr.mxu0 %v562
    %1208 = vmatpush2.msra.mxu0 %v561
    %1209 = vmatprep.subr.mxu0 %v556
    %1210 = vmatpush2.msra.mxu0 %v555
    %1211 = vmatprep.subr.mxu0 %v550
    %1212 = vmatpush2.msra.mxu0 %v549
    %1213 = vmatprep.mubr.f32.mxu0 %v446
    %1214 = vmatmul.mubr.f32.gmra.mxu0 %v445
    %v1215 = vpop.f32.mrf.mxu0
    %v1216 = vadd.f32 %v854, %v1215
    %v1217 = vpop.f32.mrf.mxu0
    %v1218 = vadd.f32 %v858, %v1217
    %1219 = vdwg.mxu0
    %1220 = vmatprep.subr.mxu0 %v736
    %1221 = vmatpush1.msra.mxu0 %v735
    %1222 = vmatprep.subr.mxu0 %v730
    %1223 = vmatpush1.msra.mxu0 %v729
    %1224 = vmatprep.subr.mxu0 %v724
    %1225 = vmatpush1.msra.mxu0 %v723
    %1226 = vmatprep.subr.mxu0 %v718
    %1227 = vmatpush1.msra.mxu0 %v717
    %1228 = vmatprep.subr.mxu0 %v712
    %1229 = vmatpush1.msra.mxu0 %v711
    %1230 = vmatprep.subr.mxu0 %v706
    %1231 = vmatpush1.msra.mxu0 %v705
    %1232 = vmatprep.subr.mxu0 %v700
    %1233 = vmatpush1.msra.mxu0 %v699
    %1234 = vmatprep.subr.mxu0 %v694
    %1235 = vmatpush1.msra.mxu0 %v693
    %1236 = vmatprep.subr.mxu0 %v688
    %1237 = vmatpush1.msra.mxu0 %v687
    %1238 = vmatprep.subr.mxu0 %v682
    %1239 = vmatpush1.msra.mxu0 %v681
    %1240 = vmatprep.subr.mxu0 %v676
    %1241 = vmatpush1.msra.mxu0 %v675
    %1242 = vmatprep.subr.mxu0 %v670
    %1243 = vmatpush1.msra.mxu0 %v669
    %1244 = vmatprep.subr.mxu0 %v664
    %1245 = vmatpush1.msra.mxu0 %v663
    %1246 = vmatprep.subr.mxu0 %v658
    %1247 = vmatpush1.msra.mxu0 %v657
    %1248 = vmatprep.subr.mxu0 %v652
    %1249 = vmatpush1.msra.mxu0 %v651
    %1250 = vmatprep.subr.mxu0 %v646
    %1251 = vmatpush1.msra.mxu0 %v645
    %1252 = vmatprep.subr.mxu0 %v832
    %1253 = vmatpush2.msra.mxu0 %v831
    %1254 = vmatprep.subr.mxu0 %v826
    %1255 = vmatpush2.msra.mxu0 %v825
    %1256 = vmatprep.subr.mxu0 %v820
    %1257 = vmatpush2.msra.mxu0 %v819
    %1258 = vmatprep.subr.mxu0 %v814
    %1259 = vmatpush2.msra.mxu0 %v813
    %1260 = vmatprep.subr.mxu0 %v808
    %1261 = vmatpush2.msra.mxu0 %v807
    %1262 = vmatprep.subr.mxu0 %v802
    %1263 = vmatpush2.msra.mxu0 %v801
    %1264 = vmatprep.subr.mxu0 %v796
    %1265 = vmatpush2.msra.mxu0 %v795
    %1266 = vmatprep.subr.mxu0 %v790
    %1267 = vmatpush2.msra.mxu0 %v789
    %1268 = vmatprep.subr.mxu0 %v784
    %1269 = vmatpush2.msra.mxu0 %v783
    %1270 = vmatprep.subr.mxu0 %v778
    %1271 = vmatpush2.msra.mxu0 %v777
    %1272 = vmatprep.subr.mxu0 %v772
    %1273 = vmatpush2.msra.mxu0 %v771
    %1274 = vmatprep.subr.mxu0 %v766
    %1275 = vmatpush2.msra.mxu0 %v765
    %1276 = vmatprep.subr.mxu0 %v760
    %1277 = vmatpush2.msra.mxu0 %v759
    %1278 = vmatprep.subr.mxu0 %v754
    %1279 = vmatpush2.msra.mxu0 %v753
    %1280 = vmatprep.subr.mxu0 %v748
    %1281 = vmatpush2.msra.mxu0 %v747
    %1282 = vmatprep.subr.mxu0 %v742
    %1283 = vmatpush2.msra.mxu0 %v741
    %1284 = vmatprep.mubr.f32.mxu0 %v448
    %1285 = vmatmul.mubr.f32.gmra.mxu0 %v447
    %v1286 = vpop.f32.mrf.mxu0
    %v1287 = vadd.f32 %v1216, %v1286
    %v1288 = vpop.f32.mrf.mxu0
    %v1289 = vadd.f32 %v1218, %v1288
    %1290 = vdwg.mxu0
    %v1291 = vmax.f32 %v1003, 0.0
    %v1292 = vmax.f32 %v1005, 0.0
    %v1293 = vmax.f32 %v1145, 0.0
    %v1294 = vmax.f32 %v1147, 0.0
    %v1295 = vmax.f32 %v1287, 0.0
    %v1296 = vmax.f32 %v1289, 0.0
    %v1297 = vadd.f32 %v1291, %v1293
    %v1298 = vadd.f32 %v1292, %v1294
    %v1299 = vadd.f32 %v1297, %v1295
    %v1300 = vadd.f32 %v1298, %v1296
    %s1301 = scalar_lea.vmem [#allocation5], 1024
    %v1302 = vld [vmem:[%s1301] sm:$0xff]
    %v1303 = vld [vmem:[%s1301 + $0x8] sm:$0xff]
    %v1304 = vld [vmem:[%s1301 + $0x10] sm:$0xff]
    %v1305 = vld [vmem:[%s1301 + $0x18] sm:$0xff]
    %v1306 = vld [vmem:[%s1301 + $0x20] sm:$0xff]
    %v1307 = vld [vmem:[%s1301 + $0x28] sm:$0xff]
    %v1308 = vld [vmem:[%s1301 + $0x30] sm:$0xff]
    %v1309 = vld [vmem:[%s1301 + $0x38] sm:$0xff]
    %v1310 = vld [vmem:[%s1301 + $0x40] sm:$0xff]
    %v1311 = vld [vmem:[%s1301 + $0x48] sm:$0xff]
    %v1312 = vld [vmem:[%s1301 + $0x50] sm:$0xff]
    %v1313 = vld [vmem:[%s1301 + $0x58] sm:$0xff]
    %v1314 = vld [vmem:[%s1301 + $0x60] sm:$0xff]
    %v1315 = vld [vmem:[%s1301 + $0x68] sm:$0xff]
    %v1316 = vld [vmem:[%s1301 + $0x70] sm:$0xff]
    %v1317 = vld [vmem:[%s1301 + $0x78] sm:$0xff]
    %v1318 = vld [vmem:[%s1301 + $0x80] sm:$0xff]
    %v1319 = vld [vmem:[%s1301 + $0x88] sm:$0xff]
    %v1320 = vld [vmem:[%s1301 + $0x90] sm:$0xff]
    %v1321 = vld [vmem:[%s1301 + $0x98] sm:$0xff]
    %v1322 = vld [vmem:[%s1301 + $0xa0] sm:$0xff]
    %v1323 = vld [vmem:[%s1301 + $0xa8] sm:$0xff]
    %v1324 = vld [vmem:[%s1301 + $0xb0] sm:$0xff]
    %v1325 = vld [vmem:[%s1301 + $0xb8] sm:$0xff]
    %v1326 = vld [vmem:[%s1301 + $0xc0] sm:$0xff]
    %v1327 = vld [vmem:[%s1301 + $0xc8] sm:$0xff]
    %v1328 = vld [vmem:[%s1301 + $0xd0] sm:$0xff]
    %v1329 = vld [vmem:[%s1301 + $0xd8] sm:$0xff]
    %v1330 = vld [vmem:[%s1301 + $0xe0] sm:$0xff]
    %v1331 = vld [vmem:[%s1301 + $0xe8] sm:$0xff]
    %v1332 = vld [vmem:[%s1301 + $0xf0] sm:$0xff]
    %v1333 = vld [vmem:[%s1301 + $0xf8] sm:$0xff]
    %v1334 = vld [vmem:[%s1301 + $0x100] sm:$0xff]
    %v1335 = vld [vmem:[%s1301 + $0x108] sm:$0xff]
    %v1336 = vld [vmem:[%s1301 + $0x110] sm:$0xff]
    %v1337 = vld [vmem:[%s1301 + $0x118] sm:$0xff]
    %v1338 = vld [vmem:[%s1301 + $0x120] sm:$0xff]
    %v1339 = vld [vmem:[%s1301 + $0x128] sm:$0xff]
    %v1340 = vld [vmem:[%s1301 + $0x130] sm:$0xff]
    %v1341 = vld [vmem:[%s1301 + $0x138] sm:$0xff]
    %v1342 = vld [vmem:[%s1301 + $0x140] sm:$0xff]
    %v1343 = vld [vmem:[%s1301 + $0x148] sm:$0xff]
    %v1344 = vld [vmem:[%s1301 + $0x150] sm:$0xff]
    %v1345 = vld [vmem:[%s1301 + $0x158] sm:$0xff]
    %v1346 = vld [vmem:[%s1301 + $0x160] sm:$0xff]
    %v1347 = vld [vmem:[%s1301 + $0x168] sm:$0xff]
    %v1348 = vld [vmem:[%s1301 + $0x170] sm:$0xff]
    %v1349 = vld [vmem:[%s1301 + $0x178] sm:$0xff]
    %v1350 = vld [vmem:[%s1301 + $0x180] sm:$0xff]
    %v1351 = vld [vmem:[%s1301 + $0x188] sm:$0xff]
    %v1352 = vld [vmem:[%s1301 + $0x190] sm:$0xff]
    %v1353 = vld [vmem:[%s1301 + $0x198] sm:$0xff]
    %v1354 = vld [vmem:[%s1301 + $0x1a0] sm:$0xff]
    %v1355 = vld [vmem:[%s1301 + $0x1a8] sm:$0xff]
    %v1356 = vld [vmem:[%s1301 + $0x1b0] sm:$0xff]
    %v1357 = vld [vmem:[%s1301 + $0x1b8] sm:$0xff]
    %v1358 = vld [vmem:[%s1301 + $0x1c0] sm:$0xff]
    %v1359 = vld [vmem:[%s1301 + $0x1c8] sm:$0xff]
    %v1360 = vld [vmem:[%s1301 + $0x1d0] sm:$0xff]
    %v1361 = vld [vmem:[%s1301 + $0x1d8] sm:$0xff]
    %v1362 = vld [vmem:[%s1301 + $0x1e0] sm:$0xff]
    %v1363 = vld [vmem:[%s1301 + $0x1e8] sm:$0xff]
    %v1364 = vld [vmem:[%s1301 + $0x1f0] sm:$0xff]
    %v1365 = vld [vmem:[%s1301 + $0x1f8] sm:$0xff]
    %v1366 = vld [vmem:[%s1301 + $0x200] sm:$0xff]
    %v1367 = vld [vmem:[%s1301 + $0x208] sm:$0xff]
    %v1368 = vld [vmem:[%s1301 + $0x210] sm:$0xff]
    %v1369 = vld [vmem:[%s1301 + $0x218] sm:$0xff]
    %v1370 = vld [vmem:[%s1301 + $0x220] sm:$0xff]
    %v1371 = vld [vmem:[%s1301 + $0x228] sm:$0xff]
    %v1372 = vld [vmem:[%s1301 + $0x230] sm:$0xff]
    %v1373 = vld [vmem:[%s1301 + $0x238] sm:$0xff]
    %v1374 = vld [vmem:[%s1301 + $0x240] sm:$0xff]
    %v1375 = vld [vmem:[%s1301 + $0x248] sm:$0xff]
    %v1376 = vld [vmem:[%s1301 + $0x250] sm:$0xff]
    %v1377 = vld [vmem:[%s1301 + $0x258] sm:$0xff]
    %v1378 = vld [vmem:[%s1301 + $0x260] sm:$0xff]
    %v1379 = vld [vmem:[%s1301 + $0x268] sm:$0xff]
    %v1380 = vld [vmem:[%s1301 + $0x270] sm:$0xff]
    %v1381 = vld [vmem:[%s1301 + $0x278] sm:$0xff]
    %v1382 = vld [vmem:[%s1301 + $0x280] sm:$0xff]
    %v1383 = vld [vmem:[%s1301 + $0x288] sm:$0xff]
    %v1384 = vld [vmem:[%s1301 + $0x290] sm:$0xff]
    %v1385 = vld [vmem:[%s1301 + $0x298] sm:$0xff]
    %v1386 = vld [vmem:[%s1301 + $0x2a0] sm:$0xff]
    %v1387 = vld [vmem:[%s1301 + $0x2a8] sm:$0xff]
    %v1388 = vld [vmem:[%s1301 + $0x2b0] sm:$0xff]
    %v1389 = vld [vmem:[%s1301 + $0x2b8] sm:$0xff]
    %v1390 = vld [vmem:[%s1301 + $0x2c0] sm:$0xff]
    %v1391 = vld [vmem:[%s1301 + $0x2c8] sm:$0xff]
    %v1392 = vld [vmem:[%s1301 + $0x2d0] sm:$0xff]
    %v1393 = vld [vmem:[%s1301 + $0x2d8] sm:$0xff]
    %v1394 = vld [vmem:[%s1301 + $0x2e0] sm:$0xff]
    %v1395 = vld [vmem:[%s1301 + $0x2e8] sm:$0xff]
    %v1396 = vld [vmem:[%s1301 + $0x2f0] sm:$0xff]
    %v1397 = vld [vmem:[%s1301 + $0x2f8] sm:$0xff]
    %v1398 = vld [vmem:[%s1301 + $0x300] sm:$0xff]
    %v1399 = vld [vmem:[%s1301 + $0x308] sm:$0xff]
    %v1400 = vld [vmem:[%s1301 + $0x310] sm:$0xff]
    %v1401 = vld [vmem:[%s1301 + $0x318] sm:$0xff]
    %v1402 = vld [vmem:[%s1301 + $0x320] sm:$0xff]
    %v1403 = vld [vmem:[%s1301 + $0x328] sm:$0xff]
    %v1404 = vld [vmem:[%s1301 + $0x330] sm:$0xff]
    %v1405 = vld [vmem:[%s1301 + $0x338] sm:$0xff]
    %v1406 = vld [vmem:[%s1301 + $0x340] sm:$0xff]
    %v1407 = vld [vmem:[%s1301 + $0x348] sm:$0xff]
    %v1408 = vld [vmem:[%s1301 + $0x350] sm:$0xff]
    %v1409 = vld [vmem:[%s1301 + $0x358] sm:$0xff]
    %v1410 = vld [vmem:[%s1301 + $0x360] sm:$0xff]
    %v1411 = vld [vmem:[%s1301 + $0x368] sm:$0xff]
    %v1412 = vld [vmem:[%s1301 + $0x370] sm:$0xff]
    %v1413 = vld [vmem:[%s1301 + $0x378] sm:$0xff]
    %v1414 = vld [vmem:[%s1301 + $0x380] sm:$0xff]
    %v1415 = vld [vmem:[%s1301 + $0x388] sm:$0xff]
    %v1416 = vld [vmem:[%s1301 + $0x390] sm:$0xff]
    %v1417 = vld [vmem:[%s1301 + $0x398] sm:$0xff]
    %v1418 = vld [vmem:[%s1301 + $0x3a0] sm:$0xff]
    %v1419 = vld [vmem:[%s1301 + $0x3a8] sm:$0xff]
    %v1420 = vld [vmem:[%s1301 + $0x3b0] sm:$0xff]
    %v1421 = vld [vmem:[%s1301 + $0x3b8] sm:$0xff]
    %v1422 = vld [vmem:[%s1301 + $0x3c0] sm:$0xff]
    %v1423 = vld [vmem:[%s1301 + $0x3c8] sm:$0xff]
    %v1424 = vld [vmem:[%s1301 + $0x3d0] sm:$0xff]
    %v1425 = vld [vmem:[%s1301 + $0x3d8] sm:$0xff]
    %v1426 = vld [vmem:[%s1301 + $0x3e0] sm:$0xff]
    %v1427 = vld [vmem:[%s1301 + $0x3e8] sm:$0xff]
    %v1428 = vld [vmem:[%s1301 + $0x3f0] sm:$0xff]
    %v1429 = vld [vmem:[%s1301 + $0x3f8] sm:$0xff]
    %s1430 = scalar_lea.vmem [#allocation7], 4
    %v1431 = vld [vmem:[%s1430] sm:$0xf]
    %v1433 = vlaneseq
    %v1434 = vshrl.u32 %v1433, 7
    %v1435 = vsub.s32 0, %v1434
    %v1436 = vrot.slane %v1431, %v1435
    %v1437 = vlaneseq
    %v1438 = vshrl.u32 %v1437, 7
    %v1439 = vsub.s32 1, %v1438
    %v1440 = vrot.slane %v1431, %v1439
    %v1441 = vlaneseq
    %v1442 = vshrl.u32 %v1441, 7
    %v1443 = vsub.s32 2, %v1442
    %v1444 = vrot.slane %v1431, %v1443
    %v1445 = vlaneseq
    %v1446 = vshrl.u32 %v1445, 7
    %v1447 = vsub.s32 3, %v1446
    %v1448 = vrot.slane %v1431, %v1447
    %1453 = vmatprep.subr.mxu0 %v1363
    %1454 = vmatpush1.msra.mxu0 %v1362
    %1455 = vmatprep.subr.mxu0 %v1359
    %1456 = vmatpush1.msra.mxu0 %v1358
    %1457 = vmatprep.subr.mxu0 %v1355
    %1458 = vmatpush1.msra.mxu0 %v1354
    %1459 = vmatprep.subr.mxu0 %v1351
    %1460 = vmatpush1.msra.mxu0 %v1350
    %1461 = vmatprep.subr.mxu0 %v1347
    %1462 = vmatpush1.msra.mxu0 %v1346
    %1463 = vmatprep.subr.mxu0 %v1343
    %1464 = vmatpush1.msra.mxu0 %v1342
    %1465 = vmatprep.subr.mxu0 %v1339
    %1466 = vmatpush1.msra.mxu0 %v1338
    %1467 = vmatprep.subr.mxu0 %v1335
    %1468 = vmatpush1.msra.mxu0 %v1334
    %1469 = vmatprep.subr.mxu0 %v1331
    %1470 = vmatpush1.msra.mxu0 %v1330
    %1471 = vmatprep.subr.mxu0 %v1327
    %1472 = vmatpush1.msra.mxu0 %v1326
    %1473 = vmatprep.subr.mxu0 %v1323
    %1474 = vmatpush1.msra.mxu0 %v1322
    %1475 = vmatprep.subr.mxu0 %v1319
    %1476 = vmatpush1.msra.mxu0 %v1318
    %1477 = vmatprep.subr.mxu0 %v1315
    %1478 = vmatpush1.msra.mxu0 %v1314
    %1479 = vmatprep.subr.mxu0 %v1311
    %1480 = vmatpush1.msra.mxu0 %v1310
    %1481 = vmatprep.subr.mxu0 %v1307
    %1482 = vmatpush1.msra.mxu0 %v1306
    %1483 = vmatprep.subr.mxu0 %v1303
    %1484 = vmatpush1.msra.mxu0 %v1302
    %1485 = vmatprep.subr.mxu0 %v1427
    %1486 = vmatpush2.msra.mxu0 %v1426
    %1487 = vmatprep.subr.mxu0 %v1423
    %1488 = vmatpush2.msra.mxu0 %v1422
    %1489 = vmatprep.subr.mxu0 %v1419
    %1490 = vmatpush2.msra.mxu0 %v1418
    %1491 = vmatprep.subr.mxu0 %v1415
    %1492 = vmatpush2.msra.mxu0 %v1414
    %1493 = vmatprep.subr.mxu0 %v1411
    %1494 = vmatpush2.msra.mxu0 %v1410
    %1495 = vmatprep.subr.mxu0 %v1407
    %1496 = vmatpush2.msra.mxu0 %v1406
    %1497 = vmatprep.subr.mxu0 %v1403
    %1498 = vmatpush2.msra.mxu0 %v1402
    %1499 = vmatprep.subr.mxu0 %v1399
    %1500 = vmatpush2.msra.mxu0 %v1398
    %1501 = vmatprep.subr.mxu0 %v1395
    %1502 = vmatpush2.msra.mxu0 %v1394
    %1503 = vmatprep.subr.mxu0 %v1391
    %1504 = vmatpush2.msra.mxu0 %v1390
    %1505 = vmatprep.subr.mxu0 %v1387
    %1506 = vmatpush2.msra.mxu0 %v1386
    %1507 = vmatprep.subr.mxu0 %v1383
    %1508 = vmatpush2.msra.mxu0 %v1382
    %1509 = vmatprep.subr.mxu0 %v1379
    %1510 = vmatpush2.msra.mxu0 %v1378
    %1511 = vmatprep.subr.mxu0 %v1375
    %1512 = vmatpush2.msra.mxu0 %v1374
    %1513 = vmatprep.subr.mxu0 %v1371
    %1514 = vmatpush2.msra.mxu0 %v1370
    %1515 = vmatprep.subr.mxu0 %v1367
    %1516 = vmatpush2.msra.mxu0 %v1366
    %1517 = vmatprep.mubr.f32.mxu0 %v1300
    %1518 = vmatmul.mubr.f32.gmra.mxu0 %v1299
    %v1519 = vpop.f32.mrf.mxu0
    %v1520 = vadd.f32 %v1436, %v1519
    %v1521 = vpop.f32.mrf.mxu0
    %v1522 = vadd.f32 %v1440, %v1521
    %1523 = vdwg.mxu0
    %1524 = vmatprep.subr.mxu0 %v1365
    %1525 = vmatpush1.msra.mxu0 %v1364
    %1526 = vmatprep.subr.mxu0 %v1361
    %1527 = vmatpush1.msra.mxu0 %v1360
    %1528 = vmatprep.subr.mxu0 %v1357
    %1529 = vmatpush1.msra.mxu0 %v1356
    %1530 = vmatprep.subr.mxu0 %v1353
    %1531 = vmatpush1.msra.mxu0 %v1352
    %1532 = vmatprep.subr.mxu0 %v1349
    %1533 = vmatpush1.msra.mxu0 %v1348
    %1534 = vmatprep.subr.mxu0 %v1345
    %1535 = vmatpush1.msra.mxu0 %v1344
    %1536 = vmatprep.subr.mxu0 %v1341
    %1537 = vmatpush1.msra.mxu0 %v1340
    %1538 = vmatprep.subr.mxu0 %v1337
    %1539 = vmatpush1.msra.mxu0 %v1336
    %1540 = vmatprep.subr.mxu0 %v1333
    %1541 = vmatpush1.msra.mxu0 %v1332
    %1542 = vmatprep.subr.mxu0 %v1329
    %1543 = vmatpush1.msra.mxu0 %v1328
    %1544 = vmatprep.subr.mxu0 %v1325
    %1545 = vmatpush1.msra.mxu0 %v1324
    %1546 = vmatprep.subr.mxu0 %v1321
    %1547 = vmatpush1.msra.mxu0 %v1320
    %1548 = vmatprep.subr.mxu0 %v1317
    %1549 = vmatpush1.msra.mxu0 %v1316
    %1550 = vmatprep.subr.mxu0 %v1313
    %1551 = vmatpush1.msra.mxu0 %v1312
    %1552 = vmatprep.subr.mxu0 %v1309
    %1553 = vmatpush1.msra.mxu0 %v1308
    %1554 = vmatprep.subr.mxu0 %v1305
    %1555 = vmatpush1.msra.mxu0 %v1304
    %1556 = vmatprep.subr.mxu0 %v1429
    %1557 = vmatpush2.msra.mxu0 %v1428
    %1558 = vmatprep.subr.mxu0 %v1425
    %1559 = vmatpush2.msra.mxu0 %v1424
    %1560 = vmatprep.subr.mxu0 %v1421
    %1561 = vmatpush2.msra.mxu0 %v1420
    %1562 = vmatprep.subr.mxu0 %v1417
    %1563 = vmatpush2.msra.mxu0 %v1416
    %1564 = vmatprep.subr.mxu0 %v1413
    %1565 = vmatpush2.msra.mxu0 %v1412
    %1566 = vmatprep.subr.mxu0 %v1409
    %1567 = vmatpush2.msra.mxu0 %v1408
    %1568 = vmatprep.subr.mxu0 %v1405
    %1569 = vmatpush2.msra.mxu0 %v1404
    %1570 = vmatprep.subr.mxu0 %v1401
    %1571 = vmatpush2.msra.mxu0 %v1400
    %1572 = vmatprep.subr.mxu0 %v1397
    %1573 = vmatpush2.msra.mxu0 %v1396
    %1574 = vmatprep.subr.mxu0 %v1393
    %1575 = vmatpush2.msra.mxu0 %v1392
    %1576 = vmatprep.subr.mxu0 %v1389
    %1577 = vmatpush2.msra.mxu0 %v1388
    %1578 = vmatprep.subr.mxu0 %v1385
    %1579 = vmatpush2.msra.mxu0 %v1384
    %1580 = vmatprep.subr.mxu0 %v1381
    %1581 = vmatpush2.msra.mxu0 %v1380
    %1582 = vmatprep.subr.mxu0 %v1377
    %1583 = vmatpush2.msra.mxu0 %v1376
    %1584 = vmatprep.subr.mxu0 %v1373
    %1585 = vmatpush2.msra.mxu0 %v1372
    %1586 = vmatprep.subr.mxu0 %v1369
    %1587 = vmatpush2.msra.mxu0 %v1368
    %1588 = vmatprep.mubr.f32.mxu0 %v1300
    %1589 = vmatmul.mubr.f32.gmra.mxu0 %v1299
    %v1590 = vpop.f32.mrf.mxu0
    %v1591 = vadd.f32 %v1444, %v1590
    %v1592 = vpop.f32.mrf.mxu0
    %v1593 = vadd.f32 %v1448, %v1592
    %1594 = vdwg.mxu0
    %v1595 = vmax.f32 %v1520, 0.0
    %v1596 = vmax.f32 %v1522, 0.0
    %v1597 = vmax.f32 %v1591, 0.0
    %v1598 = vmax.f32 %v1593, 0.0
    %s1599 = scalar_lea.vmem [#allocation8], 3072
    %v1600 = vld [vmem:[%s1599] sm:$0xff]
    %v1601 = vld [vmem:[%s1599 + $0x8] sm:$0xff]
    %v1602 = vld [vmem:[%s1599 + $0x10] sm:$0xff]
    %v1603 = vld [vmem:[%s1599 + $0x18] sm:$0xff]
    %v1604 = vld [vmem:[%s1599 + $0x20] sm:$0xff]
    %v1605 = vld [vmem:[%s1599 + $0x28] sm:$0xff]
    %v1606 = vld [vmem:[%s1599 + $0x30] sm:$0xff]
    %v1607 = vld [vmem:[%s1599 + $0x38] sm:$0xff]
    %v1608 = vld [vmem:[%s1599 + $0x40] sm:$0xff]
    %v1609 = vld [vmem:[%s1599 + $0x48] sm:$0xff]
    %v1610 = vld [vmem:[%s1599 + $0x50] sm:$0xff]
    %v1611 = vld [vmem:[%s1599 + $0x58] sm:$0xff]
    %v1612 = vld [vmem:[%s1599 + $0x60] sm:$0xff]
    %v1613 = vld [vmem:[%s1599 + $0x68] sm:$0xff]
    %v1614 = vld [vmem:[%s1599 + $0x70] sm:$0xff]
    %v1615 = vld [vmem:[%s1599 + $0x78] sm:$0xff]
    %v1616 = vld [vmem:[%s1599 + $0x80] sm:$0xff]
    %v1617 = vld [vmem:[%s1599 + $0x88] sm:$0xff]
    %v1618 = vld [vmem:[%s1599 + $0x90] sm:$0xff]
    %v1619 = vld [vmem:[%s1599 + $0x98] sm:$0xff]
    %v1620 = vld [vmem:[%s1599 + $0xa0] sm:$0xff]
    %v1621 = vld [vmem:[%s1599 + $0xa8] sm:$0xff]
    %v1622 = vld [vmem:[%s1599 + $0xb0] sm:$0xff]
    %v1623 = vld [vmem:[%s1599 + $0xb8] sm:$0xff]
    %v1624 = vld [vmem:[%s1599 + $0xc0] sm:$0xff]
    %v1625 = vld [vmem:[%s1599 + $0xc8] sm:$0xff]
    %v1626 = vld [vmem:[%s1599 + $0xd0] sm:$0xff]
    %v1627 = vld [vmem:[%s1599 + $0xd8] sm:$0xff]
    %v1628 = vld [vmem:[%s1599 + $0xe0] sm:$0xff]
    %v1629 = vld [vmem:[%s1599 + $0xe8] sm:$0xff]
    %v1630 = vld [vmem:[%s1599 + $0xf0] sm:$0xff]
    %v1631 = vld [vmem:[%s1599 + $0xf8] sm:$0xff]
    %v1632 = vld [vmem:[%s1599 + $0x100] sm:$0xff]
    %v1633 = vld [vmem:[%s1599 + $0x108] sm:$0xff]
    %v1634 = vld [vmem:[%s1599 + $0x110] sm:$0xff]
    %v1635 = vld [vmem:[%s1599 + $0x118] sm:$0xff]
    %v1636 = vld [vmem:[%s1599 + $0x120] sm:$0xff]
    %v1637 = vld [vmem:[%s1599 + $0x128] sm:$0xff]
    %v1638 = vld [vmem:[%s1599 + $0x130] sm:$0xff]
    %v1639 = vld [vmem:[%s1599 + $0x138] sm:$0xff]
    %v1640 = vld [vmem:[%s1599 + $0x140] sm:$0xff]
    %v1641 = vld [vmem:[%s1599 + $0x148] sm:$0xff]
    %v1642 = vld [vmem:[%s1599 + $0x150] sm:$0xff]
    %v1643 = vld [vmem:[%s1599 + $0x158] sm:$0xff]
    %v1644 = vld [vmem:[%s1599 + $0x160] sm:$0xff]
    %v1645 = vld [vmem:[%s1599 + $0x168] sm:$0xff]
    %v1646 = vld [vmem:[%s1599 + $0x170] sm:$0xff]
    %v1647 = vld [vmem:[%s1599 + $0x178] sm:$0xff]
    %v1648 = vld [vmem:[%s1599 + $0x180] sm:$0xff]
    %v1649 = vld [vmem:[%s1599 + $0x188] sm:$0xff]
    %v1650 = vld [vmem:[%s1599 + $0x190] sm:$0xff]
    %v1651 = vld [vmem:[%s1599 + $0x198] sm:$0xff]
    %v1652 = vld [vmem:[%s1599 + $0x1a0] sm:$0xff]
    %v1653 = vld [vmem:[%s1599 + $0x1a8] sm:$0xff]
    %v1654 = vld [vmem:[%s1599 + $0x1b0] sm:$0xff]
    %v1655 = vld [vmem:[%s1599 + $0x1b8] sm:$0xff]
    %v1656 = vld [vmem:[%s1599 + $0x1c0] sm:$0xff]
    %v1657 = vld [vmem:[%s1599 + $0x1c8] sm:$0xff]
    %v1658 = vld [vmem:[%s1599 + $0x1d0] sm:$0xff]
    %v1659 = vld [vmem:[%s1599 + $0x1d8] sm:$0xff]
    %v1660 = vld [vmem:[%s1599 + $0x1e0] sm:$0xff]
    %v1661 = vld [vmem:[%s1599 + $0x1e8] sm:$0xff]
    %v1662 = vld [vmem:[%s1599 + $0x1f0] sm:$0xff]
    %v1663 = vld [vmem:[%s1599 + $0x1f8] sm:$0xff]
    %v1664 = vld [vmem:[%s1599 + $0x200] sm:$0xff]
    %v1665 = vld [vmem:[%s1599 + $0x208] sm:$0xff]
    %v1666 = vld [vmem:[%s1599 + $0x210] sm:$0xff]
    %v1667 = vld [vmem:[%s1599 + $0x218] sm:$0xff]
    %v1668 = vld [vmem:[%s1599 + $0x220] sm:$0xff]
    %v1669 = vld [vmem:[%s1599 + $0x228] sm:$0xff]
    %v1670 = vld [vmem:[%s1599 + $0x230] sm:$0xff]
    %v1671 = vld [vmem:[%s1599 + $0x238] sm:$0xff]
    %v1672 = vld [vmem:[%s1599 + $0x240] sm:$0xff]
    %v1673 = vld [vmem:[%s1599 + $0x248] sm:$0xff]
    %v1674 = vld [vmem:[%s1599 + $0x250] sm:$0xff]
    %v1675 = vld [vmem:[%s1599 + $0x258] sm:$0xff]
    %v1676 = vld [vmem:[%s1599 + $0x260] sm:$0xff]
    %v1677 = vld [vmem:[%s1599 + $0x268] sm:$0xff]
    %v1678 = vld [vmem:[%s1599 + $0x270] sm:$0xff]
    %v1679 = vld [vmem:[%s1599 + $0x278] sm:$0xff]
    %v1680 = vld [vmem:[%s1599 + $0x280] sm:$0xff]
    %v1681 = vld [vmem:[%s1599 + $0x288] sm:$0xff]
    %v1682 = vld [vmem:[%s1599 + $0x290] sm:$0xff]
    %v1683 = vld [vmem:[%s1599 + $0x298] sm:$0xff]
    %v1684 = vld [vmem:[%s1599 + $0x2a0] sm:$0xff]
    %v1685 = vld [vmem:[%s1599 + $0x2a8] sm:$0xff]
    %v1686 = vld [vmem:[%s1599 + $0x2b0] sm:$0xff]
    %v1687 = vld [vmem:[%s1599 + $0x2b8] sm:$0xff]
    %v1688 = vld [vmem:[%s1599 + $0x2c0] sm:$0xff]
    %v1689 = vld [vmem:[%s1599 + $0x2c8] sm:$0xff]
    %v1690 = vld [vmem:[%s1599 + $0x2d0] sm:$0xff]
    %v1691 = vld [vmem:[%s1599 + $0x2d8] sm:$0xff]
    %v1692 = vld [vmem:[%s1599 + $0x2e0] sm:$0xff]
    %v1693 = vld [vmem:[%s1599 + $0x2e8] sm:$0xff]
    %v1694 = vld [vmem:[%s1599 + $0x2f0] sm:$0xff]
    %v1695 = vld [vmem:[%s1599 + $0x2f8] sm:$0xff]
    %v1696 = vld [vmem:[%s1599 + $0x300] sm:$0xff]
    %v1697 = vld [vmem:[%s1599 + $0x308] sm:$0xff]
    %v1698 = vld [vmem:[%s1599 + $0x310] sm:$0xff]
    %v1699 = vld [vmem:[%s1599 + $0x318] sm:$0xff]
    %v1700 = vld [vmem:[%s1599 + $0x320] sm:$0xff]
    %v1701 = vld [vmem:[%s1599 + $0x328] sm:$0xff]
    %v1702 = vld [vmem:[%s1599 + $0x330] sm:$0xff]
    %v1703 = vld [vmem:[%s1599 + $0x338] sm:$0xff]
    %v1704 = vld [vmem:[%s1599 + $0x340] sm:$0xff]
    %v1705 = vld [vmem:[%s1599 + $0x348] sm:$0xff]
    %v1706 = vld [vmem:[%s1599 + $0x350] sm:$0xff]
    %v1707 = vld [vmem:[%s1599 + $0x358] sm:$0xff]
    %v1708 = vld [vmem:[%s1599 + $0x360] sm:$0xff]
    %v1709 = vld [vmem:[%s1599 + $0x368] sm:$0xff]
    %v1710 = vld [vmem:[%s1599 + $0x370] sm:$0xff]
    %v1711 = vld [vmem:[%s1599 + $0x378] sm:$0xff]
    %v1712 = vld [vmem:[%s1599 + $0x380] sm:$0xff]
    %v1713 = vld [vmem:[%s1599 + $0x388] sm:$0xff]
    %v1714 = vld [vmem:[%s1599 + $0x390] sm:$0xff]
    %v1715 = vld [vmem:[%s1599 + $0x398] sm:$0xff]
    %v1716 = vld [vmem:[%s1599 + $0x3a0] sm:$0xff]
    %v1717 = vld [vmem:[%s1599 + $0x3a8] sm:$0xff]
    %v1718 = vld [vmem:[%s1599 + $0x3b0] sm:$0xff]
    %v1719 = vld [vmem:[%s1599 + $0x3b8] sm:$0xff]
    %v1720 = vld [vmem:[%s1599 + $0x3c0] sm:$0xff]
    %v1721 = vld [vmem:[%s1599 + $0x3c8] sm:$0xff]
    %v1722 = vld [vmem:[%s1599 + $0x3d0] sm:$0xff]
    %v1723 = vld [vmem:[%s1599 + $0x3d8] sm:$0xff]
    %v1724 = vld [vmem:[%s1599 + $0x3e0] sm:$0xff]
    %v1725 = vld [vmem:[%s1599 + $0x3e8] sm:$0xff]
    %v1726 = vld [vmem:[%s1599 + $0x3f0] sm:$0xff]
    %v1727 = vld [vmem:[%s1599 + $0x3f8] sm:$0xff]
    %v1728 = vld [vmem:[%s1599 + $0x400] sm:$0xff]
    %v1729 = vld [vmem:[%s1599 + $0x408] sm:$0xff]
    %v1730 = vld [vmem:[%s1599 + $0x410] sm:$0xff]
    %v1731 = vld [vmem:[%s1599 + $0x418] sm:$0xff]
    %v1732 = vld [vmem:[%s1599 + $0x420] sm:$0xff]
    %v1733 = vld [vmem:[%s1599 + $0x428] sm:$0xff]
    %v1734 = vld [vmem:[%s1599 + $0x430] sm:$0xff]
    %v1735 = vld [vmem:[%s1599 + $0x438] sm:$0xff]
    %v1736 = vld [vmem:[%s1599 + $0x440] sm:$0xff]
    %v1737 = vld [vmem:[%s1599 + $0x448] sm:$0xff]
    %v1738 = vld [vmem:[%s1599 + $0x450] sm:$0xff]
    %v1739 = vld [vmem:[%s1599 + $0x458] sm:$0xff]
    %v1740 = vld [vmem:[%s1599 + $0x460] sm:$0xff]
    %v1741 = vld [vmem:[%s1599 + $0x468] sm:$0xff]
    %v1742 = vld [vmem:[%s1599 + $0x470] sm:$0xff]
    %v1743 = vld [vmem:[%s1599 + $0x478] sm:$0xff]
    %v1744 = vld [vmem:[%s1599 + $0x480] sm:$0xff]
    %v1745 = vld [vmem:[%s1599 + $0x488] sm:$0xff]
    %v1746 = vld [vmem:[%s1599 + $0x490] sm:$0xff]
    %v1747 = vld [vmem:[%s1599 + $0x498] sm:$0xff]
    %v1748 = vld [vmem:[%s1599 + $0x4a0] sm:$0xff]
    %v1749 = vld [vmem:[%s1599 + $0x4a8] sm:$0xff]
    %v1750 = vld [vmem:[%s1599 + $0x4b0] sm:$0xff]
    %v1751 = vld [vmem:[%s1599 + $0x4b8] sm:$0xff]
    %v1752 = vld [vmem:[%s1599 + $0x4c0] sm:$0xff]
    %v1753 = vld [vmem:[%s1599 + $0x4c8] sm:$0xff]
    %v1754 = vld [vmem:[%s1599 + $0x4d0] sm:$0xff]
    %v1755 = vld [vmem:[%s1599 + $0x4d8] sm:$0xff]
    %v1756 = vld [vmem:[%s1599 + $0x4e0] sm:$0xff]
    %v1757 = vld [vmem:[%s1599 + $0x4e8] sm:$0xff]
    %v1758 = vld [vmem:[%s1599 + $0x4f0] sm:$0xff]
    %v1759 = vld [vmem:[%s1599 + $0x4f8] sm:$0xff]
    %v1760 = vld [vmem:[%s1599 + $0x500] sm:$0xff]
    %v1761 = vld [vmem:[%s1599 + $0x508] sm:$0xff]
    %v1762 = vld [vmem:[%s1599 + $0x510] sm:$0xff]
    %v1763 = vld [vmem:[%s1599 + $0x518] sm:$0xff]
    %v1764 = vld [vmem:[%s1599 + $0x520] sm:$0xff]
    %v1765 = vld [vmem:[%s1599 + $0x528] sm:$0xff]
    %v1766 = vld [vmem:[%s1599 + $0x530] sm:$0xff]
    %v1767 = vld [vmem:[%s1599 + $0x538] sm:$0xff]
    %v1768 = vld [vmem:[%s1599 + $0x540] sm:$0xff]
    %v1769 = vld [vmem:[%s1599 + $0x548] sm:$0xff]
    %v1770 = vld [vmem:[%s1599 + $0x550] sm:$0xff]
    %v1771 = vld [vmem:[%s1599 + $0x558] sm:$0xff]
    %v1772 = vld [vmem:[%s1599 + $0x560] sm:$0xff]
    %v1773 = vld [vmem:[%s1599 + $0x568] sm:$0xff]
    %v1774 = vld [vmem:[%s1599 + $0x570] sm:$0xff]
    %v1775 = vld [vmem:[%s1599 + $0x578] sm:$0xff]
    %v1776 = vld [vmem:[%s1599 + $0x580] sm:$0xff]
    %v1777 = vld [vmem:[%s1599 + $0x588] sm:$0xff]
    %v1778 = vld [vmem:[%s1599 + $0x590] sm:$0xff]
    %v1779 = vld [vmem:[%s1599 + $0x598] sm:$0xff]
    %v1780 = vld [vmem:[%s1599 + $0x5a0] sm:$0xff]
    %v1781 = vld [vmem:[%s1599 + $0x5a8] sm:$0xff]
    %v1782 = vld [vmem:[%s1599 + $0x5b0] sm:$0xff]
    %v1783 = vld [vmem:[%s1599 + $0x5b8] sm:$0xff]
    %v1784 = vld [vmem:[%s1599 + $0x5c0] sm:$0xff]
    %v1785 = vld [vmem:[%s1599 + $0x5c8] sm:$0xff]
    %v1786 = vld [vmem:[%s1599 + $0x5d0] sm:$0xff]
    %v1787 = vld [vmem:[%s1599 + $0x5d8] sm:$0xff]
    %v1788 = vld [vmem:[%s1599 + $0x5e0] sm:$0xff]
    %v1789 = vld [vmem:[%s1599 + $0x5e8] sm:$0xff]
    %v1790 = vld [vmem:[%s1599 + $0x5f0] sm:$0xff]
    %v1791 = vld [vmem:[%s1599 + $0x5f8] sm:$0xff]
    %v1792 = vld [vmem:[%s1599 + $0x600] sm:$0xff]
    %v1793 = vld [vmem:[%s1599 + $0x608] sm:$0xff]
    %v1794 = vld [vmem:[%s1599 + $0x610] sm:$0xff]
    %v1795 = vld [vmem:[%s1599 + $0x618] sm:$0xff]
    %v1796 = vld [vmem:[%s1599 + $0x620] sm:$0xff]
    %v1797 = vld [vmem:[%s1599 + $0x628] sm:$0xff]
    %v1798 = vld [vmem:[%s1599 + $0x630] sm:$0xff]
    %v1799 = vld [vmem:[%s1599 + $0x638] sm:$0xff]
    %v1800 = vld [vmem:[%s1599 + $0x640] sm:$0xff]
    %v1801 = vld [vmem:[%s1599 + $0x648] sm:$0xff]
    %v1802 = vld [vmem:[%s1599 + $0x650] sm:$0xff]
    %v1803 = vld [vmem:[%s1599 + $0x658] sm:$0xff]
    %v1804 = vld [vmem:[%s1599 + $0x660] sm:$0xff]
    %v1805 = vld [vmem:[%s1599 + $0x668] sm:$0xff]
    %v1806 = vld [vmem:[%s1599 + $0x670] sm:$0xff]
    %v1807 = vld [vmem:[%s1599 + $0x678] sm:$0xff]
    %v1808 = vld [vmem:[%s1599 + $0x680] sm:$0xff]
    %v1809 = vld [vmem:[%s1599 + $0x688] sm:$0xff]
    %v1810 = vld [vmem:[%s1599 + $0x690] sm:$0xff]
    %v1811 = vld [vmem:[%s1599 + $0x698] sm:$0xff]
    %v1812 = vld [vmem:[%s1599 + $0x6a0] sm:$0xff]
    %v1813 = vld [vmem:[%s1599 + $0x6a8] sm:$0xff]
    %v1814 = vld [vmem:[%s1599 + $0x6b0] sm:$0xff]
    %v1815 = vld [vmem:[%s1599 + $0x6b8] sm:$0xff]
    %v1816 = vld [vmem:[%s1599 + $0x6c0] sm:$0xff]
    %v1817 = vld [vmem:[%s1599 + $0x6c8] sm:$0xff]
    %v1818 = vld [vmem:[%s1599 + $0x6d0] sm:$0xff]
    %v1819 = vld [vmem:[%s1599 + $0x6d8] sm:$0xff]
    %v1820 = vld [vmem:[%s1599 + $0x6e0] sm:$0xff]
    %v1821 = vld [vmem:[%s1599 + $0x6e8] sm:$0xff]
    %v1822 = vld [vmem:[%s1599 + $0x6f0] sm:$0xff]
    %v1823 = vld [vmem:[%s1599 + $0x6f8] sm:$0xff]
    %v1824 = vld [vmem:[%s1599 + $0x700] sm:$0xff]
    %v1825 = vld [vmem:[%s1599 + $0x708] sm:$0xff]
    %v1826 = vld [vmem:[%s1599 + $0x710] sm:$0xff]
    %v1827 = vld [vmem:[%s1599 + $0x718] sm:$0xff]
    %v1828 = vld [vmem:[%s1599 + $0x720] sm:$0xff]
    %v1829 = vld [vmem:[%s1599 + $0x728] sm:$0xff]
    %v1830 = vld [vmem:[%s1599 + $0x730] sm:$0xff]
    %v1831 = vld [vmem:[%s1599 + $0x738] sm:$0xff]
    %v1832 = vld [vmem:[%s1599 + $0x740] sm:$0xff]
    %v1833 = vld [vmem:[%s1599 + $0x748] sm:$0xff]
    %v1834 = vld [vmem:[%s1599 + $0x750] sm:$0xff]
    %v1835 = vld [vmem:[%s1599 + $0x758] sm:$0xff]
    %v1836 = vld [vmem:[%s1599 + $0x760] sm:$0xff]
    %v1837 = vld [vmem:[%s1599 + $0x768] sm:$0xff]
    %v1838 = vld [vmem:[%s1599 + $0x770] sm:$0xff]
    %v1839 = vld [vmem:[%s1599 + $0x778] sm:$0xff]
    %v1840 = vld [vmem:[%s1599 + $0x780] sm:$0xff]
    %v1841 = vld [vmem:[%s1599 + $0x788] sm:$0xff]
    %v1842 = vld [vmem:[%s1599 + $0x790] sm:$0xff]
    %v1843 = vld [vmem:[%s1599 + $0x798] sm:$0xff]
    %v1844 = vld [vmem:[%s1599 + $0x7a0] sm:$0xff]
    %v1845 = vld [vmem:[%s1599 + $0x7a8] sm:$0xff]
    %v1846 = vld [vmem:[%s1599 + $0x7b0] sm:$0xff]
    %v1847 = vld [vmem:[%s1599 + $0x7b8] sm:$0xff]
    %v1848 = vld [vmem:[%s1599 + $0x7c0] sm:$0xff]
    %v1849 = vld [vmem:[%s1599 + $0x7c8] sm:$0xff]
    %v1850 = vld [vmem:[%s1599 + $0x7d0] sm:$0xff]
    %v1851 = vld [vmem:[%s1599 + $0x7d8] sm:$0xff]
    %v1852 = vld [vmem:[%s1599 + $0x7e0] sm:$0xff]
    %v1853 = vld [vmem:[%s1599 + $0x7e8] sm:$0xff]
    %v1854 = vld [vmem:[%s1599 + $0x7f0] sm:$0xff]
    %v1855 = vld [vmem:[%s1599 + $0x7f8] sm:$0xff]
    %v1856 = vld [vmem:[%s1599 + $0x800] sm:$0xff]
    %v1857 = vld [vmem:[%s1599 + $0x808] sm:$0xff]
    %v1858 = vld [vmem:[%s1599 + $0x810] sm:$0xff]
    %v1859 = vld [vmem:[%s1599 + $0x818] sm:$0xff]
    %v1860 = vld [vmem:[%s1599 + $0x820] sm:$0xff]
    %v1861 = vld [vmem:[%s1599 + $0x828] sm:$0xff]
    %v1862 = vld [vmem:[%s1599 + $0x830] sm:$0xff]
    %v1863 = vld [vmem:[%s1599 + $0x838] sm:$0xff]
    %v1864 = vld [vmem:[%s1599 + $0x840] sm:$0xff]
    %v1865 = vld [vmem:[%s1599 + $0x848] sm:$0xff]
    %v1866 = vld [vmem:[%s1599 + $0x850] sm:$0xff]
    %v1867 = vld [vmem:[%s1599 + $0x858] sm:$0xff]
    %v1868 = vld [vmem:[%s1599 + $0x860] sm:$0xff]
    %v1869 = vld [vmem:[%s1599 + $0x868] sm:$0xff]
    %v1870 = vld [vmem:[%s1599 + $0x870] sm:$0xff]
    %v1871 = vld [vmem:[%s1599 + $0x878] sm:$0xff]
    %v1872 = vld [vmem:[%s1599 + $0x880] sm:$0xff]
    %v1873 = vld [vmem:[%s1599 + $0x888] sm:$0xff]
    %v1874 = vld [vmem:[%s1599 + $0x890] sm:$0xff]
    %v1875 = vld [vmem:[%s1599 + $0x898] sm:$0xff]
    %v1876 = vld [vmem:[%s1599 + $0x8a0] sm:$0xff]
    %v1877 = vld [vmem:[%s1599 + $0x8a8] sm:$0xff]
    %v1878 = vld [vmem:[%s1599 + $0x8b0] sm:$0xff]
    %v1879 = vld [vmem:[%s1599 + $0x8b8] sm:$0xff]
    %v1880 = vld [vmem:[%s1599 + $0x8c0] sm:$0xff]
    %v1881 = vld [vmem:[%s1599 + $0x8c8] sm:$0xff]
    %v1882 = vld [vmem:[%s1599 + $0x8d0] sm:$0xff]
    %v1883 = vld [vmem:[%s1599 + $0x8d8] sm:$0xff]
    %v1884 = vld [vmem:[%s1599 + $0x8e0] sm:$0xff]
    %v1885 = vld [vmem:[%s1599 + $0x8e8] sm:$0xff]
    %v1886 = vld [vmem:[%s1599 + $0x8f0] sm:$0xff]
    %v1887 = vld [vmem:[%s1599 + $0x8f8] sm:$0xff]
    %v1888 = vld [vmem:[%s1599 + $0x900] sm:$0xff]
    %v1889 = vld [vmem:[%s1599 + $0x908] sm:$0xff]
    %v1890 = vld [vmem:[%s1599 + $0x910] sm:$0xff]
    %v1891 = vld [vmem:[%s1599 + $0x918] sm:$0xff]
    %v1892 = vld [vmem:[%s1599 + $0x920] sm:$0xff]
    %v1893 = vld [vmem:[%s1599 + $0x928] sm:$0xff]
    %v1894 = vld [vmem:[%s1599 + $0x930] sm:$0xff]
    %v1895 = vld [vmem:[%s1599 + $0x938] sm:$0xff]
    %v1896 = vld [vmem:[%s1599 + $0x940] sm:$0xff]
    %v1897 = vld [vmem:[%s1599 + $0x948] sm:$0xff]
    %v1898 = vld [vmem:[%s1599 + $0x950] sm:$0xff]
    %v1899 = vld [vmem:[%s1599 + $0x958] sm:$0xff]
    %v1900 = vld [vmem:[%s1599 + $0x960] sm:$0xff]
    %v1901 = vld [vmem:[%s1599 + $0x968] sm:$0xff]
    %v1902 = vld [vmem:[%s1599 + $0x970] sm:$0xff]
    %v1903 = vld [vmem:[%s1599 + $0x978] sm:$0xff]
    %v1904 = vld [vmem:[%s1599 + $0x980] sm:$0xff]
    %v1905 = vld [vmem:[%s1599 + $0x988] sm:$0xff]
    %v1906 = vld [vmem:[%s1599 + $0x990] sm:$0xff]
    %v1907 = vld [vmem:[%s1599 + $0x998] sm:$0xff]
    %v1908 = vld [vmem:[%s1599 + $0x9a0] sm:$0xff]
    %v1909 = vld [vmem:[%s1599 + $0x9a8] sm:$0xff]
    %v1910 = vld [vmem:[%s1599 + $0x9b0] sm:$0xff]
    %v1911 = vld [vmem:[%s1599 + $0x9b8] sm:$0xff]
    %v1912 = vld [vmem:[%s1599 + $0x9c0] sm:$0xff]
    %v1913 = vld [vmem:[%s1599 + $0x9c8] sm:$0xff]
    %v1914 = vld [vmem:[%s1599 + $0x9d0] sm:$0xff]
    %v1915 = vld [vmem:[%s1599 + $0x9d8] sm:$0xff]
    %v1916 = vld [vmem:[%s1599 + $0x9e0] sm:$0xff]
    %v1917 = vld [vmem:[%s1599 + $0x9e8] sm:$0xff]
    %v1918 = vld [vmem:[%s1599 + $0x9f0] sm:$0xff]
    %v1919 = vld [vmem:[%s1599 + $0x9f8] sm:$0xff]
    %v1920 = vld [vmem:[%s1599 + $0xa00] sm:$0xff]
    %v1921 = vld [vmem:[%s1599 + $0xa08] sm:$0xff]
    %v1922 = vld [vmem:[%s1599 + $0xa10] sm:$0xff]
    %v1923 = vld [vmem:[%s1599 + $0xa18] sm:$0xff]
    %v1924 = vld [vmem:[%s1599 + $0xa20] sm:$0xff]
    %v1925 = vld [vmem:[%s1599 + $0xa28] sm:$0xff]
    %v1926 = vld [vmem:[%s1599 + $0xa30] sm:$0xff]
    %v1927 = vld [vmem:[%s1599 + $0xa38] sm:$0xff]
    %v1928 = vld [vmem:[%s1599 + $0xa40] sm:$0xff]
    %v1929 = vld [vmem:[%s1599 + $0xa48] sm:$0xff]
    %v1930 = vld [vmem:[%s1599 + $0xa50] sm:$0xff]
    %v1931 = vld [vmem:[%s1599 + $0xa58] sm:$0xff]
    %v1932 = vld [vmem:[%s1599 + $0xa60] sm:$0xff]
    %v1933 = vld [vmem:[%s1599 + $0xa68] sm:$0xff]
    %v1934 = vld [vmem:[%s1599 + $0xa70] sm:$0xff]
    %v1935 = vld [vmem:[%s1599 + $0xa78] sm:$0xff]
    %v1936 = vld [vmem:[%s1599 + $0xa80] sm:$0xff]
    %v1937 = vld [vmem:[%s1599 + $0xa88] sm:$0xff]
    %v1938 = vld [vmem:[%s1599 + $0xa90] sm:$0xff]
    %v1939 = vld [vmem:[%s1599 + $0xa98] sm:$0xff]
    %v1940 = vld [vmem:[%s1599 + $0xaa0] sm:$0xff]
    %v1941 = vld [vmem:[%s1599 + $0xaa8] sm:$0xff]
    %v1942 = vld [vmem:[%s1599 + $0xab0] sm:$0xff]
    %v1943 = vld [vmem:[%s1599 + $0xab8] sm:$0xff]
    %v1944 = vld [vmem:[%s1599 + $0xac0] sm:$0xff]
    %v1945 = vld [vmem:[%s1599 + $0xac8] sm:$0xff]
    %v1946 = vld [vmem:[%s1599 + $0xad0] sm:$0xff]
    %v1947 = vld [vmem:[%s1599 + $0xad8] sm:$0xff]
    %v1948 = vld [vmem:[%s1599 + $0xae0] sm:$0xff]
    %v1949 = vld [vmem:[%s1599 + $0xae8] sm:$0xff]
    %v1950 = vld [vmem:[%s1599 + $0xaf0] sm:$0xff]
    %v1951 = vld [vmem:[%s1599 + $0xaf8] sm:$0xff]
    %v1952 = vld [vmem:[%s1599 + $0xb00] sm:$0xff]
    %v1953 = vld [vmem:[%s1599 + $0xb08] sm:$0xff]
    %v1954 = vld [vmem:[%s1599 + $0xb10] sm:$0xff]
    %v1955 = vld [vmem:[%s1599 + $0xb18] sm:$0xff]
    %v1956 = vld [vmem:[%s1599 + $0xb20] sm:$0xff]
    %v1957 = vld [vmem:[%s1599 + $0xb28] sm:$0xff]
    %v1958 = vld [vmem:[%s1599 + $0xb30] sm:$0xff]
    %v1959 = vld [vmem:[%s1599 + $0xb38] sm:$0xff]
    %v1960 = vld [vmem:[%s1599 + $0xb40] sm:$0xff]
    %v1961 = vld [vmem:[%s1599 + $0xb48] sm:$0xff]
    %v1962 = vld [vmem:[%s1599 + $0xb50] sm:$0xff]
    %v1963 = vld [vmem:[%s1599 + $0xb58] sm:$0xff]
    %v1964 = vld [vmem:[%s1599 + $0xb60] sm:$0xff]
    %v1965 = vld [vmem:[%s1599 + $0xb68] sm:$0xff]
    %v1966 = vld [vmem:[%s1599 + $0xb70] sm:$0xff]
    %v1967 = vld [vmem:[%s1599 + $0xb78] sm:$0xff]
    %v1968 = vld [vmem:[%s1599 + $0xb80] sm:$0xff]
    %v1969 = vld [vmem:[%s1599 + $0xb88] sm:$0xff]
    %v1970 = vld [vmem:[%s1599 + $0xb90] sm:$0xff]
    %v1971 = vld [vmem:[%s1599 + $0xb98] sm:$0xff]
    %v1972 = vld [vmem:[%s1599 + $0xba0] sm:$0xff]
    %v1973 = vld [vmem:[%s1599 + $0xba8] sm:$0xff]
    %v1974 = vld [vmem:[%s1599 + $0xbb0] sm:$0xff]
    %v1975 = vld [vmem:[%s1599 + $0xbb8] sm:$0xff]
    %v1976 = vld [vmem:[%s1599 + $0xbc0] sm:$0xff]
    %v1977 = vld [vmem:[%s1599 + $0xbc8] sm:$0xff]
    %v1978 = vld [vmem:[%s1599 + $0xbd0] sm:$0xff]
    %v1979 = vld [vmem:[%s1599 + $0xbd8] sm:$0xff]
    %v1980 = vld [vmem:[%s1599 + $0xbe0] sm:$0xff]
    %v1981 = vld [vmem:[%s1599 + $0xbe8] sm:$0xff]
    %v1982 = vld [vmem:[%s1599 + $0xbf0] sm:$0xff]
    %v1983 = vld [vmem:[%s1599 + $0xbf8] sm:$0xff]
    %s1984 = scalar_lea.vmem [#allocation10], 6
    %v1985 = vld [vmem:[%s1984] sm:$0x3f]
    %v1987 = vlaneseq
    %v1988 = vshrl.u32 %v1987, 7
    %v1989 = vsub.s32 0, %v1988
    %v1990 = vrot.slane %v1985, %v1989
    %v1991 = vlaneseq
    %v1992 = vshrl.u32 %v1991, 7
    %v1993 = vsub.s32 1, %v1992
    %v1994 = vrot.slane %v1985, %v1993
    %v1995 = vlaneseq
    %v1996 = vshrl.u32 %v1995, 7
    %v1997 = vsub.s32 2, %v1996
    %v1998 = vrot.slane %v1985, %v1997
    %v1999 = vlaneseq
    %v2000 = vshrl.u32 %v1999, 7
    %v2001 = vsub.s32 3, %v2000
    %v2002 = vrot.slane %v1985, %v2001
    %v2003 = vlaneseq
    %v2004 = vshrl.u32 %v2003, 7
    %v2005 = vsub.s32 4, %v2004
    %v2006 = vrot.slane %v1985, %v2005
    %v2007 = vlaneseq
    %v2008 = vshrl.u32 %v2007, 7
    %v2009 = vsub.s32 5, %v2008
    %v2010 = vrot.slane %v1985, %v2009
    %2017 = vmatprep.subr.mxu0 %v1691
    %2018 = vmatpush1.msra.mxu0 %v1690
    %2019 = vmatprep.subr.mxu0 %v1685
    %2020 = vmatpush1.msra.mxu0 %v1684
    %2021 = vmatprep.subr.mxu0 %v1679
    %2022 = vmatpush1.msra.mxu0 %v1678
    %2023 = vmatprep.subr.mxu0 %v1673
    %2024 = vmatpush1.msra.mxu0 %v1672
    %2025 = vmatprep.subr.mxu0 %v1667
    %2026 = vmatpush1.msra.mxu0 %v1666
    %2027 = vmatprep.subr.mxu0 %v1661
    %2028 = vmatpush1.msra.mxu0 %v1660
    %2029 = vmatprep.subr.mxu0 %v1655
    %2030 = vmatpush1.msra.mxu0 %v1654
    %2031 = vmatprep.subr.mxu0 %v1649
    %2032 = vmatpush1.msra.mxu0 %v1648
    %2033 = vmatprep.subr.mxu0 %v1643
    %2034 = vmatpush1.msra.mxu0 %v1642
    %2035 = vmatprep.subr.mxu0 %v1637
    %2036 = vmatpush1.msra.mxu0 %v1636
    %2037 = vmatprep.subr.mxu0 %v1631
    %2038 = vmatpush1.msra.mxu0 %v1630
    %2039 = vmatprep.subr.mxu0 %v1625
    %2040 = vmatpush1.msra.mxu0 %v1624
    %2041 = vmatprep.subr.mxu0 %v1619
    %2042 = vmatpush1.msra.mxu0 %v1618
    %2043 = vmatprep.subr.mxu0 %v1613
    %2044 = vmatpush1.msra.mxu0 %v1612
    %2045 = vmatprep.subr.mxu0 %v1607
    %2046 = vmatpush1.msra.mxu0 %v1606
    %2047 = vmatprep.subr.mxu0 %v1601
    %2048 = vmatpush1.msra.mxu0 %v1600
    %2049 = vmatprep.subr.mxu0 %v1787
    %2050 = vmatpush2.msra.mxu0 %v1786
    %2051 = vmatprep.subr.mxu0 %v1781
    %2052 = vmatpush2.msra.mxu0 %v1780
    %2053 = vmatprep.subr.mxu0 %v1775
    %2054 = vmatpush2.msra.mxu0 %v1774
    %2055 = vmatprep.subr.mxu0 %v1769
    %2056 = vmatpush2.msra.mxu0 %v1768
    %2057 = vmatprep.subr.mxu0 %v1763
    %2058 = vmatpush2.msra.mxu0 %v1762
    %2059 = vmatprep.subr.mxu0 %v1757
    %2060 = vmatpush2.msra.mxu0 %v1756
    %2061 = vmatprep.subr.mxu0 %v1751
    %2062 = vmatpush2.msra.mxu0 %v1750
    %2063 = vmatprep.subr.mxu0 %v1745
    %2064 = vmatpush2.msra.mxu0 %v1744
    %2065 = vmatprep.subr.mxu0 %v1739
    %2066 = vmatpush2.msra.mxu0 %v1738
    %2067 = vmatprep.subr.mxu0 %v1733
    %2068 = vmatpush2.msra.mxu0 %v1732
    %2069 = vmatprep.subr.mxu0 %v1727
    %2070 = vmatpush2.msra.mxu0 %v1726
    %2071 = vmatprep.subr.mxu0 %v1721
    %2072 = vmatpush2.msra.mxu0 %v1720
    %2073 = vmatprep.subr.mxu0 %v1715
    %2074 = vmatpush2.msra.mxu0 %v1714
    %2075 = vmatprep.subr.mxu0 %v1709
    %2076 = vmatpush2.msra.mxu0 %v1708
    %2077 = vmatprep.subr.mxu0 %v1703
    %2078 = vmatpush2.msra.mxu0 %v1702
    %2079 = vmatprep.subr.mxu0 %v1697
    %2080 = vmatpush2.msra.mxu0 %v1696
    %2081 = vmatprep.mubr.f32.mxu0 %v1596
    %2082 = vmatmul.mubr.f32.gmra.mxu0 %v1595
    %v2083 = vpop.f32.mrf.mxu0
    %v2084 = vadd.f32 %v1990, %v2083
    %v2085 = vpop.f32.mrf.mxu0
    %v2086 = vadd.f32 %v1994, %v2085
    %2087 = vdwg.mxu0
    %2088 = vmatprep.subr.mxu0 %v1883
    %2089 = vmatpush1.msra.mxu0 %v1882
    %2090 = vmatprep.subr.mxu0 %v1877
    %2091 = vmatpush1.msra.mxu0 %v1876
    %2092 = vmatprep.subr.mxu0 %v1871
    %2093 = vmatpush1.msra.mxu0 %v1870
    %2094 = vmatprep.subr.mxu0 %v1865
    %2095 = vmatpush1.msra.mxu0 %v1864
    %2096 = vmatprep.subr.mxu0 %v1859
    %2097 = vmatpush1.msra.mxu0 %v1858
    %2098 = vmatprep.subr.mxu0 %v1853
    %2099 = vmatpush1.msra.mxu0 %v1852
    %2100 = vmatprep.subr.mxu0 %v1847
    %2101 = vmatpush1.msra.mxu0 %v1846
    %2102 = vmatprep.subr.mxu0 %v1841
    %2103 = vmatpush1.msra.mxu0 %v1840
    %2104 = vmatprep.subr.mxu0 %v1835
    %2105 = vmatpush1.msra.mxu0 %v1834
    %2106 = vmatprep.subr.mxu0 %v1829
    %2107 = vmatpush1.msra.mxu0 %v1828
    %2108 = vmatprep.subr.mxu0 %v1823
    %2109 = vmatpush1.msra.mxu0 %v1822
    %2110 = vmatprep.subr.mxu0 %v1817
    %2111 = vmatpush1.msra.mxu0 %v1816
    %2112 = vmatprep.subr.mxu0 %v1811
    %2113 = vmatpush1.msra.mxu0 %v1810
    %2114 = vmatprep.subr.mxu0 %v1805
    %2115 = vmatpush1.msra.mxu0 %v1804
    %2116 = vmatprep.subr.mxu0 %v1799
    %2117 = vmatpush1.msra.mxu0 %v1798
    %2118 = vmatprep.subr.mxu0 %v1793
    %2119 = vmatpush1.msra.mxu0 %v1792
    %2120 = vmatprep.subr.mxu0 %v1979
    %2121 = vmatpush2.msra.mxu0 %v1978
    %2122 = vmatprep.subr.mxu0 %v1973
    %2123 = vmatpush2.msra.mxu0 %v1972
    %2124 = vmatprep.subr.mxu0 %v1967
    %2125 = vmatpush2.msra.mxu0 %v1966
    %2126 = vmatprep.subr.mxu0 %v1961
    %2127 = vmatpush2.msra.mxu0 %v1960
    %2128 = vmatprep.subr.mxu0 %v1955
    %2129 = vmatpush2.msra.mxu0 %v1954
    %2130 = vmatprep.subr.mxu0 %v1949
    %2131 = vmatpush2.msra.mxu0 %v1948
    %2132 = vmatprep.subr.mxu0 %v1943
    %2133 = vmatpush2.msra.mxu0 %v1942
    %2134 = vmatprep.subr.mxu0 %v1937
    %2135 = vmatpush2.msra.mxu0 %v1936
    %2136 = vmatprep.subr.mxu0 %v1931
    %2137 = vmatpush2.msra.mxu0 %v1930
    %2138 = vmatprep.subr.mxu0 %v1925
    %2139 = vmatpush2.msra.mxu0 %v1924
    %2140 = vmatprep.subr.mxu0 %v1919
    %2141 = vmatpush2.msra.mxu0 %v1918
    %2142 = vmatprep.subr.mxu0 %v1913
    %2143 = vmatpush2.msra.mxu0 %v1912
    %2144 = vmatprep.subr.mxu0 %v1907
    %2145 = vmatpush2.msra.mxu0 %v1906
    %2146 = vmatprep.subr.mxu0 %v1901
    %2147 = vmatpush2.msra.mxu0 %v1900
    %2148 = vmatprep.subr.mxu0 %v1895
    %2149 = vmatpush2.msra.mxu0 %v1894
    %2150 = vmatprep.subr.mxu0 %v1889
    %2151 = vmatpush2.msra.mxu0 %v1888
    %2152 = vmatprep.mubr.f32.mxu0 %v1598
    %2153 = vmatmul.mubr.f32.gmra.mxu0 %v1597
    %v2154 = vpop.f32.mrf.mxu0
    %v2155 = vadd.f32 %v2084, %v2154
    %v2156 = vpop.f32.mrf.mxu0
    %v2157 = vadd.f32 %v2086, %v2156
    %2158 = vdwg.mxu0
    %2159 = vmatprep.subr.mxu0 %v1693
    %2160 = vmatpush1.msra.mxu0 %v1692
    %2161 = vmatprep.subr.mxu0 %v1687
    %2162 = vmatpush1.msra.mxu0 %v1686
    %2163 = vmatprep.subr.mxu0 %v1681
    %2164 = vmatpush1.msra.mxu0 %v1680
    %2165 = vmatprep.subr.mxu0 %v1675
    %2166 = vmatpush1.msra.mxu0 %v1674
    %2167 = vmatprep.subr.mxu0 %v1669
    %2168 = vmatpush1.msra.mxu0 %v1668
    %2169 = vmatprep.subr.mxu0 %v1663
    %2170 = vmatpush1.msra.mxu0 %v1662
    %2171 = vmatprep.subr.mxu0 %v1657
    %2172 = vmatpush1.msra.mxu0 %v1656
    %2173 = vmatprep.subr.mxu0 %v1651
    %2174 = vmatpush1.msra.mxu0 %v1650
    %2175 = vmatprep.subr.mxu0 %v1645
    %2176 = vmatpush1.msra.mxu0 %v1644
    %2177 = vmatprep.subr.mxu0 %v1639
    %2178 = vmatpush1.msra.mxu0 %v1638
    %2179 = vmatprep.subr.mxu0 %v1633
    %2180 = vmatpush1.msra.mxu0 %v1632
    %2181 = vmatprep.subr.mxu0 %v1627
    %2182 = vmatpush1.msra.mxu0 %v1626
    %2183 = vmatprep.subr.mxu0 %v1621
    %2184 = vmatpush1.msra.mxu0 %v1620
    %2185 = vmatprep.subr.mxu0 %v1615
    %2186 = vmatpush1.msra.mxu0 %v1614
    %2187 = vmatprep.subr.mxu0 %v1609
    %2188 = vmatpush1.msra.mxu0 %v1608
    %2189 = vmatprep.subr.mxu0 %v1603
    %2190 = vmatpush1.msra.mxu0 %v1602
    %2191 = vmatprep.subr.mxu0 %v1789
    %2192 = vmatpush2.msra.mxu0 %v1788
    %2193 = vmatprep.subr.mxu0 %v1783
    %2194 = vmatpush2.msra.mxu0 %v1782
    %2195 = vmatprep.subr.mxu0 %v1777
    %2196 = vmatpush2.msra.mxu0 %v1776
    %2197 = vmatprep.subr.mxu0 %v1771
    %2198 = vmatpush2.msra.mxu0 %v1770
    %2199 = vmatprep.subr.mxu0 %v1765
    %2200 = vmatpush2.msra.mxu0 %v1764
    %2201 = vmatprep.subr.mxu0 %v1759
    %2202 = vmatpush2.msra.mxu0 %v1758
    %2203 = vmatprep.subr.mxu0 %v1753
    %2204 = vmatpush2.msra.mxu0 %v1752
    %2205 = vmatprep.subr.mxu0 %v1747
    %2206 = vmatpush2.msra.mxu0 %v1746
    %2207 = vmatprep.subr.mxu0 %v1741
    %2208 = vmatpush2.msra.mxu0 %v1740
    %2209 = vmatprep.subr.mxu0 %v1735
    %2210 = vmatpush2.msra.mxu0 %v1734
    %2211 = vmatprep.subr.mxu0 %v1729
    %2212 = vmatpush2.msra.mxu0 %v1728
    %2213 = vmatprep.subr.mxu0 %v1723
    %2214 = vmatpush2.msra.mxu0 %v1722
    %2215 = vmatprep.subr.mxu0 %v1717
    %2216 = vmatpush2.msra.mxu0 %v1716
    %2217 = vmatprep.subr.mxu0 %v1711
    %2218 = vmatpush2.msra.mxu0 %v1710
    %2219 = vmatprep.subr.mxu0 %v1705
    %2220 = vmatpush2.msra.mxu0 %v1704
    %2221 = vmatprep.subr.mxu0 %v1699
    %2222 = vmatpush2.msra.mxu0 %v1698
    %2223 = vmatprep.mubr.f32.mxu0 %v1596
    %2224 = vmatmul.mubr.f32.gmra.mxu0 %v1595
    %v2225 = vpop.f32.mrf.mxu0
    %v2226 = vadd.f32 %v1998, %v2225
    %v2227 = vpop.f32.mrf.mxu0
    %v2228 = vadd.f32 %v2002, %v2227
    %2229 = vdwg.mxu0
    %2230 = vmatprep.subr.mxu0 %v1885
    %2231 = vmatpush1.msra.mxu0 %v1884
    %2232 = vmatprep.subr.mxu0 %v1879
    %2233 = vmatpush1.msra.mxu0 %v1878
    %2234 = vmatprep.subr.mxu0 %v1873
    %2235 = vmatpush1.msra.mxu0 %v1872
    %2236 = vmatprep.subr.mxu0 %v1867
    %2237 = vmatpush1.msra.mxu0 %v1866
    %2238 = vmatprep.subr.mxu0 %v1861
    %2239 = vmatpush1.msra.mxu0 %v1860
    %2240 = vmatprep.subr.mxu0 %v1855
    %2241 = vmatpush1.msra.mxu0 %v1854
    %2242 = vmatprep.subr.mxu0 %v1849
    %2243 = vmatpush1.msra.mxu0 %v1848
    %2244 = vmatprep.subr.mxu0 %v1843
    %2245 = vmatpush1.msra.mxu0 %v1842
    %2246 = vmatprep.subr.mxu0 %v1837
    %2247 = vmatpush1.msra.mxu0 %v1836
    %2248 = vmatprep.subr.mxu0 %v1831
    %2249 = vmatpush1.msra.mxu0 %v1830
    %2250 = vmatprep.subr.mxu0 %v1825
    %2251 = vmatpush1.msra.mxu0 %v1824
    %2252 = vmatprep.subr.mxu0 %v1819
    %2253 = vmatpush1.msra.mxu0 %v1818
    %2254 = vmatprep.subr.mxu0 %v1813
    %2255 = vmatpush1.msra.mxu0 %v1812
    %2256 = vmatprep.subr.mxu0 %v1807
    %2257 = vmatpush1.msra.mxu0 %v1806
    %2258 = vmatprep.subr.mxu0 %v1801
    %2259 = vmatpush1.msra.mxu0 %v1800
    %2260 = vmatprep.subr.mxu0 %v1795
    %2261 = vmatpush1.msra.mxu0 %v1794
    %2262 = vmatprep.subr.mxu0 %v1981
    %2263 = vmatpush2.msra.mxu0 %v1980
    %2264 = vmatprep.subr.mxu0 %v1975
    %2265 = vmatpush2.msra.mxu0 %v1974
    %2266 = vmatprep.subr.mxu0 %v1969
    %2267 = vmatpush2.msra.mxu0 %v1968
    %2268 = vmatprep.subr.mxu0 %v1963
    %2269 = vmatpush2.msra.mxu0 %v1962
    %2270 = vmatprep.subr.mxu0 %v1957
    %2271 = vmatpush2.msra.mxu0 %v1956
    %2272 = vmatprep.subr.mxu0 %v1951
    %2273 = vmatpush2.msra.mxu0 %v1950
    %2274 = vmatprep.subr.mxu0 %v1945
    %2275 = vmatpush2.msra.mxu0 %v1944
    %2276 = vmatprep.subr.mxu0 %v1939
    %2277 = vmatpush2.msra.mxu0 %v1938
    %2278 = vmatprep.subr.mxu0 %v1933
    %2279 = vmatpush2.msra.mxu0 %v1932
    %2280 = vmatprep.subr.mxu0 %v1927
    %2281 = vmatpush2.msra.mxu0 %v1926
    %2282 = vmatprep.subr.mxu0 %v1921
    %2283 = vmatpush2.msra.mxu0 %v1920
    %2284 = vmatprep.subr.mxu0 %v1915
    %2285 = vmatpush2.msra.mxu0 %v1914
    %2286 = vmatprep.subr.mxu0 %v1909
    %2287 = vmatpush2.msra.mxu0 %v1908
    %2288 = vmatprep.subr.mxu0 %v1903
    %2289 = vmatpush2.msra.mxu0 %v1902
    %2290 = vmatprep.subr.mxu0 %v1897
    %2291 = vmatpush2.msra.mxu0 %v1896
    %2292 = vmatprep.subr.mxu0 %v1891
    %2293 = vmatpush2.msra.mxu0 %v1890
    %2294 = vmatprep.mubr.f32.mxu0 %v1598
    %2295 = vmatmul.mubr.f32.gmra.mxu0 %v1597
    %v2296 = vpop.f32.mrf.mxu0
    %v2297 = vadd.f32 %v2226, %v2296
    %v2298 = vpop.f32.mrf.mxu0
    %v2299 = vadd.f32 %v2228, %v2298
    %2300 = vdwg.mxu0
    %2301 = vmatprep.subr.mxu0 %v1695
    %2302 = vmatpush1.msra.mxu0 %v1694
    %2303 = vmatprep.subr.mxu0 %v1689
    %2304 = vmatpush1.msra.mxu0 %v1688
    %2305 = vmatprep.subr.mxu0 %v1683
    %2306 = vmatpush1.msra.mxu0 %v1682
    %2307 = vmatprep.subr.mxu0 %v1677
    %2308 = vmatpush1.msra.mxu0 %v1676
    %2309 = vmatprep.subr.mxu0 %v1671
    %2310 = vmatpush1.msra.mxu0 %v1670
    %2311 = vmatprep.subr.mxu0 %v1665
    %2312 = vmatpush1.msra.mxu0 %v1664
    %2313 = vmatprep.subr.mxu0 %v1659
    %2314 = vmatpush1.msra.mxu0 %v1658
    %2315 = vmatprep.subr.mxu0 %v1653
    %2316 = vmatpush1.msra.mxu0 %v1652
    %2317 = vmatprep.subr.mxu0 %v1647
    %2318 = vmatpush1.msra.mxu0 %v1646
    %2319 = vmatprep.subr.mxu0 %v1641
    %2320 = vmatpush1.msra.mxu0 %v1640
    %2321 = vmatprep.subr.mxu0 %v1635
    %2322 = vmatpush1.msra.mxu0 %v1634
    %2323 = vmatprep.subr.mxu0 %v1629
    %2324 = vmatpush1.msra.mxu0 %v1628
    %2325 = vmatprep.subr.mxu0 %v1623
    %2326 = vmatpush1.msra.mxu0 %v1622
    %2327 = vmatprep.subr.mxu0 %v1617
    %2328 = vmatpush1.msra.mxu0 %v1616
    %2329 = vmatprep.subr.mxu0 %v1611
    %2330 = vmatpush1.msra.mxu0 %v1610
    %2331 = vmatprep.subr.mxu0 %v1605
    %2332 = vmatpush1.msra.mxu0 %v1604
    %2333 = vmatprep.subr.mxu0 %v1791
    %2334 = vmatpush2.msra.mxu0 %v1790
    %2335 = vmatprep.subr.mxu0 %v1785
    %2336 = vmatpush2.msra.mxu0 %v1784
    %2337 = vmatprep.subr.mxu0 %v1779
    %2338 = vmatpush2.msra.mxu0 %v1778
    %2339 = vmatprep.subr.mxu0 %v1773
    %2340 = vmatpush2.msra.mxu0 %v1772
    %2341 = vmatprep.subr.mxu0 %v1767
    %2342 = vmatpush2.msra.mxu0 %v1766
    %2343 = vmatprep.subr.mxu0 %v1761
    %2344 = vmatpush2.msra.mxu0 %v1760
    %2345 = vmatprep.subr.mxu0 %v1755
    %2346 = vmatpush2.msra.mxu0 %v1754
    %2347 = vmatprep.subr.mxu0 %v1749
    %2348 = vmatpush2.msra.mxu0 %v1748
    %2349 = vmatprep.subr.mxu0 %v1743
    %2350 = vmatpush2.msra.mxu0 %v1742
    %2351 = vmatprep.subr.mxu0 %v1737
    %2352 = vmatpush2.msra.mxu0 %v1736
    %2353 = vmatprep.subr.mxu0 %v1731
    %2354 = vmatpush2.msra.mxu0 %v1730
    %2355 = vmatprep.subr.mxu0 %v1725
    %2356 = vmatpush2.msra.mxu0 %v1724
    %2357 = vmatprep.subr.mxu0 %v1719
    %2358 = vmatpush2.msra.mxu0 %v1718
    %2359 = vmatprep.subr.mxu0 %v1713
    %2360 = vmatpush2.msra.mxu0 %v1712
    %2361 = vmatprep.subr.mxu0 %v1707
    %2362 = vmatpush2.msra.mxu0 %v1706
    %2363 = vmatprep.subr.mxu0 %v1701
    %2364 = vmatpush2.msra.mxu0 %v1700
    %2365 = vmatprep.mubr.f32.mxu0 %v1596
    %2366 = vmatmul.mubr.f32.gmra.mxu0 %v1595
    %v2367 = vpop.f32.mrf.mxu0
    %v2368 = vadd.f32 %v2006, %v2367
    %v2369 = vpop.f32.mrf.mxu0
    %v2370 = vadd.f32 %v2010, %v2369
    %2371 = vdwg.mxu0
    %2372 = vmatprep.subr.mxu0 %v1887
    %2373 = vmatpush1.msra.mxu0 %v1886
    %2374 = vmatprep.subr.mxu0 %v1881
    %2375 = vmatpush1.msra.mxu0 %v1880
    %2376 = vmatprep.subr.mxu0 %v1875
    %2377 = vmatpush1.msra.mxu0 %v1874
    %2378 = vmatprep.subr.mxu0 %v1869
    %2379 = vmatpush1.msra.mxu0 %v1868
    %2380 = vmatprep.subr.mxu0 %v1863
    %2381 = vmatpush1.msra.mxu0 %v1862
    %2382 = vmatprep.subr.mxu0 %v1857
    %2383 = vmatpush1.msra.mxu0 %v1856
    %2384 = vmatprep.subr.mxu0 %v1851
    %2385 = vmatpush1.msra.mxu0 %v1850
    %2386 = vmatprep.subr.mxu0 %v1845
    %2387 = vmatpush1.msra.mxu0 %v1844
    %2388 = vmatprep.subr.mxu0 %v1839
    %2389 = vmatpush1.msra.mxu0 %v1838
    %2390 = vmatprep.subr.mxu0 %v1833
    %2391 = vmatpush1.msra.mxu0 %v1832
    %2392 = vmatprep.subr.mxu0 %v1827
    %2393 = vmatpush1.msra.mxu0 %v1826
    %2394 = vmatprep.subr.mxu0 %v1821
    %2395 = vmatpush1.msra.mxu0 %v1820
    %2396 = vmatprep.subr.mxu0 %v1815
    %2397 = vmatpush1.msra.mxu0 %v1814
    %2398 = vmatprep.subr.mxu0 %v1809
    %2399 = vmatpush1.msra.mxu0 %v1808
    %2400 = vmatprep.subr.mxu0 %v1803
    %2401 = vmatpush1.msra.mxu0 %v1802
    %2402 = vmatprep.subr.mxu0 %v1797
    %2403 = vmatpush1.msra.mxu0 %v1796
    %2404 = vmatprep.subr.mxu0 %v1983
    %2405 = vmatpush2.msra.mxu0 %v1982
    %2406 = vmatprep.subr.mxu0 %v1977
    %2407 = vmatpush2.msra.mxu0 %v1976
    %2408 = vmatprep.subr.mxu0 %v1971
    %2409 = vmatpush2.msra.mxu0 %v1970
    %2410 = vmatprep.subr.mxu0 %v1965
    %2411 = vmatpush2.msra.mxu0 %v1964
    %2412 = vmatprep.subr.mxu0 %v1959
    %2413 = vmatpush2.msra.mxu0 %v1958
    %2414 = vmatprep.subr.mxu0 %v1953
    %2415 = vmatpush2.msra.mxu0 %v1952
    %2416 = vmatprep.subr.mxu0 %v1947
    %2417 = vmatpush2.msra.mxu0 %v1946
    %2418 = vmatprep.subr.mxu0 %v1941
    %2419 = vmatpush2.msra.mxu0 %v1940
    %2420 = vmatprep.subr.mxu0 %v1935
    %2421 = vmatpush2.msra.mxu0 %v1934
    %2422 = vmatprep.subr.mxu0 %v1929
    %2423 = vmatpush2.msra.mxu0 %v1928
    %2424 = vmatprep.subr.mxu0 %v1923
    %2425 = vmatpush2.msra.mxu0 %v1922
    %2426 = vmatprep.subr.mxu0 %v1917
    %2427 = vmatpush2.msra.mxu0 %v1916
    %2428 = vmatprep.subr.mxu0 %v1911
    %2429 = vmatpush2.msra.mxu0 %v1910
    %2430 = vmatprep.subr.mxu0 %v1905
    %2431 = vmatpush2.msra.mxu0 %v1904
    %2432 = vmatprep.subr.mxu0 %v1899
    %2433 = vmatpush2.msra.mxu0 %v1898
    %2434 = vmatprep.subr.mxu0 %v1893
    %2435 = vmatpush2.msra.mxu0 %v1892
    %2436 = vmatprep.mubr.f32.mxu0 %v1598
    %2437 = vmatmul.mubr.f32.gmra.mxu0 %v1597
    %v2438 = vpop.f32.mrf.mxu0
    %v2439 = vadd.f32 %v2368, %v2438
    %v2440 = vpop.f32.mrf.mxu0
    %v2441 = vadd.f32 %v2370, %v2440
    %2442 = vdwg.mxu0
    %v2443 = vmax.f32 %v2155, 0.0
    %v2444 = vmax.f32 %v2157, 0.0
    %v2445 = vmax.f32 %v2297, 0.0
    %v2446 = vmax.f32 %v2299, 0.0
    %v2447 = vmax.f32 %v2439, 0.0
    %v2448 = vmax.f32 %v2441, 0.0
    %v2449 = vadd.f32 %v2443, %v2445
    %v2450 = vadd.f32 %v2444, %v2446
    %v2451 = vadd.f32 %v2449, %v2447
    %v2452 = vadd.f32 %v2450, %v2448
    %s2453 = scalar_lea.vmem [#allocation5], 2048
    %v2454 = vld [vmem:[%s2453] sm:$0xff]
    %v2455 = vld [vmem:[%s2453 + $0x8] sm:$0xff]
    %v2456 = vld [vmem:[%s2453 + $0x10] sm:$0xff]
    %v2457 = vld [vmem:[%s2453 + $0x18] sm:$0xff]
    %v2458 = vld [vmem:[%s2453 + $0x20] sm:$0xff]
    %v2459 = vld [vmem:[%s2453 + $0x28] sm:$0xff]
    %v2460 = vld [vmem:[%s2453 + $0x30] sm:$0xff]
    %v2461 = vld [vmem:[%s2453 + $0x38] sm:$0xff]
    %v2462 = vld [vmem:[%s2453 + $0x40] sm:$0xff]
    %v2463 = vld [vmem:[%s2453 + $0x48] sm:$0xff]
    %v2464 = vld [vmem:[%s2453 + $0x50] sm:$0xff]
    %v2465 = vld [vmem:[%s2453 + $0x58] sm:$0xff]
    %v2466 = vld [vmem:[%s2453 + $0x60] sm:$0xff]
    %v2467 = vld [vmem:[%s2453 + $0x68] sm:$0xff]
    %v2468 = vld [vmem:[%s2453 + $0x70] sm:$0xff]
    %v2469 = vld [vmem:[%s2453 + $0x78] sm:$0xff]
    %v2470 = vld [vmem:[%s2453 + $0x80] sm:$0xff]
    %v2471 = vld [vmem:[%s2453 + $0x88] sm:$0xff]
    %v2472 = vld [vmem:[%s2453 + $0x90] sm:$0xff]
    %v2473 = vld [vmem:[%s2453 + $0x98] sm:$0xff]
    %v2474 = vld [vmem:[%s2453 + $0xa0] sm:$0xff]
    %v2475 = vld [vmem:[%s2453 + $0xa8] sm:$0xff]
    %v2476 = vld [vmem:[%s2453 + $0xb0] sm:$0xff]
    %v2477 = vld [vmem:[%s2453 + $0xb8] sm:$0xff]
    %v2478 = vld [vmem:[%s2453 + $0xc0] sm:$0xff]
    %v2479 = vld [vmem:[%s2453 + $0xc8] sm:$0xff]
    %v2480 = vld [vmem:[%s2453 + $0xd0] sm:$0xff]
    %v2481 = vld [vmem:[%s2453 + $0xd8] sm:$0xff]
    %v2482 = vld [vmem:[%s2453 + $0xe0] sm:$0xff]
    %v2483 = vld [vmem:[%s2453 + $0xe8] sm:$0xff]
    %v2484 = vld [vmem:[%s2453 + $0xf0] sm:$0xff]
    %v2485 = vld [vmem:[%s2453 + $0xf8] sm:$0xff]
    %v2486 = vld [vmem:[%s2453 + $0x100] sm:$0xff]
    %v2487 = vld [vmem:[%s2453 + $0x108] sm:$0xff]
    %v2488 = vld [vmem:[%s2453 + $0x110] sm:$0xff]
    %v2489 = vld [vmem:[%s2453 + $0x118] sm:$0xff]
    %v2490 = vld [vmem:[%s2453 + $0x120] sm:$0xff]
    %v2491 = vld [vmem:[%s2453 + $0x128] sm:$0xff]
    %v2492 = vld [vmem:[%s2453 + $0x130] sm:$0xff]
    %v2493 = vld [vmem:[%s2453 + $0x138] sm:$0xff]
    %v2494 = vld [vmem:[%s2453 + $0x140] sm:$0xff]
    %v2495 = vld [vmem:[%s2453 + $0x148] sm:$0xff]
    %v2496 = vld [vmem:[%s2453 + $0x150] sm:$0xff]
    %v2497 = vld [vmem:[%s2453 + $0x158] sm:$0xff]
    %v2498 = vld [vmem:[%s2453 + $0x160] sm:$0xff]
    %v2499 = vld [vmem:[%s2453 + $0x168] sm:$0xff]
    %v2500 = vld [vmem:[%s2453 + $0x170] sm:$0xff]
    %v2501 = vld [vmem:[%s2453 + $0x178] sm:$0xff]
    %v2502 = vld [vmem:[%s2453 + $0x180] sm:$0xff]
    %v2503 = vld [vmem:[%s2453 + $0x188] sm:$0xff]
    %v2504 = vld [vmem:[%s2453 + $0x190] sm:$0xff]
    %v2505 = vld [vmem:[%s2453 + $0x198] sm:$0xff]
    %v2506 = vld [vmem:[%s2453 + $0x1a0] sm:$0xff]
    %v2507 = vld [vmem:[%s2453 + $0x1a8] sm:$0xff]
    %v2508 = vld [vmem:[%s2453 + $0x1b0] sm:$0xff]
    %v2509 = vld [vmem:[%s2453 + $0x1b8] sm:$0xff]
    %v2510 = vld [vmem:[%s2453 + $0x1c0] sm:$0xff]
    %v2511 = vld [vmem:[%s2453 + $0x1c8] sm:$0xff]
    %v2512 = vld [vmem:[%s2453 + $0x1d0] sm:$0xff]
    %v2513 = vld [vmem:[%s2453 + $0x1d8] sm:$0xff]
    %v2514 = vld [vmem:[%s2453 + $0x1e0] sm:$0xff]
    %v2515 = vld [vmem:[%s2453 + $0x1e8] sm:$0xff]
    %v2516 = vld [vmem:[%s2453 + $0x1f0] sm:$0xff]
    %v2517 = vld [vmem:[%s2453 + $0x1f8] sm:$0xff]
    %v2518 = vld [vmem:[%s2453 + $0x200] sm:$0xff]
    %v2519 = vld [vmem:[%s2453 + $0x208] sm:$0xff]
    %v2520 = vld [vmem:[%s2453 + $0x210] sm:$0xff]
    %v2521 = vld [vmem:[%s2453 + $0x218] sm:$0xff]
    %v2522 = vld [vmem:[%s2453 + $0x220] sm:$0xff]
    %v2523 = vld [vmem:[%s2453 + $0x228] sm:$0xff]
    %v2524 = vld [vmem:[%s2453 + $0x230] sm:$0xff]
    %v2525 = vld [vmem:[%s2453 + $0x238] sm:$0xff]
    %v2526 = vld [vmem:[%s2453 + $0x240] sm:$0xff]
    %v2527 = vld [vmem:[%s2453 + $0x248] sm:$0xff]
    %v2528 = vld [vmem:[%s2453 + $0x250] sm:$0xff]
    %v2529 = vld [vmem:[%s2453 + $0x258] sm:$0xff]
    %v2530 = vld [vmem:[%s2453 + $0x260] sm:$0xff]
    %v2531 = vld [vmem:[%s2453 + $0x268] sm:$0xff]
    %v2532 = vld [vmem:[%s2453 + $0x270] sm:$0xff]
    %v2533 = vld [vmem:[%s2453 + $0x278] sm:$0xff]
    %v2534 = vld [vmem:[%s2453 + $0x280] sm:$0xff]
    %v2535 = vld [vmem:[%s2453 + $0x288] sm:$0xff]
    %v2536 = vld [vmem:[%s2453 + $0x290] sm:$0xff]
    %v2537 = vld [vmem:[%s2453 + $0x298] sm:$0xff]
    %v2538 = vld [vmem:[%s2453 + $0x2a0] sm:$0xff]
    %v2539 = vld [vmem:[%s2453 + $0x2a8] sm:$0xff]
    %v2540 = vld [vmem:[%s2453 + $0x2b0] sm:$0xff]
    %v2541 = vld [vmem:[%s2453 + $0x2b8] sm:$0xff]
    %v2542 = vld [vmem:[%s2453 + $0x2c0] sm:$0xff]
    %v2543 = vld [vmem:[%s2453 + $0x2c8] sm:$0xff]
    %v2544 = vld [vmem:[%s2453 + $0x2d0] sm:$0xff]
    %v2545 = vld [vmem:[%s2453 + $0x2d8] sm:$0xff]
    %v2546 = vld [vmem:[%s2453 + $0x2e0] sm:$0xff]
    %v2547 = vld [vmem:[%s2453 + $0x2e8] sm:$0xff]
    %v2548 = vld [vmem:[%s2453 + $0x2f0] sm:$0xff]
    %v2549 = vld [vmem:[%s2453 + $0x2f8] sm:$0xff]
    %v2550 = vld [vmem:[%s2453 + $0x300] sm:$0xff]
    %v2551 = vld [vmem:[%s2453 + $0x308] sm:$0xff]
    %v2552 = vld [vmem:[%s2453 + $0x310] sm:$0xff]
    %v2553 = vld [vmem:[%s2453 + $0x318] sm:$0xff]
    %v2554 = vld [vmem:[%s2453 + $0x320] sm:$0xff]
    %v2555 = vld [vmem:[%s2453 + $0x328] sm:$0xff]
    %v2556 = vld [vmem:[%s2453 + $0x330] sm:$0xff]
    %v2557 = vld [vmem:[%s2453 + $0x338] sm:$0xff]
    %v2558 = vld [vmem:[%s2453 + $0x340] sm:$0xff]
    %v2559 = vld [vmem:[%s2453 + $0x348] sm:$0xff]
    %v2560 = vld [vmem:[%s2453 + $0x350] sm:$0xff]
    %v2561 = vld [vmem:[%s2453 + $0x358] sm:$0xff]
    %v2562 = vld [vmem:[%s2453 + $0x360] sm:$0xff]
    %v2563 = vld [vmem:[%s2453 + $0x368] sm:$0xff]
    %v2564 = vld [vmem:[%s2453 + $0x370] sm:$0xff]
    %v2565 = vld [vmem:[%s2453 + $0x378] sm:$0xff]
    %v2566 = vld [vmem:[%s2453 + $0x380] sm:$0xff]
    %v2567 = vld [vmem:[%s2453 + $0x388] sm:$0xff]
    %v2568 = vld [vmem:[%s2453 + $0x390] sm:$0xff]
    %v2569 = vld [vmem:[%s2453 + $0x398] sm:$0xff]
    %v2570 = vld [vmem:[%s2453 + $0x3a0] sm:$0xff]
    %v2571 = vld [vmem:[%s2453 + $0x3a8] sm:$0xff]
    %v2572 = vld [vmem:[%s2453 + $0x3b0] sm:$0xff]
    %v2573 = vld [vmem:[%s2453 + $0x3b8] sm:$0xff]
    %v2574 = vld [vmem:[%s2453 + $0x3c0] sm:$0xff]
    %v2575 = vld [vmem:[%s2453 + $0x3c8] sm:$0xff]
    %v2576 = vld [vmem:[%s2453 + $0x3d0] sm:$0xff]
    %v2577 = vld [vmem:[%s2453 + $0x3d8] sm:$0xff]
    %v2578 = vld [vmem:[%s2453 + $0x3e0] sm:$0xff]
    %v2579 = vld [vmem:[%s2453 + $0x3e8] sm:$0xff]
    %v2580 = vld [vmem:[%s2453 + $0x3f0] sm:$0xff]
    %v2581 = vld [vmem:[%s2453 + $0x3f8] sm:$0xff]
    %s2582 = scalar_lea.vmem [#allocation7], 8
    %v2583 = vld [vmem:[%s2582] sm:$0xf]
    %v2585 = vlaneseq
    %v2586 = vshrl.u32 %v2585, 7
    %v2587 = vsub.s32 0, %v2586
    %v2588 = vrot.slane %v2583, %v2587
    %v2589 = vlaneseq
    %v2590 = vshrl.u32 %v2589, 7
    %v2591 = vsub.s32 1, %v2590
    %v2592 = vrot.slane %v2583, %v2591
    %v2593 = vlaneseq
    %v2594 = vshrl.u32 %v2593, 7
    %v2595 = vsub.s32 2, %v2594
    %v2596 = vrot.slane %v2583, %v2595
    %v2597 = vlaneseq
    %v2598 = vshrl.u32 %v2597, 7
    %v2599 = vsub.s32 3, %v2598
    %v2600 = vrot.slane %v2583, %v2599
    %2605 = vmatprep.subr.mxu0 %v2515
    %2606 = vmatpush1.msra.mxu0 %v2514
    %2607 = vmatprep.subr.mxu0 %v2511
    %2608 = vmatpush1.msra.mxu0 %v2510
    %2609 = vmatprep.subr.mxu0 %v2507
    %2610 = vmatpush1.msra.mxu0 %v2506
    %2611 = vmatprep.subr.mxu0 %v2503
    %2612 = vmatpush1.msra.mxu0 %v2502
    %2613 = vmatprep.subr.mxu0 %v2499
    %2614 = vmatpush1.msra.mxu0 %v2498
    %2615 = vmatprep.subr.mxu0 %v2495
    %2616 = vmatpush1.msra.mxu0 %v2494
    %2617 = vmatprep.subr.mxu0 %v2491
    %2618 = vmatpush1.msra.mxu0 %v2490
    %2619 = vmatprep.subr.mxu0 %v2487
    %2620 = vmatpush1.msra.mxu0 %v2486
    %2621 = vmatprep.subr.mxu0 %v2483
    %2622 = vmatpush1.msra.mxu0 %v2482
    %2623 = vmatprep.subr.mxu0 %v2479
    %2624 = vmatpush1.msra.mxu0 %v2478
    %2625 = vmatprep.subr.mxu0 %v2475
    %2626 = vmatpush1.msra.mxu0 %v2474
    %2627 = vmatprep.subr.mxu0 %v2471
    %2628 = vmatpush1.msra.mxu0 %v2470
    %2629 = vmatprep.subr.mxu0 %v2467
    %2630 = vmatpush1.msra.mxu0 %v2466
    %2631 = vmatprep.subr.mxu0 %v2463
    %2632 = vmatpush1.msra.mxu0 %v2462
    %2633 = vmatprep.subr.mxu0 %v2459
    %2634 = vmatpush1.msra.mxu0 %v2458
    %2635 = vmatprep.subr.mxu0 %v2455
    %2636 = vmatpush1.msra.mxu0 %v2454
    %2637 = vmatprep.subr.mxu0 %v2579
    %2638 = vmatpush2.msra.mxu0 %v2578
    %2639 = vmatprep.subr.mxu0 %v2575
    %2640 = vmatpush2.msra.mxu0 %v2574
    %2641 = vmatprep.subr.mxu0 %v2571
    %2642 = vmatpush2.msra.mxu0 %v2570
    %2643 = vmatprep.subr.mxu0 %v2567
    %2644 = vmatpush2.msra.mxu0 %v2566
    %2645 = vmatprep.subr.mxu0 %v2563
    %2646 = vmatpush2.msra.mxu0 %v2562
    %2647 = vmatprep.subr.mxu0 %v2559
    %2648 = vmatpush2.msra.mxu0 %v2558
    %2649 = vmatprep.subr.mxu0 %v2555
    %2650 = vmatpush2.msra.mxu0 %v2554
    %2651 = vmatprep.subr.mxu0 %v2551
    %2652 = vmatpush2.msra.mxu0 %v2550
    %2653 = vmatprep.subr.mxu0 %v2547
    %2654 = vmatpush2.msra.mxu0 %v2546
    %2655 = vmatprep.subr.mxu0 %v2543
    %2656 = vmatpush2.msra.mxu0 %v2542
    %2657 = vmatprep.subr.mxu0 %v2539
    %2658 = vmatpush2.msra.mxu0 %v2538
    %2659 = vmatprep.subr.mxu0 %v2535
    %2660 = vmatpush2.msra.mxu0 %v2534
    %2661 = vmatprep.subr.mxu0 %v2531
    %2662 = vmatpush2.msra.mxu0 %v2530
    %2663 = vmatprep.subr.mxu0 %v2527
    %2664 = vmatpush2.msra.mxu0 %v2526
    %2665 = vmatprep.subr.mxu0 %v2523
    %2666 = vmatpush2.msra.mxu0 %v2522
    %2667 = vmatprep.subr.mxu0 %v2519
    %2668 = vmatpush2.msra.mxu0 %v2518
    %2669 = vmatprep.mubr.f32.mxu0 %v2452
    %2670 = vmatmul.mubr.f32.gmra.mxu0 %v2451
    %v2671 = vpop.f32.mrf.mxu0
    %v2672 = vadd.f32 %v2588, %v2671
    %v2673 = vpop.f32.mrf.mxu0
    %v2674 = vadd.f32 %v2592, %v2673
    %2675 = vdwg.mxu0
    %2676 = vmatprep.subr.mxu0 %v2517
    %2677 = vmatpush1.msra.mxu0 %v2516
    %2678 = vmatprep.subr.mxu0 %v2513
    %2679 = vmatpush1.msra.mxu0 %v2512
    %2680 = vmatprep.subr.mxu0 %v2509
    %2681 = vmatpush1.msra.mxu0 %v2508
    %2682 = vmatprep.subr.mxu0 %v2505
    %2683 = vmatpush1.msra.mxu0 %v2504
    %2684 = vmatprep.subr.mxu0 %v2501
    %2685 = vmatpush1.msra.mxu0 %v2500
    %2686 = vmatprep.subr.mxu0 %v2497
    %2687 = vmatpush1.msra.mxu0 %v2496
    %2688 = vmatprep.subr.mxu0 %v2493
    %2689 = vmatpush1.msra.mxu0 %v2492
    %2690 = vmatprep.subr.mxu0 %v2489
    %2691 = vmatpush1.msra.mxu0 %v2488
    %2692 = vmatprep.subr.mxu0 %v2485
    %2693 = vmatpush1.msra.mxu0 %v2484
    %2694 = vmatprep.subr.mxu0 %v2481
    %2695 = vmatpush1.msra.mxu0 %v2480
    %2696 = vmatprep.subr.mxu0 %v2477
    %2697 = vmatpush1.msra.mxu0 %v2476
    %2698 = vmatprep.subr.mxu0 %v2473
    %2699 = vmatpush1.msra.mxu0 %v2472
    %2700 = vmatprep.subr.mxu0 %v2469
    %2701 = vmatpush1.msra.mxu0 %v2468
    %2702 = vmatprep.subr.mxu0 %v2465
    %2703 = vmatpush1.msra.mxu0 %v2464
    %2704 = vmatprep.subr.mxu0 %v2461
    %2705 = vmatpush1.msra.mxu0 %v2460
    %2706 = vmatprep.subr.mxu0 %v2457
    %2707 = vmatpush1.msra.mxu0 %v2456
    %2708 = vmatprep.subr.mxu0 %v2581
    %2709 = vmatpush2.msra.mxu0 %v2580
    %2710 = vmatprep.subr.mxu0 %v2577
    %2711 = vmatpush2.msra.mxu0 %v2576
    %2712 = vmatprep.subr.mxu0 %v2573
    %2713 = vmatpush2.msra.mxu0 %v2572
    %2714 = vmatprep.subr.mxu0 %v2569
    %2715 = vmatpush2.msra.mxu0 %v2568
    %2716 = vmatprep.subr.mxu0 %v2565
    %2717 = vmatpush2.msra.mxu0 %v2564
    %2718 = vmatprep.subr.mxu0 %v2561
    %2719 = vmatpush2.msra.mxu0 %v2560
    %2720 = vmatprep.subr.mxu0 %v2557
    %2721 = vmatpush2.msra.mxu0 %v2556
    %2722 = vmatprep.subr.mxu0 %v2553
    %2723 = vmatpush2.msra.mxu0 %v2552
    %2724 = vmatprep.subr.mxu0 %v2549
    %2725 = vmatpush2.msra.mxu0 %v2548
    %2726 = vmatprep.subr.mxu0 %v2545
    %2727 = vmatpush2.msra.mxu0 %v2544
    %2728 = vmatprep.subr.mxu0 %v2541
    %2729 = vmatpush2.msra.mxu0 %v2540
    %2730 = vmatprep.subr.mxu0 %v2537
    %2731 = vmatpush2.msra.mxu0 %v2536
    %2732 = vmatprep.subr.mxu0 %v2533
    %2733 = vmatpush2.msra.mxu0 %v2532
    %2734 = vmatprep.subr.mxu0 %v2529
    %2735 = vmatpush2.msra.mxu0 %v2528
    %2736 = vmatprep.subr.mxu0 %v2525
    %2737 = vmatpush2.msra.mxu0 %v2524
    %2738 = vmatprep.subr.mxu0 %v2521
    %2739 = vmatpush2.msra.mxu0 %v2520
    %2740 = vmatprep.mubr.f32.mxu0 %v2452
    %2741 = vmatmul.mubr.f32.gmra.mxu0 %v2451
    %v2742 = vpop.f32.mrf.mxu0
    %v2743 = vadd.f32 %v2596, %v2742
    %v2744 = vpop.f32.mrf.mxu0
    %v2745 = vadd.f32 %v2600, %v2744
    %2746 = vdwg.mxu0
    %v2747 = vmax.f32 %v2672, 0.0
    %v2748 = vmax.f32 %v2674, 0.0
    %v2749 = vmax.f32 %v2743, 0.0
    %v2750 = vmax.f32 %v2745, 0.0
    %s2751 = scalar_lea.vmem [#allocation8], 6144
    %v2752 = vld [vmem:[%s2751] sm:$0xff]
    %v2753 = vld [vmem:[%s2751 + $0x8] sm:$0xff]
    %v2754 = vld [vmem:[%s2751 + $0x10] sm:$0xff]
    %v2755 = vld [vmem:[%s2751 + $0x18] sm:$0xff]
    %v2756 = vld [vmem:[%s2751 + $0x20] sm:$0xff]
    %v2757 = vld [vmem:[%s2751 + $0x28] sm:$0xff]
    %v2758 = vld [vmem:[%s2751 + $0x30] sm:$0xff]
    %v2759 = vld [vmem:[%s2751 + $0x38] sm:$0xff]
    %v2760 = vld [vmem:[%s2751 + $0x40] sm:$0xff]
    %v2761 = vld [vmem:[%s2751 + $0x48] sm:$0xff]
    %v2762 = vld [vmem:[%s2751 + $0x50] sm:$0xff]
    %v2763 = vld [vmem:[%s2751 + $0x58] sm:$0xff]
    %v2764 = vld [vmem:[%s2751 + $0x60] sm:$0xff]
    %v2765 = vld [vmem:[%s2751 + $0x68] sm:$0xff]
    %v2766 = vld [vmem:[%s2751 + $0x70] sm:$0xff]
    %v2767 = vld [vmem:[%s2751 + $0x78] sm:$0xff]
    %v2768 = vld [vmem:[%s2751 + $0x80] sm:$0xff]
    %v2769 = vld [vmem:[%s2751 + $0x88] sm:$0xff]
    %v2770 = vld [vmem:[%s2751 + $0x90] sm:$0xff]
    %v2771 = vld [vmem:[%s2751 + $0x98] sm:$0xff]
    %v2772 = vld [vmem:[%s2751 + $0xa0] sm:$0xff]
    %v2773 = vld [vmem:[%s2751 + $0xa8] sm:$0xff]
    %v2774 = vld [vmem:[%s2751 + $0xb0] sm:$0xff]
    %v2775 = vld [vmem:[%s2751 + $0xb8] sm:$0xff]
    %v2776 = vld [vmem:[%s2751 + $0xc0] sm:$0xff]
    %v2777 = vld [vmem:[%s2751 + $0xc8] sm:$0xff]
    %v2778 = vld [vmem:[%s2751 + $0xd0] sm:$0xff]
    %v2779 = vld [vmem:[%s2751 + $0xd8] sm:$0xff]
    %v2780 = vld [vmem:[%s2751 + $0xe0] sm:$0xff]
    %v2781 = vld [vmem:[%s2751 + $0xe8] sm:$0xff]
    %v2782 = vld [vmem:[%s2751 + $0xf0] sm:$0xff]
    %v2783 = vld [vmem:[%s2751 + $0xf8] sm:$0xff]
    %v2784 = vld [vmem:[%s2751 + $0x100] sm:$0xff]
    %v2785 = vld [vmem:[%s2751 + $0x108] sm:$0xff]
    %v2786 = vld [vmem:[%s2751 + $0x110] sm:$0xff]
    %v2787 = vld [vmem:[%s2751 + $0x118] sm:$0xff]
    %v2788 = vld [vmem:[%s2751 + $0x120] sm:$0xff]
    %v2789 = vld [vmem:[%s2751 + $0x128] sm:$0xff]
    %v2790 = vld [vmem:[%s2751 + $0x130] sm:$0xff]
    %v2791 = vld [vmem:[%s2751 + $0x138] sm:$0xff]
    %v2792 = vld [vmem:[%s2751 + $0x140] sm:$0xff]
    %v2793 = vld [vmem:[%s2751 + $0x148] sm:$0xff]
    %v2794 = vld [vmem:[%s2751 + $0x150] sm:$0xff]
    %v2795 = vld [vmem:[%s2751 + $0x158] sm:$0xff]
    %v2796 = vld [vmem:[%s2751 + $0x160] sm:$0xff]
    %v2797 = vld [vmem:[%s2751 + $0x168] sm:$0xff]
    %v2798 = vld [vmem:[%s2751 + $0x170] sm:$0xff]
    %v2799 = vld [vmem:[%s2751 + $0x178] sm:$0xff]
    %v2800 = vld [vmem:[%s2751 + $0x180] sm:$0xff]
    %v2801 = vld [vmem:[%s2751 + $0x188] sm:$0xff]
    %v2802 = vld [vmem:[%s2751 + $0x190] sm:$0xff]
    %v2803 = vld [vmem:[%s2751 + $0x198] sm:$0xff]
    %v2804 = vld [vmem:[%s2751 + $0x1a0] sm:$0xff]
    %v2805 = vld [vmem:[%s2751 + $0x1a8] sm:$0xff]
    %v2806 = vld [vmem:[%s2751 + $0x1b0] sm:$0xff]
    %v2807 = vld [vmem:[%s2751 + $0x1b8] sm:$0xff]
    %v2808 = vld [vmem:[%s2751 + $0x1c0] sm:$0xff]
    %v2809 = vld [vmem:[%s2751 + $0x1c8] sm:$0xff]
    %v2810 = vld [vmem:[%s2751 + $0x1d0] sm:$0xff]
    %v2811 = vld [vmem:[%s2751 + $0x1d8] sm:$0xff]
    %v2812 = vld [vmem:[%s2751 + $0x1e0] sm:$0xff]
    %v2813 = vld [vmem:[%s2751 + $0x1e8] sm:$0xff]
    %v2814 = vld [vmem:[%s2751 + $0x1f0] sm:$0xff]
    %v2815 = vld [vmem:[%s2751 + $0x1f8] sm:$0xff]
    %v2816 = vld [vmem:[%s2751 + $0x200] sm:$0xff]
    %v2817 = vld [vmem:[%s2751 + $0x208] sm:$0xff]
    %v2818 = vld [vmem:[%s2751 + $0x210] sm:$0xff]
    %v2819 = vld [vmem:[%s2751 + $0x218] sm:$0xff]
    %v2820 = vld [vmem:[%s2751 + $0x220] sm:$0xff]
    %v2821 = vld [vmem:[%s2751 + $0x228] sm:$0xff]
    %v2822 = vld [vmem:[%s2751 + $0x230] sm:$0xff]
    %v2823 = vld [vmem:[%s2751 + $0x238] sm:$0xff]
    %v2824 = vld [vmem:[%s2751 + $0x240] sm:$0xff]
    %v2825 = vld [vmem:[%s2751 + $0x248] sm:$0xff]
    %v2826 = vld [vmem:[%s2751 + $0x250] sm:$0xff]
    %v2827 = vld [vmem:[%s2751 + $0x258] sm:$0xff]
    %v2828 = vld [vmem:[%s2751 + $0x260] sm:$0xff]
    %v2829 = vld [vmem:[%s2751 + $0x268] sm:$0xff]
    %v2830 = vld [vmem:[%s2751 + $0x270] sm:$0xff]
    %v2831 = vld [vmem:[%s2751 + $0x278] sm:$0xff]
    %v2832 = vld [vmem:[%s2751 + $0x280] sm:$0xff]
    %v2833 = vld [vmem:[%s2751 + $0x288] sm:$0xff]
    %v2834 = vld [vmem:[%s2751 + $0x290] sm:$0xff]
    %v2835 = vld [vmem:[%s2751 + $0x298] sm:$0xff]
    %v2836 = vld [vmem:[%s2751 + $0x2a0] sm:$0xff]
    %v2837 = vld [vmem:[%s2751 + $0x2a8] sm:$0xff]
    %v2838 = vld [vmem:[%s2751 + $0x2b0] sm:$0xff]
    %v2839 = vld [vmem:[%s2751 + $0x2b8] sm:$0xff]
    %v2840 = vld [vmem:[%s2751 + $0x2c0] sm:$0xff]
    %v2841 = vld [vmem:[%s2751 + $0x2c8] sm:$0xff]
    %v2842 = vld [vmem:[%s2751 + $0x2d0] sm:$0xff]
    %v2843 = vld [vmem:[%s2751 + $0x2d8] sm:$0xff]
    %v2844 = vld [vmem:[%s2751 + $0x2e0] sm:$0xff]
    %v2845 = vld [vmem:[%s2751 + $0x2e8] sm:$0xff]
    %v2846 = vld [vmem:[%s2751 + $0x2f0] sm:$0xff]
    %v2847 = vld [vmem:[%s2751 + $0x2f8] sm:$0xff]
    %v2848 = vld [vmem:[%s2751 + $0x300] sm:$0xff]
    %v2849 = vld [vmem:[%s2751 + $0x308] sm:$0xff]
    %v2850 = vld [vmem:[%s2751 + $0x310] sm:$0xff]
    %v2851 = vld [vmem:[%s2751 + $0x318] sm:$0xff]
    %v2852 = vld [vmem:[%s2751 + $0x320] sm:$0xff]
    %v2853 = vld [vmem:[%s2751 + $0x328] sm:$0xff]
    %v2854 = vld [vmem:[%s2751 + $0x330] sm:$0xff]
    %v2855 = vld [vmem:[%s2751 + $0x338] sm:$0xff]
    %v2856 = vld [vmem:[%s2751 + $0x340] sm:$0xff]
    %v2857 = vld [vmem:[%s2751 + $0x348] sm:$0xff]
    %v2858 = vld [vmem:[%s2751 + $0x350] sm:$0xff]
    %v2859 = vld [vmem:[%s2751 + $0x358] sm:$0xff]
    %v2860 = vld [vmem:[%s2751 + $0x360] sm:$0xff]
    %v2861 = vld [vmem:[%s2751 + $0x368] sm:$0xff]
    %v2862 = vld [vmem:[%s2751 + $0x370] sm:$0xff]
    %v2863 = vld [vmem:[%s2751 + $0x378] sm:$0xff]
    %v2864 = vld [vmem:[%s2751 + $0x380] sm:$0xff]
    %v2865 = vld [vmem:[%s2751 + $0x388] sm:$0xff]
    %v2866 = vld [vmem:[%s2751 + $0x390] sm:$0xff]
    %v2867 = vld [vmem:[%s2751 + $0x398] sm:$0xff]
    %v2868 = vld [vmem:[%s2751 + $0x3a0] sm:$0xff]
    %v2869 = vld [vmem:[%s2751 + $0x3a8] sm:$0xff]
    %v2870 = vld [vmem:[%s2751 + $0x3b0] sm:$0xff]
    %v2871 = vld [vmem:[%s2751 + $0x3b8] sm:$0xff]
    %v2872 = vld [vmem:[%s2751 + $0x3c0] sm:$0xff]
    %v2873 = vld [vmem:[%s2751 + $0x3c8] sm:$0xff]
    %v2874 = vld [vmem:[%s2751 + $0x3d0] sm:$0xff]
    %v2875 = vld [vmem:[%s2751 + $0x3d8] sm:$0xff]
    %v2876 = vld [vmem:[%s2751 + $0x3e0] sm:$0xff]
    %v2877 = vld [vmem:[%s2751 + $0x3e8] sm:$0xff]
    %v2878 = vld [vmem:[%s2751 + $0x3f0] sm:$0xff]
    %v2879 = vld [vmem:[%s2751 + $0x3f8] sm:$0xff]
    %v2880 = vld [vmem:[%s2751 + $0x400] sm:$0xff]
    %v2881 = vld [vmem:[%s2751 + $0x408] sm:$0xff]
    %v2882 = vld [vmem:[%s2751 + $0x410] sm:$0xff]
    %v2883 = vld [vmem:[%s2751 + $0x418] sm:$0xff]
    %v2884 = vld [vmem:[%s2751 + $0x420] sm:$0xff]
    %v2885 = vld [vmem:[%s2751 + $0x428] sm:$0xff]
    %v2886 = vld [vmem:[%s2751 + $0x430] sm:$0xff]
    %v2887 = vld [vmem:[%s2751 + $0x438] sm:$0xff]
    %v2888 = vld [vmem:[%s2751 + $0x440] sm:$0xff]
    %v2889 = vld [vmem:[%s2751 + $0x448] sm:$0xff]
    %v2890 = vld [vmem:[%s2751 + $0x450] sm:$0xff]
    %v2891 = vld [vmem:[%s2751 + $0x458] sm:$0xff]
    %v2892 = vld [vmem:[%s2751 + $0x460] sm:$0xff]
    %v2893 = vld [vmem:[%s2751 + $0x468] sm:$0xff]
    %v2894 = vld [vmem:[%s2751 + $0x470] sm:$0xff]
    %v2895 = vld [vmem:[%s2751 + $0x478] sm:$0xff]
    %v2896 = vld [vmem:[%s2751 + $0x480] sm:$0xff]
    %v2897 = vld [vmem:[%s2751 + $0x488] sm:$0xff]
    %v2898 = vld [vmem:[%s2751 + $0x490] sm:$0xff]
    %v2899 = vld [vmem:[%s2751 + $0x498] sm:$0xff]
    %v2900 = vld [vmem:[%s2751 + $0x4a0] sm:$0xff]
    %v2901 = vld [vmem:[%s2751 + $0x4a8] sm:$0xff]
    %v2902 = vld [vmem:[%s2751 + $0x4b0] sm:$0xff]
    %v2903 = vld [vmem:[%s2751 + $0x4b8] sm:$0xff]
    %v2904 = vld [vmem:[%s2751 + $0x4c0] sm:$0xff]
    %v2905 = vld [vmem:[%s2751 + $0x4c8] sm:$0xff]
    %v2906 = vld [vmem:[%s2751 + $0x4d0] sm:$0xff]
    %v2907 = vld [vmem:[%s2751 + $0x4d8] sm:$0xff]
    %v2908 = vld [vmem:[%s2751 + $0x4e0] sm:$0xff]
    %v2909 = vld [vmem:[%s2751 + $0x4e8] sm:$0xff]
    %v2910 = vld [vmem:[%s2751 + $0x4f0] sm:$0xff]
    %v2911 = vld [vmem:[%s2751 + $0x4f8] sm:$0xff]
    %v2912 = vld [vmem:[%s2751 + $0x500] sm:$0xff]
    %v2913 = vld [vmem:[%s2751 + $0x508] sm:$0xff]
    %v2914 = vld [vmem:[%s2751 + $0x510] sm:$0xff]
    %v2915 = vld [vmem:[%s2751 + $0x518] sm:$0xff]
    %v2916 = vld [vmem:[%s2751 + $0x520] sm:$0xff]
    %v2917 = vld [vmem:[%s2751 + $0x528] sm:$0xff]
    %v2918 = vld [vmem:[%s2751 + $0x530] sm:$0xff]
    %v2919 = vld [vmem:[%s2751 + $0x538] sm:$0xff]
    %v2920 = vld [vmem:[%s2751 + $0x540] sm:$0xff]
    %v2921 = vld [vmem:[%s2751 + $0x548] sm:$0xff]
    %v2922 = vld [vmem:[%s2751 + $0x550] sm:$0xff]
    %v2923 = vld [vmem:[%s2751 + $0x558] sm:$0xff]
    %v2924 = vld [vmem:[%s2751 + $0x560] sm:$0xff]
    %v2925 = vld [vmem:[%s2751 + $0x568] sm:$0xff]
    %v2926 = vld [vmem:[%s2751 + $0x570] sm:$0xff]
    %v2927 = vld [vmem:[%s2751 + $0x578] sm:$0xff]
    %v2928 = vld [vmem:[%s2751 + $0x580] sm:$0xff]
    %v2929 = vld [vmem:[%s2751 + $0x588] sm:$0xff]
    %v2930 = vld [vmem:[%s2751 + $0x590] sm:$0xff]
    %v2931 = vld [vmem:[%s2751 + $0x598] sm:$0xff]
    %v2932 = vld [vmem:[%s2751 + $0x5a0] sm:$0xff]
    %v2933 = vld [vmem:[%s2751 + $0x5a8] sm:$0xff]
    %v2934 = vld [vmem:[%s2751 + $0x5b0] sm:$0xff]
    %v2935 = vld [vmem:[%s2751 + $0x5b8] sm:$0xff]
    %v2936 = vld [vmem:[%s2751 + $0x5c0] sm:$0xff]
    %v2937 = vld [vmem:[%s2751 + $0x5c8] sm:$0xff]
    %v2938 = vld [vmem:[%s2751 + $0x5d0] sm:$0xff]
    %v2939 = vld [vmem:[%s2751 + $0x5d8] sm:$0xff]
    %v2940 = vld [vmem:[%s2751 + $0x5e0] sm:$0xff]
    %v2941 = vld [vmem:[%s2751 + $0x5e8] sm:$0xff]
    %v2942 = vld [vmem:[%s2751 + $0x5f0] sm:$0xff]
    %v2943 = vld [vmem:[%s2751 + $0x5f8] sm:$0xff]
    %v2944 = vld [vmem:[%s2751 + $0x600] sm:$0xff]
    %v2945 = vld [vmem:[%s2751 + $0x608] sm:$0xff]
    %v2946 = vld [vmem:[%s2751 + $0x610] sm:$0xff]
    %v2947 = vld [vmem:[%s2751 + $0x618] sm:$0xff]
    %v2948 = vld [vmem:[%s2751 + $0x620] sm:$0xff]
    %v2949 = vld [vmem:[%s2751 + $0x628] sm:$0xff]
    %v2950 = vld [vmem:[%s2751 + $0x630] sm:$0xff]
    %v2951 = vld [vmem:[%s2751 + $0x638] sm:$0xff]
    %v2952 = vld [vmem:[%s2751 + $0x640] sm:$0xff]
    %v2953 = vld [vmem:[%s2751 + $0x648] sm:$0xff]
    %v2954 = vld [vmem:[%s2751 + $0x650] sm:$0xff]
    %v2955 = vld [vmem:[%s2751 + $0x658] sm:$0xff]
    %v2956 = vld [vmem:[%s2751 + $0x660] sm:$0xff]
    %v2957 = vld [vmem:[%s2751 + $0x668] sm:$0xff]
    %v2958 = vld [vmem:[%s2751 + $0x670] sm:$0xff]
    %v2959 = vld [vmem:[%s2751 + $0x678] sm:$0xff]
    %v2960 = vld [vmem:[%s2751 + $0x680] sm:$0xff]
    %v2961 = vld [vmem:[%s2751 + $0x688] sm:$0xff]
    %v2962 = vld [vmem:[%s2751 + $0x690] sm:$0xff]
    %v2963 = vld [vmem:[%s2751 + $0x698] sm:$0xff]
    %v2964 = vld [vmem:[%s2751 + $0x6a0] sm:$0xff]
    %v2965 = vld [vmem:[%s2751 + $0x6a8] sm:$0xff]
    %v2966 = vld [vmem:[%s2751 + $0x6b0] sm:$0xff]
    %v2967 = vld [vmem:[%s2751 + $0x6b8] sm:$0xff]
    %v2968 = vld [vmem:[%s2751 + $0x6c0] sm:$0xff]
    %v2969 = vld [vmem:[%s2751 + $0x6c8] sm:$0xff]
    %v2970 = vld [vmem:[%s2751 + $0x6d0] sm:$0xff]
    %v2971 = vld [vmem:[%s2751 + $0x6d8] sm:$0xff]
    %v2972 = vld [vmem:[%s2751 + $0x6e0] sm:$0xff]
    %v2973 = vld [vmem:[%s2751 + $0x6e8] sm:$0xff]
    %v2974 = vld [vmem:[%s2751 + $0x6f0] sm:$0xff]
    %v2975 = vld [vmem:[%s2751 + $0x6f8] sm:$0xff]
    %v2976 = vld [vmem:[%s2751 + $0x700] sm:$0xff]
    %v2977 = vld [vmem:[%s2751 + $0x708] sm:$0xff]
    %v2978 = vld [vmem:[%s2751 + $0x710] sm:$0xff]
    %v2979 = vld [vmem:[%s2751 + $0x718] sm:$0xff]
    %v2980 = vld [vmem:[%s2751 + $0x720] sm:$0xff]
    %v2981 = vld [vmem:[%s2751 + $0x728] sm:$0xff]
    %v2982 = vld [vmem:[%s2751 + $0x730] sm:$0xff]
    %v2983 = vld [vmem:[%s2751 + $0x738] sm:$0xff]
    %v2984 = vld [vmem:[%s2751 + $0x740] sm:$0xff]
    %v2985 = vld [vmem:[%s2751 + $0x748] sm:$0xff]
    %v2986 = vld [vmem:[%s2751 + $0x750] sm:$0xff]
    %v2987 = vld [vmem:[%s2751 + $0x758] sm:$0xff]
    %v2988 = vld [vmem:[%s2751 + $0x760] sm:$0xff]
    %v2989 = vld [vmem:[%s2751 + $0x768] sm:$0xff]
    %v2990 = vld [vmem:[%s2751 + $0x770] sm:$0xff]
    %v2991 = vld [vmem:[%s2751 + $0x778] sm:$0xff]
    %v2992 = vld [vmem:[%s2751 + $0x780] sm:$0xff]
    %v2993 = vld [vmem:[%s2751 + $0x788] sm:$0xff]
    %v2994 = vld [vmem:[%s2751 + $0x790] sm:$0xff]
    %v2995 = vld [vmem:[%s2751 + $0x798] sm:$0xff]
    %v2996 = vld [vmem:[%s2751 + $0x7a0] sm:$0xff]
    %v2997 = vld [vmem:[%s2751 + $0x7a8] sm:$0xff]
    %v2998 = vld [vmem:[%s2751 + $0x7b0] sm:$0xff]
    %v2999 = vld [vmem:[%s2751 + $0x7b8] sm:$0xff]
    %v3000 = vld [vmem:[%s2751 + $0x7c0] sm:$0xff]
    %v3001 = vld [vmem:[%s2751 + $0x7c8] sm:$0xff]
    %v3002 = vld [vmem:[%s2751 + $0x7d0] sm:$0xff]
    %v3003 = vld [vmem:[%s2751 + $0x7d8] sm:$0xff]
    %v3004 = vld [vmem:[%s2751 + $0x7e0] sm:$0xff]
    %v3005 = vld [vmem:[%s2751 + $0x7e8] sm:$0xff]
    %v3006 = vld [vmem:[%s2751 + $0x7f0] sm:$0xff]
    %v3007 = vld [vmem:[%s2751 + $0x7f8] sm:$0xff]
    %v3008 = vld [vmem:[%s2751 + $0x800] sm:$0xff]
    %v3009 = vld [vmem:[%s2751 + $0x808] sm:$0xff]
    %v3010 = vld [vmem:[%s2751 + $0x810] sm:$0xff]
    %v3011 = vld [vmem:[%s2751 + $0x818] sm:$0xff]
    %v3012 = vld [vmem:[%s2751 + $0x820] sm:$0xff]
    %v3013 = vld [vmem:[%s2751 + $0x828] sm:$0xff]
    %v3014 = vld [vmem:[%s2751 + $0x830] sm:$0xff]
    %v3015 = vld [vmem:[%s2751 + $0x838] sm:$0xff]
    %v3016 = vld [vmem:[%s2751 + $0x840] sm:$0xff]
    %v3017 = vld [vmem:[%s2751 + $0x848] sm:$0xff]
    %v3018 = vld [vmem:[%s2751 + $0x850] sm:$0xff]
    %v3019 = vld [vmem:[%s2751 + $0x858] sm:$0xff]
    %v3020 = vld [vmem:[%s2751 + $0x860] sm:$0xff]
    %v3021 = vld [vmem:[%s2751 + $0x868] sm:$0xff]
    %v3022 = vld [vmem:[%s2751 + $0x870] sm:$0xff]
    %v3023 = vld [vmem:[%s2751 + $0x878] sm:$0xff]
    %v3024 = vld [vmem:[%s2751 + $0x880] sm:$0xff]
    %v3025 = vld [vmem:[%s2751 + $0x888] sm:$0xff]
    %v3026 = vld [vmem:[%s2751 + $0x890] sm:$0xff]
    %v3027 = vld [vmem:[%s2751 + $0x898] sm:$0xff]
    %v3028 = vld [vmem:[%s2751 + $0x8a0] sm:$0xff]
    %v3029 = vld [vmem:[%s2751 + $0x8a8] sm:$0xff]
    %v3030 = vld [vmem:[%s2751 + $0x8b0] sm:$0xff]
    %v3031 = vld [vmem:[%s2751 + $0x8b8] sm:$0xff]
    %v3032 = vld [vmem:[%s2751 + $0x8c0] sm:$0xff]
    %v3033 = vld [vmem:[%s2751 + $0x8c8] sm:$0xff]
    %v3034 = vld [vmem:[%s2751 + $0x8d0] sm:$0xff]
    %v3035 = vld [vmem:[%s2751 + $0x8d8] sm:$0xff]
    %v3036 = vld [vmem:[%s2751 + $0x8e0] sm:$0xff]
    %v3037 = vld [vmem:[%s2751 + $0x8e8] sm:$0xff]
    %v3038 = vld [vmem:[%s2751 + $0x8f0] sm:$0xff]
    %v3039 = vld [vmem:[%s2751 + $0x8f8] sm:$0xff]
    %v3040 = vld [vmem:[%s2751 + $0x900] sm:$0xff]
    %v3041 = vld [vmem:[%s2751 + $0x908] sm:$0xff]
    %v3042 = vld [vmem:[%s2751 + $0x910] sm:$0xff]
    %v3043 = vld [vmem:[%s2751 + $0x918] sm:$0xff]
    %v3044 = vld [vmem:[%s2751 + $0x920] sm:$0xff]
    %v3045 = vld [vmem:[%s2751 + $0x928] sm:$0xff]
    %v3046 = vld [vmem:[%s2751 + $0x930] sm:$0xff]
    %v3047 = vld [vmem:[%s2751 + $0x938] sm:$0xff]
    %v3048 = vld [vmem:[%s2751 + $0x940] sm:$0xff]
    %v3049 = vld [vmem:[%s2751 + $0x948] sm:$0xff]
    %v3050 = vld [vmem:[%s2751 + $0x950] sm:$0xff]
    %v3051 = vld [vmem:[%s2751 + $0x958] sm:$0xff]
    %v3052 = vld [vmem:[%s2751 + $0x960] sm:$0xff]
    %v3053 = vld [vmem:[%s2751 + $0x968] sm:$0xff]
    %v3054 = vld [vmem:[%s2751 + $0x970] sm:$0xff]
    %v3055 = vld [vmem:[%s2751 + $0x978] sm:$0xff]
    %v3056 = vld [vmem:[%s2751 + $0x980] sm:$0xff]
    %v3057 = vld [vmem:[%s2751 + $0x988] sm:$0xff]
    %v3058 = vld [vmem:[%s2751 + $0x990] sm:$0xff]
    %v3059 = vld [vmem:[%s2751 + $0x998] sm:$0xff]
    %v3060 = vld [vmem:[%s2751 + $0x9a0] sm:$0xff]
    %v3061 = vld [vmem:[%s2751 + $0x9a8] sm:$0xff]
    %v3062 = vld [vmem:[%s2751 + $0x9b0] sm:$0xff]
    %v3063 = vld [vmem:[%s2751 + $0x9b8] sm:$0xff]
    %v3064 = vld [vmem:[%s2751 + $0x9c0] sm:$0xff]
    %v3065 = vld [vmem:[%s2751 + $0x9c8] sm:$0xff]
    %v3066 = vld [vmem:[%s2751 + $0x9d0] sm:$0xff]
    %v3067 = vld [vmem:[%s2751 + $0x9d8] sm:$0xff]
    %v3068 = vld [vmem:[%s2751 + $0x9e0] sm:$0xff]
    %v3069 = vld [vmem:[%s2751 + $0x9e8] sm:$0xff]
    %v3070 = vld [vmem:[%s2751 + $0x9f0] sm:$0xff]
    %v3071 = vld [vmem:[%s2751 + $0x9f8] sm:$0xff]
    %v3072 = vld [vmem:[%s2751 + $0xa00] sm:$0xff]
    %v3073 = vld [vmem:[%s2751 + $0xa08] sm:$0xff]
    %v3074 = vld [vmem:[%s2751 + $0xa10] sm:$0xff]
    %v3075 = vld [vmem:[%s2751 + $0xa18] sm:$0xff]
    %v3076 = vld [vmem:[%s2751 + $0xa20] sm:$0xff]
    %v3077 = vld [vmem:[%s2751 + $0xa28] sm:$0xff]
    %v3078 = vld [vmem:[%s2751 + $0xa30] sm:$0xff]
    %v3079 = vld [vmem:[%s2751 + $0xa38] sm:$0xff]
    %v3080 = vld [vmem:[%s2751 + $0xa40] sm:$0xff]
    %v3081 = vld [vmem:[%s2751 + $0xa48] sm:$0xff]
    %v3082 = vld [vmem:[%s2751 + $0xa50] sm:$0xff]
    %v3083 = vld [vmem:[%s2751 + $0xa58] sm:$0xff]
    %v3084 = vld [vmem:[%s2751 + $0xa60] sm:$0xff]
    %v3085 = vld [vmem:[%s2751 + $0xa68] sm:$0xff]
    %v3086 = vld [vmem:[%s2751 + $0xa70] sm:$0xff]
    %v3087 = vld [vmem:[%s2751 + $0xa78] sm:$0xff]
    %v3088 = vld [vmem:[%s2751 + $0xa80] sm:$0xff]
    %v3089 = vld [vmem:[%s2751 + $0xa88] sm:$0xff]
    %v3090 = vld [vmem:[%s2751 + $0xa90] sm:$0xff]
    %v3091 = vld [vmem:[%s2751 + $0xa98] sm:$0xff]
    %v3092 = vld [vmem:[%s2751 + $0xaa0] sm:$0xff]
    %v3093 = vld [vmem:[%s2751 + $0xaa8] sm:$0xff]
    %v3094 = vld [vmem:[%s2751 + $0xab0] sm:$0xff]
    %v3095 = vld [vmem:[%s2751 + $0xab8] sm:$0xff]
    %v3096 = vld [vmem:[%s2751 + $0xac0] sm:$0xff]
    %v3097 = vld [vmem:[%s2751 + $0xac8] sm:$0xff]
    %v3098 = vld [vmem:[%s2751 + $0xad0] sm:$0xff]
    %v3099 = vld [vmem:[%s2751 + $0xad8] sm:$0xff]
    %v3100 = vld [vmem:[%s2751 + $0xae0] sm:$0xff]
    %v3101 = vld [vmem:[%s2751 + $0xae8] sm:$0xff]
    %v3102 = vld [vmem:[%s2751 + $0xaf0] sm:$0xff]
    %v3103 = vld [vmem:[%s2751 + $0xaf8] sm:$0xff]
    %v3104 = vld [vmem:[%s2751 + $0xb00] sm:$0xff]
    %v3105 = vld [vmem:[%s2751 + $0xb08] sm:$0xff]
    %v3106 = vld [vmem:[%s2751 + $0xb10] sm:$0xff]
    %v3107 = vld [vmem:[%s2751 + $0xb18] sm:$0xff]
    %v3108 = vld [vmem:[%s2751 + $0xb20] sm:$0xff]
    %v3109 = vld [vmem:[%s2751 + $0xb28] sm:$0xff]
    %v3110 = vld [vmem:[%s2751 + $0xb30] sm:$0xff]
    %v3111 = vld [vmem:[%s2751 + $0xb38] sm:$0xff]
    %v3112 = vld [vmem:[%s2751 + $0xb40] sm:$0xff]
    %v3113 = vld [vmem:[%s2751 + $0xb48] sm:$0xff]
    %v3114 = vld [vmem:[%s2751 + $0xb50] sm:$0xff]
    %v3115 = vld [vmem:[%s2751 + $0xb58] sm:$0xff]
    %v3116 = vld [vmem:[%s2751 + $0xb60] sm:$0xff]
    %v3117 = vld [vmem:[%s2751 + $0xb68] sm:$0xff]
    %v3118 = vld [vmem:[%s2751 + $0xb70] sm:$0xff]
    %v3119 = vld [vmem:[%s2751 + $0xb78] sm:$0xff]
    %v3120 = vld [vmem:[%s2751 + $0xb80] sm:$0xff]
    %v3121 = vld [vmem:[%s2751 + $0xb88] sm:$0xff]
    %v3122 = vld [vmem:[%s2751 + $0xb90] sm:$0xff]
    %v3123 = vld [vmem:[%s2751 + $0xb98] sm:$0xff]
    %v3124 = vld [vmem:[%s2751 + $0xba0] sm:$0xff]
    %v3125 = vld [vmem:[%s2751 + $0xba8] sm:$0xff]
    %v3126 = vld [vmem:[%s2751 + $0xbb0] sm:$0xff]
    %v3127 = vld [vmem:[%s2751 + $0xbb8] sm:$0xff]
    %v3128 = vld [vmem:[%s2751 + $0xbc0] sm:$0xff]
    %v3129 = vld [vmem:[%s2751 + $0xbc8] sm:$0xff]
    %v3130 = vld [vmem:[%s2751 + $0xbd0] sm:$0xff]
    %v3131 = vld [vmem:[%s2751 + $0xbd8] sm:$0xff]
    %v3132 = vld [vmem:[%s2751 + $0xbe0] sm:$0xff]
    %v3133 = vld [vmem:[%s2751 + $0xbe8] sm:$0xff]
    %v3134 = vld [vmem:[%s2751 + $0xbf0] sm:$0xff]
    %v3135 = vld [vmem:[%s2751 + $0xbf8] sm:$0xff]
    %s3136 = scalar_lea.vmem [#allocation10], 12
    %v3137 = vld [vmem:[%s3136] sm:$0x3f]
    %v3139 = vlaneseq
    %v3140 = vshrl.u32 %v3139, 7
    %v3141 = vsub.s32 0, %v3140
    %v3142 = vrot.slane %v3137, %v3141
    %v3143 = vlaneseq
    %v3144 = vshrl.u32 %v3143, 7
    %v3145 = vsub.s32 1, %v3144
    %v3146 = vrot.slane %v3137, %v3145
    %v3147 = vlaneseq
    %v3148 = vshrl.u32 %v3147, 7
    %v3149 = vsub.s32 2, %v3148
    %v3150 = vrot.slane %v3137, %v3149
    %v3151 = vlaneseq
    %v3152 = vshrl.u32 %v3151, 7
    %v3153 = vsub.s32 3, %v3152
    %v3154 = vrot.slane %v3137, %v3153
    %v3155 = vlaneseq
    %v3156 = vshrl.u32 %v3155, 7
    %v3157 = vsub.s32 4, %v3156
    %v3158 = vrot.slane %v3137, %v3157
    %v3159 = vlaneseq
    %v3160 = vshrl.u32 %v3159, 7
    %v3161 = vsub.s32 5, %v3160
    %v3162 = vrot.slane %v3137, %v3161
    %3169 = vmatprep.subr.mxu0 %v2843
    %3170 = vmatpush1.msra.mxu0 %v2842
    %3171 = vmatprep.subr.mxu0 %v2837
    %3172 = vmatpush1.msra.mxu0 %v2836
    %3173 = vmatprep.subr.mxu0 %v2831
    %3174 = vmatpush1.msra.mxu0 %v2830
    %3175 = vmatprep.subr.mxu0 %v2825
    %3176 = vmatpush1.msra.mxu0 %v2824
    %3177 = vmatprep.subr.mxu0 %v2819
    %3178 = vmatpush1.msra.mxu0 %v2818
    %3179 = vmatprep.subr.mxu0 %v2813
    %3180 = vmatpush1.msra.mxu0 %v2812
    %3181 = vmatprep.subr.mxu0 %v2807
    %3182 = vmatpush1.msra.mxu0 %v2806
    %3183 = vmatprep.subr.mxu0 %v2801
    %3184 = vmatpush1.msra.mxu0 %v2800
    %3185 = vmatprep.subr.mxu0 %v2795
    %3186 = vmatpush1.msra.mxu0 %v2794
    %3187 = vmatprep.subr.mxu0 %v2789
    %3188 = vmatpush1.msra.mxu0 %v2788
    %3189 = vmatprep.subr.mxu0 %v2783
    %3190 = vmatpush1.msra.mxu0 %v2782
    %3191 = vmatprep.subr.mxu0 %v2777
    %3192 = vmatpush1.msra.mxu0 %v2776
    %3193 = vmatprep.subr.mxu0 %v2771
    %3194 = vmatpush1.msra.mxu0 %v2770
    %3195 = vmatprep.subr.mxu0 %v2765
    %3196 = vmatpush1.msra.mxu0 %v2764
    %3197 = vmatprep.subr.mxu0 %v2759
    %3198 = vmatpush1.msra.mxu0 %v2758
    %3199 = vmatprep.subr.mxu0 %v2753
    %3200 = vmatpush1.msra.mxu0 %v2752
    %3201 = vmatprep.subr.mxu0 %v2939
    %3202 = vmatpush2.msra.mxu0 %v2938
    %3203 = vmatprep.subr.mxu0 %v2933
    %3204 = vmatpush2.msra.mxu0 %v2932
    %3205 = vmatprep.subr.mxu0 %v2927
    %3206 = vmatpush2.msra.mxu0 %v2926
    %3207 = vmatprep.subr.mxu0 %v2921
    %3208 = vmatpush2.msra.mxu0 %v2920
    %3209 = vmatprep.subr.mxu0 %v2915
    %3210 = vmatpush2.msra.mxu0 %v2914
    %3211 = vmatprep.subr.mxu0 %v2909
    %3212 = vmatpush2.msra.mxu0 %v2908
    %3213 = vmatprep.subr.mxu0 %v2903
    %3214 = vmatpush2.msra.mxu0 %v2902
    %3215 = vmatprep.subr.mxu0 %v2897
    %3216 = vmatpush2.msra.mxu0 %v2896
    %3217 = vmatprep.subr.mxu0 %v2891
    %3218 = vmatpush2.msra.mxu0 %v2890
    %3219 = vmatprep.subr.mxu0 %v2885
    %3220 = vmatpush2.msra.mxu0 %v2884
    %3221 = vmatprep.subr.mxu0 %v2879
    %3222 = vmatpush2.msra.mxu0 %v2878
    %3223 = vmatprep.subr.mxu0 %v2873
    %3224 = vmatpush2.msra.mxu0 %v2872
    %3225 = vmatprep.subr.mxu0 %v2867
    %3226 = vmatpush2.msra.mxu0 %v2866
    %3227 = vmatprep.subr.mxu0 %v2861
    %3228 = vmatpush2.msra.mxu0 %v2860
    %3229 = vmatprep.subr.mxu0 %v2855
    %3230 = vmatpush2.msra.mxu0 %v2854
    %3231 = vmatprep.subr.mxu0 %v2849
    %3232 = vmatpush2.msra.mxu0 %v2848
    %3233 = vmatprep.mubr.f32.mxu0 %v2748
    %3234 = vmatmul.mubr.f32.gmra.mxu0 %v2747
    %v3235 = vpop.f32.mrf.mxu0
    %v3236 = vadd.f32 %v3142, %v3235
    %v3237 = vpop.f32.mrf.mxu0
    %v3238 = vadd.f32 %v3146, %v3237
    %3239 = vdwg.mxu0
    %3240 = vmatprep.subr.mxu0 %v3035
    %3241 = vmatpush1.msra.mxu0 %v3034
    %3242 = vmatprep.subr.mxu0 %v3029
    %3243 = vmatpush1.msra.mxu0 %v3028
    %3244 = vmatprep.subr.mxu0 %v3023
    %3245 = vmatpush1.msra.mxu0 %v3022
    %3246 = vmatprep.subr.mxu0 %v3017
    %3247 = vmatpush1.msra.mxu0 %v3016
    %3248 = vmatprep.subr.mxu0 %v3011
    %3249 = vmatpush1.msra.mxu0 %v3010
    %3250 = vmatprep.subr.mxu0 %v3005
    %3251 = vmatpush1.msra.mxu0 %v3004
    %3252 = vmatprep.subr.mxu0 %v2999
    %3253 = vmatpush1.msra.mxu0 %v2998
    %3254 = vmatprep.subr.mxu0 %v2993
    %3255 = vmatpush1.msra.mxu0 %v2992
    %3256 = vmatprep.subr.mxu0 %v2987
    %3257 = vmatpush1.msra.mxu0 %v2986
    %3258 = vmatprep.subr.mxu0 %v2981
    %3259 = vmatpush1.msra.mxu0 %v2980
    %3260 = vmatprep.subr.mxu0 %v2975
    %3261 = vmatpush1.msra.mxu0 %v2974
    %3262 = vmatprep.subr.mxu0 %v2969
    %3263 = vmatpush1.msra.mxu0 %v2968
    %3264 = vmatprep.subr.mxu0 %v2963
    %3265 = vmatpush1.msra.mxu0 %v2962
    %3266 = vmatprep.subr.mxu0 %v2957
    %3267 = vmatpush1.msra.mxu0 %v2956
    %3268 = vmatprep.subr.mxu0 %v2951
    %3269 = vmatpush1.msra.mxu0 %v2950
    %3270 = vmatprep.subr.mxu0 %v2945
    %3271 = vmatpush1.msra.mxu0 %v2944
    %3272 = vmatprep.subr.mxu0 %v3131
    %3273 = vmatpush2.msra.mxu0 %v3130
    %3274 = vmatprep.subr.mxu0 %v3125
    %3275 = vmatpush2.msra.mxu0 %v3124
    %3276 = vmatprep.subr.mxu0 %v3119
    %3277 = vmatpush2.msra.mxu0 %v3118
    %3278 = vmatprep.subr.mxu0 %v3113
    %3279 = vmatpush2.msra.mxu0 %v3112
    %3280 = vmatprep.subr.mxu0 %v3107
    %3281 = vmatpush2.msra.mxu0 %v3106
    %3282 = vmatprep.subr.mxu0 %v3101
    %3283 = vmatpush2.msra.mxu0 %v3100
    %3284 = vmatprep.subr.mxu0 %v3095
    %3285 = vmatpush2.msra.mxu0 %v3094
    %3286 = vmatprep.subr.mxu0 %v3089
    %3287 = vmatpush2.msra.mxu0 %v3088
    %3288 = vmatprep.subr.mxu0 %v3083
    %3289 = vmatpush2.msra.mxu0 %v3082
    %3290 = vmatprep.subr.mxu0 %v3077
    %3291 = vmatpush2.msra.mxu0 %v3076
    %3292 = vmatprep.subr.mxu0 %v3071
    %3293 = vmatpush2.msra.mxu0 %v3070
    %3294 = vmatprep.subr.mxu0 %v3065
    %3295 = vmatpush2.msra.mxu0 %v3064
    %3296 = vmatprep.subr.mxu0 %v3059
    %3297 = vmatpush2.msra.mxu0 %v3058
    %3298 = vmatprep.subr.mxu0 %v3053
    %3299 = vmatpush2.msra.mxu0 %v3052
    %3300 = vmatprep.subr.mxu0 %v3047
    %3301 = vmatpush2.msra.mxu0 %v3046
    %3302 = vmatprep.subr.mxu0 %v3041
    %3303 = vmatpush2.msra.mxu0 %v3040
    %3304 = vmatprep.mubr.f32.mxu0 %v2750
    %3305 = vmatmul.mubr.f32.gmra.mxu0 %v2749
    %v3306 = vpop.f32.mrf.mxu0
    %v3307 = vadd.f32 %v3236, %v3306
    %v3308 = vpop.f32.mrf.mxu0
    %v3309 = vadd.f32 %v3238, %v3308
    %3310 = vdwg.mxu0
    %3311 = vmatprep.subr.mxu0 %v2845
    %3312 = vmatpush1.msra.mxu0 %v2844
    %3313 = vmatprep.subr.mxu0 %v2839
    %3314 = vmatpush1.msra.mxu0 %v2838
    %3315 = vmatprep.subr.mxu0 %v2833
    %3316 = vmatpush1.msra.mxu0 %v2832
    %3317 = vmatprep.subr.mxu0 %v2827
    %3318 = vmatpush1.msra.mxu0 %v2826
    %3319 = vmatprep.subr.mxu0 %v2821
    %3320 = vmatpush1.msra.mxu0 %v2820
    %3321 = vmatprep.subr.mxu0 %v2815
    %3322 = vmatpush1.msra.mxu0 %v2814
    %3323 = vmatprep.subr.mxu0 %v2809
    %3324 = vmatpush1.msra.mxu0 %v2808
    %3325 = vmatprep.subr.mxu0 %v2803
    %3326 = vmatpush1.msra.mxu0 %v2802
    %3327 = vmatprep.subr.mxu0 %v2797
    %3328 = vmatpush1.msra.mxu0 %v2796
    %3329 = vmatprep.subr.mxu0 %v2791
    %3330 = vmatpush1.msra.mxu0 %v2790
    %3331 = vmatprep.subr.mxu0 %v2785
    %3332 = vmatpush1.msra.mxu0 %v2784
    %3333 = vmatprep.subr.mxu0 %v2779
    %3334 = vmatpush1.msra.mxu0 %v2778
    %3335 = vmatprep.subr.mxu0 %v2773
    %3336 = vmatpush1.msra.mxu0 %v2772
    %3337 = vmatprep.subr.mxu0 %v2767
    %3338 = vmatpush1.msra.mxu0 %v2766
    %3339 = vmatprep.subr.mxu0 %v2761
    %3340 = vmatpush1.msra.mxu0 %v2760
    %3341 = vmatprep.subr.mxu0 %v2755
    %3342 = vmatpush1.msra.mxu0 %v2754
    %3343 = vmatprep.subr.mxu0 %v2941
    %3344 = vmatpush2.msra.mxu0 %v2940
    %3345 = vmatprep.subr.mxu0 %v2935
    %3346 = vmatpush2.msra.mxu0 %v2934
    %3347 = vmatprep.subr.mxu0 %v2929
    %3348 = vmatpush2.msra.mxu0 %v2928
    %3349 = vmatprep.subr.mxu0 %v2923
    %3350 = vmatpush2.msra.mxu0 %v2922
    %3351 = vmatprep.subr.mxu0 %v2917
    %3352 = vmatpush2.msra.mxu0 %v2916
    %3353 = vmatprep.subr.mxu0 %v2911
    %3354 = vmatpush2.msra.mxu0 %v2910
    %3355 = vmatprep.subr.mxu0 %v2905
    %3356 = vmatpush2.msra.mxu0 %v2904
    %3357 = vmatprep.subr.mxu0 %v2899
    %3358 = vmatpush2.msra.mxu0 %v2898
    %3359 = vmatprep.subr.mxu0 %v2893
    %3360 = vmatpush2.msra.mxu0 %v2892
    %3361 = vmatprep.subr.mxu0 %v2887
    %3362 = vmatpush2.msra.mxu0 %v2886
    %3363 = vmatprep.subr.mxu0 %v2881
    %3364 = vmatpush2.msra.mxu0 %v2880
    %3365 = vmatprep.subr.mxu0 %v2875
    %3366 = vmatpush2.msra.mxu0 %v2874
    %3367 = vmatprep.subr.mxu0 %v2869
    %3368 = vmatpush2.msra.mxu0 %v2868
    %3369 = vmatprep.subr.mxu0 %v2863
    %3370 = vmatpush2.msra.mxu0 %v2862
    %3371 = vmatprep.subr.mxu0 %v2857
    %3372 = vmatpush2.msra.mxu0 %v2856
    %3373 = vmatprep.subr.mxu0 %v2851
    %3374 = vmatpush2.msra.mxu0 %v2850
    %3375 = vmatprep.mubr.f32.mxu0 %v2748
    %3376 = vmatmul.mubr.f32.gmra.mxu0 %v2747
    %v3377 = vpop.f32.mrf.mxu0
    %v3378 = vadd.f32 %v3150, %v3377
    %v3379 = vpop.f32.mrf.mxu0
    %v3380 = vadd.f32 %v3154, %v3379
    %3381 = vdwg.mxu0
    %3382 = vmatprep.subr.mxu0 %v3037
    %3383 = vmatpush1.msra.mxu0 %v3036
    %3384 = vmatprep.subr.mxu0 %v3031
    %3385 = vmatpush1.msra.mxu0 %v3030
    %3386 = vmatprep.subr.mxu0 %v3025
    %3387 = vmatpush1.msra.mxu0 %v3024
    %3388 = vmatprep.subr.mxu0 %v3019
    %3389 = vmatpush1.msra.mxu0 %v3018
    %3390 = vmatprep.subr.mxu0 %v3013
    %3391 = vmatpush1.msra.mxu0 %v3012
    %3392 = vmatprep.subr.mxu0 %v3007
    %3393 = vmatpush1.msra.mxu0 %v3006
    %3394 = vmatprep.subr.mxu0 %v3001
    %3395 = vmatpush1.msra.mxu0 %v3000
    %3396 = vmatprep.subr.mxu0 %v2995
    %3397 = vmatpush1.msra.mxu0 %v2994
    %3398 = vmatprep.subr.mxu0 %v2989
    %3399 = vmatpush1.msra.mxu0 %v2988
    %3400 = vmatprep.subr.mxu0 %v2983
    %3401 = vmatpush1.msra.mxu0 %v2982
    %3402 = vmatprep.subr.mxu0 %v2977
    %3403 = vmatpush1.msra.mxu0 %v2976
    %3404 = vmatprep.subr.mxu0 %v2971
    %3405 = vmatpush1.msra.mxu0 %v2970
    %3406 = vmatprep.subr.mxu0 %v2965
    %3407 = vmatpush1.msra.mxu0 %v2964
    %3408 = vmatprep.subr.mxu0 %v2959
    %3409 = vmatpush1.msra.mxu0 %v2958
    %3410 = vmatprep.subr.mxu0 %v2953
    %3411 = vmatpush1.msra.mxu0 %v2952
    %3412 = vmatprep.subr.mxu0 %v2947
    %3413 = vmatpush1.msra.mxu0 %v2946
    %3414 = vmatprep.subr.mxu0 %v3133
    %3415 = vmatpush2.msra.mxu0 %v3132
    %3416 = vmatprep.subr.mxu0 %v3127
    %3417 = vmatpush2.msra.mxu0 %v3126
    %3418 = vmatprep.subr.mxu0 %v3121
    %3419 = vmatpush2.msra.mxu0 %v3120
    %3420 = vmatprep.subr.mxu0 %v3115
    %3421 = vmatpush2.msra.mxu0 %v3114
    %3422 = vmatprep.subr.mxu0 %v3109
    %3423 = vmatpush2.msra.mxu0 %v3108
    %3424 = vmatprep.subr.mxu0 %v3103
    %3425 = vmatpush2.msra.mxu0 %v3102
    %3426 = vmatprep.subr.mxu0 %v3097
    %3427 = vmatpush2.msra.mxu0 %v3096
    %3428 = vmatprep.subr.mxu0 %v3091
    %3429 = vmatpush2.msra.mxu0 %v3090
    %3430 = vmatprep.subr.mxu0 %v3085
    %3431 = vmatpush2.msra.mxu0 %v3084
    %3432 = vmatprep.subr.mxu0 %v3079
    %3433 = vmatpush2.msra.mxu0 %v3078
    %3434 = vmatprep.subr.mxu0 %v3073
    %3435 = vmatpush2.msra.mxu0 %v3072
    %3436 = vmatprep.subr.mxu0 %v3067
    %3437 = vmatpush2.msra.mxu0 %v3066
    %3438 = vmatprep.subr.mxu0 %v3061
    %3439 = vmatpush2.msra.mxu0 %v3060
    %3440 = vmatprep.subr.mxu0 %v3055
    %3441 = vmatpush2.msra.mxu0 %v3054
    %3442 = vmatprep.subr.mxu0 %v3049
    %3443 = vmatpush2.msra.mxu0 %v3048
    %3444 = vmatprep.subr.mxu0 %v3043
    %3445 = vmatpush2.msra.mxu0 %v3042
    %3446 = vmatprep.mubr.f32.mxu0 %v2750
    %3447 = vmatmul.mubr.f32.gmra.mxu0 %v2749
    %v3448 = vpop.f32.mrf.mxu0
    %v3449 = vadd.f32 %v3378, %v3448
    %v3450 = vpop.f32.mrf.mxu0
    %v3451 = vadd.f32 %v3380, %v3450
    %3452 = vdwg.mxu0
    %3453 = vmatprep.subr.mxu0 %v2847
    %3454 = vmatpush1.msra.mxu0 %v2846
    %3455 = vmatprep.subr.mxu0 %v2841
    %3456 = vmatpush1.msra.mxu0 %v2840
    %3457 = vmatprep.subr.mxu0 %v2835
    %3458 = vmatpush1.msra.mxu0 %v2834
    %3459 = vmatprep.subr.mxu0 %v2829
    %3460 = vmatpush1.msra.mxu0 %v2828
    %3461 = vmatprep.subr.mxu0 %v2823
    %3462 = vmatpush1.msra.mxu0 %v2822
    %3463 = vmatprep.subr.mxu0 %v2817
    %3464 = vmatpush1.msra.mxu0 %v2816
    %3465 = vmatprep.subr.mxu0 %v2811
    %3466 = vmatpush1.msra.mxu0 %v2810
    %3467 = vmatprep.subr.mxu0 %v2805
    %3468 = vmatpush1.msra.mxu0 %v2804
    %3469 = vmatprep.subr.mxu0 %v2799
    %3470 = vmatpush1.msra.mxu0 %v2798
    %3471 = vmatprep.subr.mxu0 %v2793
    %3472 = vmatpush1.msra.mxu0 %v2792
    %3473 = vmatprep.subr.mxu0 %v2787
    %3474 = vmatpush1.msra.mxu0 %v2786
    %3475 = vmatprep.subr.mxu0 %v2781
    %3476 = vmatpush1.msra.mxu0 %v2780
    %3477 = vmatprep.subr.mxu0 %v2775
    %3478 = vmatpush1.msra.mxu0 %v2774
    %3479 = vmatprep.subr.mxu0 %v2769
    %3480 = vmatpush1.msra.mxu0 %v2768
    %3481 = vmatprep.subr.mxu0 %v2763
    %3482 = vmatpush1.msra.mxu0 %v2762
    %3483 = vmatprep.subr.mxu0 %v2757
    %3484 = vmatpush1.msra.mxu0 %v2756
    %3485 = vmatprep.subr.mxu0 %v2943
    %3486 = vmatpush2.msra.mxu0 %v2942
    %3487 = vmatprep.subr.mxu0 %v2937
    %3488 = vmatpush2.msra.mxu0 %v2936
    %3489 = vmatprep.subr.mxu0 %v2931
    %3490 = vmatpush2.msra.mxu0 %v2930
    %3491 = vmatprep.subr.mxu0 %v2925
    %3492 = vmatpush2.msra.mxu0 %v2924
    %3493 = vmatprep.subr.mxu0 %v2919
    %3494 = vmatpush2.msra.mxu0 %v2918
    %3495 = vmatprep.subr.mxu0 %v2913
    %3496 = vmatpush2.msra.mxu0 %v2912
    %3497 = vmatprep.subr.mxu0 %v2907
    %3498 = vmatpush2.msra.mxu0 %v2906
    %3499 = vmatprep.subr.mxu0 %v2901
    %3500 = vmatpush2.msra.mxu0 %v2900
    %3501 = vmatprep.subr.mxu0 %v2895
    %3502 = vmatpush2.msra.mxu0 %v2894
    %3503 = vmatprep.subr.mxu0 %v2889
    %3504 = vmatpush2.msra.mxu0 %v2888
    %3505 = vmatprep.subr.mxu0 %v2883
    %3506 = vmatpush2.msra.mxu0 %v2882
    %3507 = vmatprep.subr.mxu0 %v2877
    %3508 = vmatpush2.msra.mxu0 %v2876
    %3509 = vmatprep.subr.mxu0 %v2871
    %3510 = vmatpush2.msra.mxu0 %v2870
    %3511 = vmatprep.subr.mxu0 %v2865
    %3512 = vmatpush2.msra.mxu0 %v2864
    %3513 = vmatprep.subr.mxu0 %v2859
    %3514 = vmatpush2.msra.mxu0 %v2858
    %3515 = vmatprep.subr.mxu0 %v2853
    %3516 = vmatpush2.msra.mxu0 %v2852
    %3517 = vmatprep.mubr.f32.mxu0 %v2748
    %3518 = vmatmul.mubr.f32.gmra.mxu0 %v2747
    %v3519 = vpop.f32.mrf.mxu0
    %v3520 = vadd.f32 %v3158, %v3519
    %v3521 = vpop.f32.mrf.mxu0
    %v3522 = vadd.f32 %v3162, %v3521
    %3523 = vdwg.mxu0
    %3524 = vmatprep.subr.mxu0 %v3039
    %3525 = vmatpush1.msra.mxu0 %v3038
    %3526 = vmatprep.subr.mxu0 %v3033
    %3527 = vmatpush1.msra.mxu0 %v3032
    %3528 = vmatprep.subr.mxu0 %v3027
    %3529 = vmatpush1.msra.mxu0 %v3026
    %3530 = vmatprep.subr.mxu0 %v3021
    %3531 = vmatpush1.msra.mxu0 %v3020
    %3532 = vmatprep.subr.mxu0 %v3015
    %3533 = vmatpush1.msra.mxu0 %v3014
    %3534 = vmatprep.subr.mxu0 %v3009
    %3535 = vmatpush1.msra.mxu0 %v3008
    %3536 = vmatprep.subr.mxu0 %v3003
    %3537 = vmatpush1.msra.mxu0 %v3002
    %3538 = vmatprep.subr.mxu0 %v2997
    %3539 = vmatpush1.msra.mxu0 %v2996
    %3540 = vmatprep.subr.mxu0 %v2991
    %3541 = vmatpush1.msra.mxu0 %v2990
    %3542 = vmatprep.subr.mxu0 %v2985
    %3543 = vmatpush1.msra.mxu0 %v2984
    %3544 = vmatprep.subr.mxu0 %v2979
    %3545 = vmatpush1.msra.mxu0 %v2978
    %3546 = vmatprep.subr.mxu0 %v2973
    %3547 = vmatpush1.msra.mxu0 %v2972
    %3548 = vmatprep.subr.mxu0 %v2967
    %3549 = vmatpush1.msra.mxu0 %v2966
    %3550 = vmatprep.subr.mxu0 %v2961
    %3551 = vmatpush1.msra.mxu0 %v2960
    %3552 = vmatprep.subr.mxu0 %v2955
    %3553 = vmatpush1.msra.mxu0 %v2954
    %3554 = vmatprep.subr.mxu0 %v2949
    %3555 = vmatpush1.msra.mxu0 %v2948
    %3556 = vmatprep.subr.mxu0 %v3135
    %3557 = vmatpush2.msra.mxu0 %v3134
    %3558 = vmatprep.subr.mxu0 %v3129
    %3559 = vmatpush2.msra.mxu0 %v3128
    %3560 = vmatprep.subr.mxu0 %v3123
    %3561 = vmatpush2.msra.mxu0 %v3122
    %3562 = vmatprep.subr.mxu0 %v3117
    %3563 = vmatpush2.msra.mxu0 %v3116
    %3564 = vmatprep.subr.mxu0 %v3111
    %3565 = vmatpush2.msra.mxu0 %v3110
    %3566 = vmatprep.subr.mxu0 %v3105
    %3567 = vmatpush2.msra.mxu0 %v3104
    %3568 = vmatprep.subr.mxu0 %v3099
    %3569 = vmatpush2.msra.mxu0 %v3098
    %3570 = vmatprep.subr.mxu0 %v3093
    %3571 = vmatpush2.msra.mxu0 %v3092
    %3572 = vmatprep.subr.mxu0 %v3087
    %3573 = vmatpush2.msra.mxu0 %v3086
    %3574 = vmatprep.subr.mxu0 %v3081
    %3575 = vmatpush2.msra.mxu0 %v3080
    %3576 = vmatprep.subr.mxu0 %v3075
    %3577 = vmatpush2.msra.mxu0 %v3074
    %3578 = vmatprep.subr.mxu0 %v3069
    %3579 = vmatpush2.msra.mxu0 %v3068
    %3580 = vmatprep.subr.mxu0 %v3063
    %3581 = vmatpush2.msra.mxu0 %v3062
    %3582 = vmatprep.subr.mxu0 %v3057
    %3583 = vmatpush2.msra.mxu0 %v3056
    %3584 = vmatprep.subr.mxu0 %v3051
    %3585 = vmatpush2.msra.mxu0 %v3050
    %3586 = vmatprep.subr.mxu0 %v3045
    %3587 = vmatpush2.msra.mxu0 %v3044
    %3588 = vmatprep.mubr.f32.mxu0 %v2750
    %3589 = vmatmul.mubr.f32.gmra.mxu0 %v2749
    %v3590 = vpop.f32.mrf.mxu0
    %v3591 = vadd.f32 %v3520, %v3590
    %v3592 = vpop.f32.mrf.mxu0
    %v3593 = vadd.f32 %v3522, %v3592
    %3594 = vdwg.mxu0
    %v3595 = vmax.f32 %v3307, 0.0
    %v3596 = vmax.f32 %v3309, 0.0
    %v3597 = vmax.f32 %v3449, 0.0
    %v3598 = vmax.f32 %v3451, 0.0
    %v3599 = vmax.f32 %v3591, 0.0
    %v3600 = vmax.f32 %v3593, 0.0
    %v3601 = vadd.f32 %v3595, %v3597
    %v3602 = vadd.f32 %v3596, %v3598
    %v3603 = vadd.f32 %v3601, %v3599
    %v3604 = vadd.f32 %v3602, %v3600
    %s3605 = scalar_lea.vmem [#allocation5], 3072
    %v3606 = vld [vmem:[%s3605] sm:$0xff]
    %v3607 = vld [vmem:[%s3605 + $0x8] sm:$0xff]
    %v3608 = vld [vmem:[%s3605 + $0x10] sm:$0xff]
    %v3609 = vld [vmem:[%s3605 + $0x18] sm:$0xff]
    %v3610 = vld [vmem:[%s3605 + $0x20] sm:$0xff]
    %v3611 = vld [vmem:[%s3605 + $0x28] sm:$0xff]
    %v3612 = vld [vmem:[%s3605 + $0x30] sm:$0xff]
    %v3613 = vld [vmem:[%s3605 + $0x38] sm:$0xff]
    %v3614 = vld [vmem:[%s3605 + $0x40] sm:$0xff]
    %v3615 = vld [vmem:[%s3605 + $0x48] sm:$0xff]
    %v3616 = vld [vmem:[%s3605 + $0x50] sm:$0xff]
    %v3617 = vld [vmem:[%s3605 + $0x58] sm:$0xff]
    %v3618 = vld [vmem:[%s3605 + $0x60] sm:$0xff]
    %v3619 = vld [vmem:[%s3605 + $0x68] sm:$0xff]
    %v3620 = vld [vmem:[%s3605 + $0x70] sm:$0xff]
    %v3621 = vld [vmem:[%s3605 + $0x78] sm:$0xff]
    %v3622 = vld [vmem:[%s3605 + $0x80] sm:$0xff]
    %v3623 = vld [vmem:[%s3605 + $0x88] sm:$0xff]
    %v3624 = vld [vmem:[%s3605 + $0x90] sm:$0xff]
    %v3625 = vld [vmem:[%s3605 + $0x98] sm:$0xff]
    %v3626 = vld [vmem:[%s3605 + $0xa0] sm:$0xff]
    %v3627 = vld [vmem:[%s3605 + $0xa8] sm:$0xff]
    %v3628 = vld [vmem:[%s3605 + $0xb0] sm:$0xff]
    %v3629 = vld [vmem:[%s3605 + $0xb8] sm:$0xff]
    %v3630 = vld [vmem:[%s3605 + $0xc0] sm:$0xff]
    %v3631 = vld [vmem:[%s3605 + $0xc8] sm:$0xff]
    %v3632 = vld [vmem:[%s3605 + $0xd0] sm:$0xff]
    %v3633 = vld [vmem:[%s3605 + $0xd8] sm:$0xff]
    %v3634 = vld [vmem:[%s3605 + $0xe0] sm:$0xff]
    %v3635 = vld [vmem:[%s3605 + $0xe8] sm:$0xff]
    %v3636 = vld [vmem:[%s3605 + $0xf0] sm:$0xff]
    %v3637 = vld [vmem:[%s3605 + $0xf8] sm:$0xff]
    %v3638 = vld [vmem:[%s3605 + $0x100] sm:$0xff]
    %v3639 = vld [vmem:[%s3605 + $0x108] sm:$0xff]
    %v3640 = vld [vmem:[%s3605 + $0x110] sm:$0xff]
    %v3641 = vld [vmem:[%s3605 + $0x118] sm:$0xff]
    %v3642 = vld [vmem:[%s3605 + $0x120] sm:$0xff]
    %v3643 = vld [vmem:[%s3605 + $0x128] sm:$0xff]
    %v3644 = vld [vmem:[%s3605 + $0x130] sm:$0xff]
    %v3645 = vld [vmem:[%s3605 + $0x138] sm:$0xff]
    %v3646 = vld [vmem:[%s3605 + $0x140] sm:$0xff]
    %v3647 = vld [vmem:[%s3605 + $0x148] sm:$0xff]
    %v3648 = vld [vmem:[%s3605 + $0x150] sm:$0xff]
    %v3649 = vld [vmem:[%s3605 + $0x158] sm:$0xff]
    %v3650 = vld [vmem:[%s3605 + $0x160] sm:$0xff]
    %v3651 = vld [vmem:[%s3605 + $0x168] sm:$0xff]
    %v3652 = vld [vmem:[%s3605 + $0x170] sm:$0xff]
    %v3653 = vld [vmem:[%s3605 + $0x178] sm:$0xff]
    %v3654 = vld [vmem:[%s3605 + $0x180] sm:$0xff]
    %v3655 = vld [vmem:[%s3605 + $0x188] sm:$0xff]
    %v3656 = vld [vmem:[%s3605 + $0x190] sm:$0xff]
    %v3657 = vld [vmem:[%s3605 + $0x198] sm:$0xff]
    %v3658 = vld [vmem:[%s3605 + $0x1a0] sm:$0xff]
    %v3659 = vld [vmem:[%s3605 + $0x1a8] sm:$0xff]
    %v3660 = vld [vmem:[%s3605 + $0x1b0] sm:$0xff]
    %v3661 = vld [vmem:[%s3605 + $0x1b8] sm:$0xff]
    %v3662 = vld [vmem:[%s3605 + $0x1c0] sm:$0xff]
    %v3663 = vld [vmem:[%s3605 + $0x1c8] sm:$0xff]
    %v3664 = vld [vmem:[%s3605 + $0x1d0] sm:$0xff]
    %v3665 = vld [vmem:[%s3605 + $0x1d8] sm:$0xff]
    %v3666 = vld [vmem:[%s3605 + $0x1e0] sm:$0xff]
    %v3667 = vld [vmem:[%s3605 + $0x1e8] sm:$0xff]
    %v3668 = vld [vmem:[%s3605 + $0x1f0] sm:$0xff]
    %v3669 = vld [vmem:[%s3605 + $0x1f8] sm:$0xff]
    %v3670 = vld [vmem:[%s3605 + $0x200] sm:$0xff]
    %v3671 = vld [vmem:[%s3605 + $0x208] sm:$0xff]
    %v3672 = vld [vmem:[%s3605 + $0x210] sm:$0xff]
    %v3673 = vld [vmem:[%s3605 + $0x218] sm:$0xff]
    %v3674 = vld [vmem:[%s3605 + $0x220] sm:$0xff]
    %v3675 = vld [vmem:[%s3605 + $0x228] sm:$0xff]
    %v3676 = vld [vmem:[%s3605 + $0x230] sm:$0xff]
    %v3677 = vld [vmem:[%s3605 + $0x238] sm:$0xff]
    %v3678 = vld [vmem:[%s3605 + $0x240] sm:$0xff]
    %v3679 = vld [vmem:[%s3605 + $0x248] sm:$0xff]
    %v3680 = vld [vmem:[%s3605 + $0x250] sm:$0xff]
    %v3681 = vld [vmem:[%s3605 + $0x258] sm:$0xff]
    %v3682 = vld [vmem:[%s3605 + $0x260] sm:$0xff]
    %v3683 = vld [vmem:[%s3605 + $0x268] sm:$0xff]
    %v3684 = vld [vmem:[%s3605 + $0x270] sm:$0xff]
    %v3685 = vld [vmem:[%s3605 + $0x278] sm:$0xff]
    %v3686 = vld [vmem:[%s3605 + $0x280] sm:$0xff]
    %v3687 = vld [vmem:[%s3605 + $0x288] sm:$0xff]
    %v3688 = vld [vmem:[%s3605 + $0x290] sm:$0xff]
    %v3689 = vld [vmem:[%s3605 + $0x298] sm:$0xff]
    %v3690 = vld [vmem:[%s3605 + $0x2a0] sm:$0xff]
    %v3691 = vld [vmem:[%s3605 + $0x2a8] sm:$0xff]
    %v3692 = vld [vmem:[%s3605 + $0x2b0] sm:$0xff]
    %v3693 = vld [vmem:[%s3605 + $0x2b8] sm:$0xff]
    %v3694 = vld [vmem:[%s3605 + $0x2c0] sm:$0xff]
    %v3695 = vld [vmem:[%s3605 + $0x2c8] sm:$0xff]
    %v3696 = vld [vmem:[%s3605 + $0x2d0] sm:$0xff]
    %v3697 = vld [vmem:[%s3605 + $0x2d8] sm:$0xff]
    %v3698 = vld [vmem:[%s3605 + $0x2e0] sm:$0xff]
    %v3699 = vld [vmem:[%s3605 + $0x2e8] sm:$0xff]
    %v3700 = vld [vmem:[%s3605 + $0x2f0] sm:$0xff]
    %v3701 = vld [vmem:[%s3605 + $0x2f8] sm:$0xff]
    %v3702 = vld [vmem:[%s3605 + $0x300] sm:$0xff]
    %v3703 = vld [vmem:[%s3605 + $0x308] sm:$0xff]
    %v3704 = vld [vmem:[%s3605 + $0x310] sm:$0xff]
    %v3705 = vld [vmem:[%s3605 + $0x318] sm:$0xff]
    %v3706 = vld [vmem:[%s3605 + $0x320] sm:$0xff]
    %v3707 = vld [vmem:[%s3605 + $0x328] sm:$0xff]
    %v3708 = vld [vmem:[%s3605 + $0x330] sm:$0xff]
    %v3709 = vld [vmem:[%s3605 + $0x338] sm:$0xff]
    %v3710 = vld [vmem:[%s3605 + $0x340] sm:$0xff]
    %v3711 = vld [vmem:[%s3605 + $0x348] sm:$0xff]
    %v3712 = vld [vmem:[%s3605 + $0x350] sm:$0xff]
    %v3713 = vld [vmem:[%s3605 + $0x358] sm:$0xff]
    %v3714 = vld [vmem:[%s3605 + $0x360] sm:$0xff]
    %v3715 = vld [vmem:[%s3605 + $0x368] sm:$0xff]
    %v3716 = vld [vmem:[%s3605 + $0x370] sm:$0xff]
    %v3717 = vld [vmem:[%s3605 + $0x378] sm:$0xff]
    %v3718 = vld [vmem:[%s3605 + $0x380] sm:$0xff]
    %v3719 = vld [vmem:[%s3605 + $0x388] sm:$0xff]
    %v3720 = vld [vmem:[%s3605 + $0x390] sm:$0xff]
    %v3721 = vld [vmem:[%s3605 + $0x398] sm:$0xff]
    %v3722 = vld [vmem:[%s3605 + $0x3a0] sm:$0xff]
    %v3723 = vld [vmem:[%s3605 + $0x3a8] sm:$0xff]
    %v3724 = vld [vmem:[%s3605 + $0x3b0] sm:$0xff]
    %v3725 = vld [vmem:[%s3605 + $0x3b8] sm:$0xff]
    %v3726 = vld [vmem:[%s3605 + $0x3c0] sm:$0xff]
    %v3727 = vld [vmem:[%s3605 + $0x3c8] sm:$0xff]
    %v3728 = vld [vmem:[%s3605 + $0x3d0] sm:$0xff]
    %v3729 = vld [vmem:[%s3605 + $0x3d8] sm:$0xff]
    %v3730 = vld [vmem:[%s3605 + $0x3e0] sm:$0xff]
    %v3731 = vld [vmem:[%s3605 + $0x3e8] sm:$0xff]
    %v3732 = vld [vmem:[%s3605 + $0x3f0] sm:$0xff]
    %v3733 = vld [vmem:[%s3605 + $0x3f8] sm:$0xff]
    %s3734 = scalar_lea.vmem [#allocation7], 12
    %v3735 = vld [vmem:[%s3734] sm:$0xf]
    %v3737 = vlaneseq
    %v3738 = vshrl.u32 %v3737, 7
    %v3739 = vsub.s32 0, %v3738
    %v3740 = vrot.slane %v3735, %v3739
    %v3741 = vlaneseq
    %v3742 = vshrl.u32 %v3741, 7
    %v3743 = vsub.s32 1, %v3742
    %v3744 = vrot.slane %v3735, %v3743
    %v3745 = vlaneseq
    %v3746 = vshrl.u32 %v3745, 7
    %v3747 = vsub.s32 2, %v3746
    %v3748 = vrot.slane %v3735, %v3747
    %v3749 = vlaneseq
    %v3750 = vshrl.u32 %v3749, 7
    %v3751 = vsub.s32 3, %v3750
    %v3752 = vrot.slane %v3735, %v3751
    %3757 = vmatprep.subr.mxu0 %v3667
    %3758 = vmatpush1.msra.mxu0 %v3666
    %3759 = vmatprep.subr.mxu0 %v3663
    %3760 = vmatpush1.msra.mxu0 %v3662
    %3761 = vmatprep.subr.mxu0 %v3659
    %3762 = vmatpush1.msra.mxu0 %v3658
    %3763 = vmatprep.subr.mxu0 %v3655
    %3764 = vmatpush1.msra.mxu0 %v3654
    %3765 = vmatprep.subr.mxu0 %v3651
    %3766 = vmatpush1.msra.mxu0 %v3650
    %3767 = vmatprep.subr.mxu0 %v3647
    %3768 = vmatpush1.msra.mxu0 %v3646
    %3769 = vmatprep.subr.mxu0 %v3643
    %3770 = vmatpush1.msra.mxu0 %v3642
    %3771 = vmatprep.subr.mxu0 %v3639
    %3772 = vmatpush1.msra.mxu0 %v3638
    %3773 = vmatprep.subr.mxu0 %v3635
    %3774 = vmatpush1.msra.mxu0 %v3634
    %3775 = vmatprep.subr.mxu0 %v3631
    %3776 = vmatpush1.msra.mxu0 %v3630
    %3777 = vmatprep.subr.mxu0 %v3627
    %3778 = vmatpush1.msra.mxu0 %v3626
    %3779 = vmatprep.subr.mxu0 %v3623
    %3780 = vmatpush1.msra.mxu0 %v3622
    %3781 = vmatprep.subr.mxu0 %v3619
    %3782 = vmatpush1.msra.mxu0 %v3618
    %3783 = vmatprep.subr.mxu0 %v3615
    %3784 = vmatpush1.msra.mxu0 %v3614
    %3785 = vmatprep.subr.mxu0 %v3611
    %3786 = vmatpush1.msra.mxu0 %v3610
    %3787 = vmatprep.subr.mxu0 %v3607
    %3788 = vmatpush1.msra.mxu0 %v3606
    %3789 = vmatprep.subr.mxu0 %v3731
    %3790 = vmatpush2.msra.mxu0 %v3730
    %3791 = vmatprep.subr.mxu0 %v3727
    %3792 = vmatpush2.msra.mxu0 %v3726
    %3793 = vmatprep.subr.mxu0 %v3723
    %3794 = vmatpush2.msra.mxu0 %v3722
    %3795 = vmatprep.subr.mxu0 %v3719
    %3796 = vmatpush2.msra.mxu0 %v3718
    %3797 = vmatprep.subr.mxu0 %v3715
    %3798 = vmatpush2.msra.mxu0 %v3714
    %3799 = vmatprep.subr.mxu0 %v3711
    %3800 = vmatpush2.msra.mxu0 %v3710
    %3801 = vmatprep.subr.mxu0 %v3707
    %3802 = vmatpush2.msra.mxu0 %v3706
    %3803 = vmatprep.subr.mxu0 %v3703
    %3804 = vmatpush2.msra.mxu0 %v3702
    %3805 = vmatprep.subr.mxu0 %v3699
    %3806 = vmatpush2.msra.mxu0 %v3698
    %3807 = vmatprep.subr.mxu0 %v3695
    %3808 = vmatpush2.msra.mxu0 %v3694
    %3809 = vmatprep.subr.mxu0 %v3691
    %3810 = vmatpush2.msra.mxu0 %v3690
    %3811 = vmatprep.subr.mxu0 %v3687
    %3812 = vmatpush2.msra.mxu0 %v3686
    %3813 = vmatprep.subr.mxu0 %v3683
    %3814 = vmatpush2.msra.mxu0 %v3682
    %3815 = vmatprep.subr.mxu0 %v3679
    %3816 = vmatpush2.msra.mxu0 %v3678
    %3817 = vmatprep.subr.mxu0 %v3675
    %3818 = vmatpush2.msra.mxu0 %v3674
    %3819 = vmatprep.subr.mxu0 %v3671
    %3820 = vmatpush2.msra.mxu0 %v3670
    %3821 = vmatprep.mubr.f32.mxu0 %v3604
    %3822 = vmatmul.mubr.f32.gmra.mxu0 %v3603
    %v3823 = vpop.f32.mrf.mxu0
    %v3824 = vadd.f32 %v3740, %v3823
    %v3825 = vpop.f32.mrf.mxu0
    %v3826 = vadd.f32 %v3744, %v3825
    %3827 = vdwg.mxu0
    %3828 = vmatprep.subr.mxu0 %v3669
    %3829 = vmatpush1.msra.mxu0 %v3668
    %3830 = vmatprep.subr.mxu0 %v3665
    %3831 = vmatpush1.msra.mxu0 %v3664
    %3832 = vmatprep.subr.mxu0 %v3661
    %3833 = vmatpush1.msra.mxu0 %v3660
    %3834 = vmatprep.subr.mxu0 %v3657
    %3835 = vmatpush1.msra.mxu0 %v3656
    %3836 = vmatprep.subr.mxu0 %v3653
    %3837 = vmatpush1.msra.mxu0 %v3652
    %3838 = vmatprep.subr.mxu0 %v3649
    %3839 = vmatpush1.msra.mxu0 %v3648
    %3840 = vmatprep.subr.mxu0 %v3645
    %3841 = vmatpush1.msra.mxu0 %v3644
    %3842 = vmatprep.subr.mxu0 %v3641
    %3843 = vmatpush1.msra.mxu0 %v3640
    %3844 = vmatprep.subr.mxu0 %v3637
    %3845 = vmatpush1.msra.mxu0 %v3636
    %3846 = vmatprep.subr.mxu0 %v3633
    %3847 = vmatpush1.msra.mxu0 %v3632
    %3848 = vmatprep.subr.mxu0 %v3629
    %3849 = vmatpush1.msra.mxu0 %v3628
    %3850 = vmatprep.subr.mxu0 %v3625
    %3851 = vmatpush1.msra.mxu0 %v3624
    %3852 = vmatprep.subr.mxu0 %v3621
    %3853 = vmatpush1.msra.mxu0 %v3620
    %3854 = vmatprep.subr.mxu0 %v3617
    %3855 = vmatpush1.msra.mxu0 %v3616
    %3856 = vmatprep.subr.mxu0 %v3613
    %3857 = vmatpush1.msra.mxu0 %v3612
    %3858 = vmatprep.subr.mxu0 %v3609
    %3859 = vmatpush1.msra.mxu0 %v3608
    %3860 = vmatprep.subr.mxu0 %v3733
    %3861 = vmatpush2.msra.mxu0 %v3732
    %3862 = vmatprep.subr.mxu0 %v3729
    %3863 = vmatpush2.msra.mxu0 %v3728
    %3864 = vmatprep.subr.mxu0 %v3725
    %3865 = vmatpush2.msra.mxu0 %v3724
    %3866 = vmatprep.subr.mxu0 %v3721
    %3867 = vmatpush2.msra.mxu0 %v3720
    %3868 = vmatprep.subr.mxu0 %v3717
    %3869 = vmatpush2.msra.mxu0 %v3716
    %3870 = vmatprep.subr.mxu0 %v3713
    %3871 = vmatpush2.msra.mxu0 %v3712
    %3872 = vmatprep.subr.mxu0 %v3709
    %3873 = vmatpush2.msra.mxu0 %v3708
    %3874 = vmatprep.subr.mxu0 %v3705
    %3875 = vmatpush2.msra.mxu0 %v3704
    %3876 = vmatprep.subr.mxu0 %v3701
    %3877 = vmatpush2.msra.mxu0 %v3700
    %3878 = vmatprep.subr.mxu0 %v3697
    %3879 = vmatpush2.msra.mxu0 %v3696
    %3880 = vmatprep.subr.mxu0 %v3693
    %3881 = vmatpush2.msra.mxu0 %v3692
    %3882 = vmatprep.subr.mxu0 %v3689
    %3883 = vmatpush2.msra.mxu0 %v3688
    %3884 = vmatprep.subr.mxu0 %v3685
    %3885 = vmatpush2.msra.mxu0 %v3684
    %3886 = vmatprep.subr.mxu0 %v3681
    %3887 = vmatpush2.msra.mxu0 %v3680
    %3888 = vmatprep.subr.mxu0 %v3677
    %3889 = vmatpush2.msra.mxu0 %v3676
    %3890 = vmatprep.subr.mxu0 %v3673
    %3891 = vmatpush2.msra.mxu0 %v3672
    %3892 = vmatprep.mubr.f32.mxu0 %v3604
    %3893 = vmatmul.mubr.f32.gmra.mxu0 %v3603
    %v3894 = vpop.f32.mrf.mxu0
    %v3895 = vadd.f32 %v3748, %v3894
    %v3896 = vpop.f32.mrf.mxu0
    %v3897 = vadd.f32 %v3752, %v3896
    %3898 = vdwg.mxu0
    %v3899 = vmax.f32 %v3824, 0.0
    %v3900 = vmax.f32 %v3826, 0.0
    %v3901 = vmax.f32 %v3895, 0.0
    %v3902 = vmax.f32 %v3897, 0.0
    %s3903 = scalar_lea.vmem [#allocation8], 9216
    %v3904 = vld [vmem:[%s3903] sm:$0xff]
    %v3905 = vld [vmem:[%s3903 + $0x8] sm:$0xff]
    %v3906 = vld [vmem:[%s3903 + $0x10] sm:$0xff]
    %v3907 = vld [vmem:[%s3903 + $0x18] sm:$0xff]
    %v3908 = vld [vmem:[%s3903 + $0x20] sm:$0xff]
    %v3909 = vld [vmem:[%s3903 + $0x28] sm:$0xff]
    %v3910 = vld [vmem:[%s3903 + $0x30] sm:$0xff]
    %v3911 = vld [vmem:[%s3903 + $0x38] sm:$0xff]
    %v3912 = vld [vmem:[%s3903 + $0x40] sm:$0xff]
    %v3913 = vld [vmem:[%s3903 + $0x48] sm:$0xff]
    %v3914 = vld [vmem:[%s3903 + $0x50] sm:$0xff]
    %v3915 = vld [vmem:[%s3903 + $0x58] sm:$0xff]
    %v3916 = vld [vmem:[%s3903 + $0x60] sm:$0xff]
    %v3917 = vld [vmem:[%s3903 + $0x68] sm:$0xff]
    %v3918 = vld [vmem:[%s3903 + $0x70] sm:$0xff]
    %v3919 = vld [vmem:[%s3903 + $0x78] sm:$0xff]
    %v3920 = vld [vmem:[%s3903 + $0x80] sm:$0xff]
    %v3921 = vld [vmem:[%s3903 + $0x88] sm:$0xff]
    %v3922 = vld [vmem:[%s3903 + $0x90] sm:$0xff]
    %v3923 = vld [vmem:[%s3903 + $0x98] sm:$0xff]
    %v3924 = vld [vmem:[%s3903 + $0xa0] sm:$0xff]
    %v3925 = vld [vmem:[%s3903 + $0xa8] sm:$0xff]
    %v3926 = vld [vmem:[%s3903 + $0xb0] sm:$0xff]
    %v3927 = vld [vmem:[%s3903 + $0xb8] sm:$0xff]
    %v3928 = vld [vmem:[%s3903 + $0xc0] sm:$0xff]
    %v3929 = vld [vmem:[%s3903 + $0xc8] sm:$0xff]
    %v3930 = vld [vmem:[%s3903 + $0xd0] sm:$0xff]
    %v3931 = vld [vmem:[%s3903 + $0xd8] sm:$0xff]
    %v3932 = vld [vmem:[%s3903 + $0xe0] sm:$0xff]
    %v3933 = vld [vmem:[%s3903 + $0xe8] sm:$0xff]
    %v3934 = vld [vmem:[%s3903 + $0xf0] sm:$0xff]
    %v3935 = vld [vmem:[%s3903 + $0xf8] sm:$0xff]
    %v3936 = vld [vmem:[%s3903 + $0x100] sm:$0xff]
    %v3937 = vld [vmem:[%s3903 + $0x108] sm:$0xff]
    %v3938 = vld [vmem:[%s3903 + $0x110] sm:$0xff]
    %v3939 = vld [vmem:[%s3903 + $0x118] sm:$0xff]
    %v3940 = vld [vmem:[%s3903 + $0x120] sm:$0xff]
    %v3941 = vld [vmem:[%s3903 + $0x128] sm:$0xff]
    %v3942 = vld [vmem:[%s3903 + $0x130] sm:$0xff]
    %v3943 = vld [vmem:[%s3903 + $0x138] sm:$0xff]
    %v3944 = vld [vmem:[%s3903 + $0x140] sm:$0xff]
    %v3945 = vld [vmem:[%s3903 + $0x148] sm:$0xff]
    %v3946 = vld [vmem:[%s3903 + $0x150] sm:$0xff]
    %v3947 = vld [vmem:[%s3903 + $0x158] sm:$0xff]
    %v3948 = vld [vmem:[%s3903 + $0x160] sm:$0xff]
    %v3949 = vld [vmem:[%s3903 + $0x168] sm:$0xff]
    %v3950 = vld [vmem:[%s3903 + $0x170] sm:$0xff]
    %v3951 = vld [vmem:[%s3903 + $0x178] sm:$0xff]
    %v3952 = vld [vmem:[%s3903 + $0x180] sm:$0xff]
    %v3953 = vld [vmem:[%s3903 + $0x188] sm:$0xff]
    %v3954 = vld [vmem:[%s3903 + $0x190] sm:$0xff]
    %v3955 = vld [vmem:[%s3903 + $0x198] sm:$0xff]
    %v3956 = vld [vmem:[%s3903 + $0x1a0] sm:$0xff]
    %v3957 = vld [vmem:[%s3903 + $0x1a8] sm:$0xff]
    %v3958 = vld [vmem:[%s3903 + $0x1b0] sm:$0xff]
    %v3959 = vld [vmem:[%s3903 + $0x1b8] sm:$0xff]
    %v3960 = vld [vmem:[%s3903 + $0x1c0] sm:$0xff]
    %v3961 = vld [vmem:[%s3903 + $0x1c8] sm:$0xff]
    %v3962 = vld [vmem:[%s3903 + $0x1d0] sm:$0xff]
    %v3963 = vld [vmem:[%s3903 + $0x1d8] sm:$0xff]
    %v3964 = vld [vmem:[%s3903 + $0x1e0] sm:$0xff]
    %v3965 = vld [vmem:[%s3903 + $0x1e8] sm:$0xff]
    %v3966 = vld [vmem:[%s3903 + $0x1f0] sm:$0xff]
    %v3967 = vld [vmem:[%s3903 + $0x1f8] sm:$0xff]
    %v3968 = vld [vmem:[%s3903 + $0x200] sm:$0xff]
    %v3969 = vld [vmem:[%s3903 + $0x208] sm:$0xff]
    %v3970 = vld [vmem:[%s3903 + $0x210] sm:$0xff]
    %v3971 = vld [vmem:[%s3903 + $0x218] sm:$0xff]
    %v3972 = vld [vmem:[%s3903 + $0x220] sm:$0xff]
    %v3973 = vld [vmem:[%s3903 + $0x228] sm:$0xff]
    %v3974 = vld [vmem:[%s3903 + $0x230] sm:$0xff]
    %v3975 = vld [vmem:[%s3903 + $0x238] sm:$0xff]
    %v3976 = vld [vmem:[%s3903 + $0x240] sm:$0xff]
    %v3977 = vld [vmem:[%s3903 + $0x248] sm:$0xff]
    %v3978 = vld [vmem:[%s3903 + $0x250] sm:$0xff]
    %v3979 = vld [vmem:[%s3903 + $0x258] sm:$0xff]
    %v3980 = vld [vmem:[%s3903 + $0x260] sm:$0xff]
    %v3981 = vld [vmem:[%s3903 + $0x268] sm:$0xff]
    %v3982 = vld [vmem:[%s3903 + $0x270] sm:$0xff]
    %v3983 = vld [vmem:[%s3903 + $0x278] sm:$0xff]
    %v3984 = vld [vmem:[%s3903 + $0x280] sm:$0xff]
    %v3985 = vld [vmem:[%s3903 + $0x288] sm:$0xff]
    %v3986 = vld [vmem:[%s3903 + $0x290] sm:$0xff]
    %v3987 = vld [vmem:[%s3903 + $0x298] sm:$0xff]
    %v3988 = vld [vmem:[%s3903 + $0x2a0] sm:$0xff]
    %v3989 = vld [vmem:[%s3903 + $0x2a8] sm:$0xff]
    %v3990 = vld [vmem:[%s3903 + $0x2b0] sm:$0xff]
    %v3991 = vld [vmem:[%s3903 + $0x2b8] sm:$0xff]
    %v3992 = vld [vmem:[%s3903 + $0x2c0] sm:$0xff]
    %v3993 = vld [vmem:[%s3903 + $0x2c8] sm:$0xff]
    %v3994 = vld [vmem:[%s3903 + $0x2d0] sm:$0xff]
    %v3995 = vld [vmem:[%s3903 + $0x2d8] sm:$0xff]
    %v3996 = vld [vmem:[%s3903 + $0x2e0] sm:$0xff]
    %v3997 = vld [vmem:[%s3903 + $0x2e8] sm:$0xff]
    %v3998 = vld [vmem:[%s3903 + $0x2f0] sm:$0xff]
    %v3999 = vld [vmem:[%s3903 + $0x2f8] sm:$0xff]
    %v4000 = vld [vmem:[%s3903 + $0x300] sm:$0xff]
    %v4001 = vld [vmem:[%s3903 + $0x308] sm:$0xff]
    %v4002 = vld [vmem:[%s3903 + $0x310] sm:$0xff]
    %v4003 = vld [vmem:[%s3903 + $0x318] sm:$0xff]
    %v4004 = vld [vmem:[%s3903 + $0x320] sm:$0xff]
    %v4005 = vld [vmem:[%s3903 + $0x328] sm:$0xff]
    %v4006 = vld [vmem:[%s3903 + $0x330] sm:$0xff]
    %v4007 = vld [vmem:[%s3903 + $0x338] sm:$0xff]
    %v4008 = vld [vmem:[%s3903 + $0x340] sm:$0xff]
    %v4009 = vld [vmem:[%s3903 + $0x348] sm:$0xff]
    %v4010 = vld [vmem:[%s3903 + $0x350] sm:$0xff]
    %v4011 = vld [vmem:[%s3903 + $0x358] sm:$0xff]
    %v4012 = vld [vmem:[%s3903 + $0x360] sm:$0xff]
    %v4013 = vld [vmem:[%s3903 + $0x368] sm:$0xff]
    %v4014 = vld [vmem:[%s3903 + $0x370] sm:$0xff]
    %v4015 = vld [vmem:[%s3903 + $0x378] sm:$0xff]
    %v4016 = vld [vmem:[%s3903 + $0x380] sm:$0xff]
    %v4017 = vld [vmem:[%s3903 + $0x388] sm:$0xff]
    %v4018 = vld [vmem:[%s3903 + $0x390] sm:$0xff]
    %v4019 = vld [vmem:[%s3903 + $0x398] sm:$0xff]
    %v4020 = vld [vmem:[%s3903 + $0x3a0] sm:$0xff]
    %v4021 = vld [vmem:[%s3903 + $0x3a8] sm:$0xff]
    %v4022 = vld [vmem:[%s3903 + $0x3b0] sm:$0xff]
    %v4023 = vld [vmem:[%s3903 + $0x3b8] sm:$0xff]
    %v4024 = vld [vmem:[%s3903 + $0x3c0] sm:$0xff]
    %v4025 = vld [vmem:[%s3903 + $0x3c8] sm:$0xff]
    %v4026 = vld [vmem:[%s3903 + $0x3d0] sm:$0xff]
    %v4027 = vld [vmem:[%s3903 + $0x3d8] sm:$0xff]
    %v4028 = vld [vmem:[%s3903 + $0x3e0] sm:$0xff]
    %v4029 = vld [vmem:[%s3903 + $0x3e8] sm:$0xff]
    %v4030 = vld [vmem:[%s3903 + $0x3f0] sm:$0xff]
    %v4031 = vld [vmem:[%s3903 + $0x3f8] sm:$0xff]
    %v4032 = vld [vmem:[%s3903 + $0x400] sm:$0xff]
    %v4033 = vld [vmem:[%s3903 + $0x408] sm:$0xff]
    %v4034 = vld [vmem:[%s3903 + $0x410] sm:$0xff]
    %v4035 = vld [vmem:[%s3903 + $0x418] sm:$0xff]
    %v4036 = vld [vmem:[%s3903 + $0x420] sm:$0xff]
    %v4037 = vld [vmem:[%s3903 + $0x428] sm:$0xff]
    %v4038 = vld [vmem:[%s3903 + $0x430] sm:$0xff]
    %v4039 = vld [vmem:[%s3903 + $0x438] sm:$0xff]
    %v4040 = vld [vmem:[%s3903 + $0x440] sm:$0xff]
    %v4041 = vld [vmem:[%s3903 + $0x448] sm:$0xff]
    %v4042 = vld [vmem:[%s3903 + $0x450] sm:$0xff]
    %v4043 = vld [vmem:[%s3903 + $0x458] sm:$0xff]
    %v4044 = vld [vmem:[%s3903 + $0x460] sm:$0xff]
    %v4045 = vld [vmem:[%s3903 + $0x468] sm:$0xff]
    %v4046 = vld [vmem:[%s3903 + $0x470] sm:$0xff]
    %v4047 = vld [vmem:[%s3903 + $0x478] sm:$0xff]
    %v4048 = vld [vmem:[%s3903 + $0x480] sm:$0xff]
    %v4049 = vld [vmem:[%s3903 + $0x488] sm:$0xff]
    %v4050 = vld [vmem:[%s3903 + $0x490] sm:$0xff]
    %v4051 = vld [vmem:[%s3903 + $0x498] sm:$0xff]
    %v4052 = vld [vmem:[%s3903 + $0x4a0] sm:$0xff]
    %v4053 = vld [vmem:[%s3903 + $0x4a8] sm:$0xff]
    %v4054 = vld [vmem:[%s3903 + $0x4b0] sm:$0xff]
    %v4055 = vld [vmem:[%s3903 + $0x4b8] sm:$0xff]
    %v4056 = vld [vmem:[%s3903 + $0x4c0] sm:$0xff]
    %v4057 = vld [vmem:[%s3903 + $0x4c8] sm:$0xff]
    %v4058 = vld [vmem:[%s3903 + $0x4d0] sm:$0xff]
    %v4059 = vld [vmem:[%s3903 + $0x4d8] sm:$0xff]
    %v4060 = vld [vmem:[%s3903 + $0x4e0] sm:$0xff]
    %v4061 = vld [vmem:[%s3903 + $0x4e8] sm:$0xff]
    %v4062 = vld [vmem:[%s3903 + $0x4f0] sm:$0xff]
    %v4063 = vld [vmem:[%s3903 + $0x4f8] sm:$0xff]
    %v4064 = vld [vmem:[%s3903 + $0x500] sm:$0xff]
    %v4065 = vld [vmem:[%s3903 + $0x508] sm:$0xff]
    %v4066 = vld [vmem:[%s3903 + $0x510] sm:$0xff]
    %v4067 = vld [vmem:[%s3903 + $0x518] sm:$0xff]
    %v4068 = vld [vmem:[%s3903 + $0x520] sm:$0xff]
    %v4069 = vld [vmem:[%s3903 + $0x528] sm:$0xff]
    %v4070 = vld [vmem:[%s3903 + $0x530] sm:$0xff]
    %v4071 = vld [vmem:[%s3903 + $0x538] sm:$0xff]
    %v4072 = vld [vmem:[%s3903 + $0x540] sm:$0xff]
    %v4073 = vld [vmem:[%s3903 + $0x548] sm:$0xff]
    %v4074 = vld [vmem:[%s3903 + $0x550] sm:$0xff]
    %v4075 = vld [vmem:[%s3903 + $0x558] sm:$0xff]
    %v4076 = vld [vmem:[%s3903 + $0x560] sm:$0xff]
    %v4077 = vld [vmem:[%s3903 + $0x568] sm:$0xff]
    %v4078 = vld [vmem:[%s3903 + $0x570] sm:$0xff]
    %v4079 = vld [vmem:[%s3903 + $0x578] sm:$0xff]
    %v4080 = vld [vmem:[%s3903 + $0x580] sm:$0xff]
    %v4081 = vld [vmem:[%s3903 + $0x588] sm:$0xff]
    %v4082 = vld [vmem:[%s3903 + $0x590] sm:$0xff]
    %v4083 = vld [vmem:[%s3903 + $0x598] sm:$0xff]
    %v4084 = vld [vmem:[%s3903 + $0x5a0] sm:$0xff]
    %v4085 = vld [vmem:[%s3903 + $0x5a8] sm:$0xff]
    %v4086 = vld [vmem:[%s3903 + $0x5b0] sm:$0xff]
    %v4087 = vld [vmem:[%s3903 + $0x5b8] sm:$0xff]
    %v4088 = vld [vmem:[%s3903 + $0x5c0] sm:$0xff]
    %v4089 = vld [vmem:[%s3903 + $0x5c8] sm:$0xff]
    %v4090 = vld [vmem:[%s3903 + $0x5d0] sm:$0xff]
    %v4091 = vld [vmem:[%s3903 + $0x5d8] sm:$0xff]
    %v4092 = vld [vmem:[%s3903 + $0x5e0] sm:$0xff]
    %v4093 = vld [vmem:[%s3903 + $0x5e8] sm:$0xff]
    %v4094 = vld [vmem:[%s3903 + $0x5f0] sm:$0xff]
    %v4095 = vld [vmem:[%s3903 + $0x5f8] sm:$0xff]
    %v4096 = vld [vmem:[%s3903 + $0x600] sm:$0xff]
    %v4097 = vld [vmem:[%s3903 + $0x608] sm:$0xff]
    %v4098 = vld [vmem:[%s3903 + $0x610] sm:$0xff]
    %v4099 = vld [vmem:[%s3903 + $0x618] sm:$0xff]
    %v4100 = vld [vmem:[%s3903 + $0x620] sm:$0xff]
    %v4101 = vld [vmem:[%s3903 + $0x628] sm:$0xff]
    %v4102 = vld [vmem:[%s3903 + $0x630] sm:$0xff]
    %v4103 = vld [vmem:[%s3903 + $0x638] sm:$0xff]
    %v4104 = vld [vmem:[%s3903 + $0x640] sm:$0xff]
    %v4105 = vld [vmem:[%s3903 + $0x648] sm:$0xff]
    %v4106 = vld [vmem:[%s3903 + $0x650] sm:$0xff]
    %v4107 = vld [vmem:[%s3903 + $0x658] sm:$0xff]
    %v4108 = vld [vmem:[%s3903 + $0x660] sm:$0xff]
    %v4109 = vld [vmem:[%s3903 + $0x668] sm:$0xff]
    %v4110 = vld [vmem:[%s3903 + $0x670] sm:$0xff]
    %v4111 = vld [vmem:[%s3903 + $0x678] sm:$0xff]
    %v4112 = vld [vmem:[%s3903 + $0x680] sm:$0xff]
    %v4113 = vld [vmem:[%s3903 + $0x688] sm:$0xff]
    %v4114 = vld [vmem:[%s3903 + $0x690] sm:$0xff]
    %v4115 = vld [vmem:[%s3903 + $0x698] sm:$0xff]
    %v4116 = vld [vmem:[%s3903 + $0x6a0] sm:$0xff]
    %v4117 = vld [vmem:[%s3903 + $0x6a8] sm:$0xff]
    %v4118 = vld [vmem:[%s3903 + $0x6b0] sm:$0xff]
    %v4119 = vld [vmem:[%s3903 + $0x6b8] sm:$0xff]
    %v4120 = vld [vmem:[%s3903 + $0x6c0] sm:$0xff]
    %v4121 = vld [vmem:[%s3903 + $0x6c8] sm:$0xff]
    %v4122 = vld [vmem:[%s3903 + $0x6d0] sm:$0xff]
    %v4123 = vld [vmem:[%s3903 + $0x6d8] sm:$0xff]
    %v4124 = vld [vmem:[%s3903 + $0x6e0] sm:$0xff]
    %v4125 = vld [vmem:[%s3903 + $0x6e8] sm:$0xff]
    %v4126 = vld [vmem:[%s3903 + $0x6f0] sm:$0xff]
    %v4127 = vld [vmem:[%s3903 + $0x6f8] sm:$0xff]
    %v4128 = vld [vmem:[%s3903 + $0x700] sm:$0xff]
    %v4129 = vld [vmem:[%s3903 + $0x708] sm:$0xff]
    %v4130 = vld [vmem:[%s3903 + $0x710] sm:$0xff]
    %v4131 = vld [vmem:[%s3903 + $0x718] sm:$0xff]
    %v4132 = vld [vmem:[%s3903 + $0x720] sm:$0xff]
    %v4133 = vld [vmem:[%s3903 + $0x728] sm:$0xff]
    %v4134 = vld [vmem:[%s3903 + $0x730] sm:$0xff]
    %v4135 = vld [vmem:[%s3903 + $0x738] sm:$0xff]
    %v4136 = vld [vmem:[%s3903 + $0x740] sm:$0xff]
    %v4137 = vld [vmem:[%s3903 + $0x748] sm:$0xff]
    %v4138 = vld [vmem:[%s3903 + $0x750] sm:$0xff]
    %v4139 = vld [vmem:[%s3903 + $0x758] sm:$0xff]
    %v4140 = vld [vmem:[%s3903 + $0x760] sm:$0xff]
    %v4141 = vld [vmem:[%s3903 + $0x768] sm:$0xff]
    %v4142 = vld [vmem:[%s3903 + $0x770] sm:$0xff]
    %v4143 = vld [vmem:[%s3903 + $0x778] sm:$0xff]
    %v4144 = vld [vmem:[%s3903 + $0x780] sm:$0xff]
    %v4145 = vld [vmem:[%s3903 + $0x788] sm:$0xff]
    %v4146 = vld [vmem:[%s3903 + $0x790] sm:$0xff]
    %v4147 = vld [vmem:[%s3903 + $0x798] sm:$0xff]
    %v4148 = vld [vmem:[%s3903 + $0x7a0] sm:$0xff]
    %v4149 = vld [vmem:[%s3903 + $0x7a8] sm:$0xff]
    %v4150 = vld [vmem:[%s3903 + $0x7b0] sm:$0xff]
    %v4151 = vld [vmem:[%s3903 + $0x7b8] sm:$0xff]
    %v4152 = vld [vmem:[%s3903 + $0x7c0] sm:$0xff]
    %v4153 = vld [vmem:[%s3903 + $0x7c8] sm:$0xff]
    %v4154 = vld [vmem:[%s3903 + $0x7d0] sm:$0xff]
    %v4155 = vld [vmem:[%s3903 + $0x7d8] sm:$0xff]
    %v4156 = vld [vmem:[%s3903 + $0x7e0] sm:$0xff]
    %v4157 = vld [vmem:[%s3903 + $0x7e8] sm:$0xff]
    %v4158 = vld [vmem:[%s3903 + $0x7f0] sm:$0xff]
    %v4159 = vld [vmem:[%s3903 + $0x7f8] sm:$0xff]
    %v4160 = vld [vmem:[%s3903 + $0x800] sm:$0xff]
    %v4161 = vld [vmem:[%s3903 + $0x808] sm:$0xff]
    %v4162 = vld [vmem:[%s3903 + $0x810] sm:$0xff]
    %v4163 = vld [vmem:[%s3903 + $0x818] sm:$0xff]
    %v4164 = vld [vmem:[%s3903 + $0x820] sm:$0xff]
    %v4165 = vld [vmem:[%s3903 + $0x828] sm:$0xff]
    %v4166 = vld [vmem:[%s3903 + $0x830] sm:$0xff]
    %v4167 = vld [vmem:[%s3903 + $0x838] sm:$0xff]
    %v4168 = vld [vmem:[%s3903 + $0x840] sm:$0xff]
    %v4169 = vld [vmem:[%s3903 + $0x848] sm:$0xff]
    %v4170 = vld [vmem:[%s3903 + $0x850] sm:$0xff]
    %v4171 = vld [vmem:[%s3903 + $0x858] sm:$0xff]
    %v4172 = vld [vmem:[%s3903 + $0x860] sm:$0xff]
    %v4173 = vld [vmem:[%s3903 + $0x868] sm:$0xff]
    %v4174 = vld [vmem:[%s3903 + $0x870] sm:$0xff]
    %v4175 = vld [vmem:[%s3903 + $0x878] sm:$0xff]
    %v4176 = vld [vmem:[%s3903 + $0x880] sm:$0xff]
    %v4177 = vld [vmem:[%s3903 + $0x888] sm:$0xff]
    %v4178 = vld [vmem:[%s3903 + $0x890] sm:$0xff]
    %v4179 = vld [vmem:[%s3903 + $0x898] sm:$0xff]
    %v4180 = vld [vmem:[%s3903 + $0x8a0] sm:$0xff]
    %v4181 = vld [vmem:[%s3903 + $0x8a8] sm:$0xff]
    %v4182 = vld [vmem:[%s3903 + $0x8b0] sm:$0xff]
    %v4183 = vld [vmem:[%s3903 + $0x8b8] sm:$0xff]
    %v4184 = vld [vmem:[%s3903 + $0x8c0] sm:$0xff]
    %v4185 = vld [vmem:[%s3903 + $0x8c8] sm:$0xff]
    %v4186 = vld [vmem:[%s3903 + $0x8d0] sm:$0xff]
    %v4187 = vld [vmem:[%s3903 + $0x8d8] sm:$0xff]
    %v4188 = vld [vmem:[%s3903 + $0x8e0] sm:$0xff]
    %v4189 = vld [vmem:[%s3903 + $0x8e8] sm:$0xff]
    %v4190 = vld [vmem:[%s3903 + $0x8f0] sm:$0xff]
    %v4191 = vld [vmem:[%s3903 + $0x8f8] sm:$0xff]
    %v4192 = vld [vmem:[%s3903 + $0x900] sm:$0xff]
    %v4193 = vld [vmem:[%s3903 + $0x908] sm:$0xff]
    %v4194 = vld [vmem:[%s3903 + $0x910] sm:$0xff]
    %v4195 = vld [vmem:[%s3903 + $0x918] sm:$0xff]
    %v4196 = vld [vmem:[%s3903 + $0x920] sm:$0xff]
    %v4197 = vld [vmem:[%s3903 + $0x928] sm:$0xff]
    %v4198 = vld [vmem:[%s3903 + $0x930] sm:$0xff]
    %v4199 = vld [vmem:[%s3903 + $0x938] sm:$0xff]
    %v4200 = vld [vmem:[%s3903 + $0x940] sm:$0xff]
    %v4201 = vld [vmem:[%s3903 + $0x948] sm:$0xff]
    %v4202 = vld [vmem:[%s3903 + $0x950] sm:$0xff]
    %v4203 = vld [vmem:[%s3903 + $0x958] sm:$0xff]
    %v4204 = vld [vmem:[%s3903 + $0x960] sm:$0xff]
    %v4205 = vld [vmem:[%s3903 + $0x968] sm:$0xff]
    %v4206 = vld [vmem:[%s3903 + $0x970] sm:$0xff]
    %v4207 = vld [vmem:[%s3903 + $0x978] sm:$0xff]
    %v4208 = vld [vmem:[%s3903 + $0x980] sm:$0xff]
    %v4209 = vld [vmem:[%s3903 + $0x988] sm:$0xff]
    %v4210 = vld [vmem:[%s3903 + $0x990] sm:$0xff]
    %v4211 = vld [vmem:[%s3903 + $0x998] sm:$0xff]
    %v4212 = vld [vmem:[%s3903 + $0x9a0] sm:$0xff]
    %v4213 = vld [vmem:[%s3903 + $0x9a8] sm:$0xff]
    %v4214 = vld [vmem:[%s3903 + $0x9b0] sm:$0xff]
    %v4215 = vld [vmem:[%s3903 + $0x9b8] sm:$0xff]
    %v4216 = vld [vmem:[%s3903 + $0x9c0] sm:$0xff]
    %v4217 = vld [vmem:[%s3903 + $0x9c8] sm:$0xff]
    %v4218 = vld [vmem:[%s3903 + $0x9d0] sm:$0xff]
    %v4219 = vld [vmem:[%s3903 + $0x9d8] sm:$0xff]
    %v4220 = vld [vmem:[%s3903 + $0x9e0] sm:$0xff]
    %v4221 = vld [vmem:[%s3903 + $0x9e8] sm:$0xff]
    %v4222 = vld [vmem:[%s3903 + $0x9f0] sm:$0xff]
    %v4223 = vld [vmem:[%s3903 + $0x9f8] sm:$0xff]
    %v4224 = vld [vmem:[%s3903 + $0xa00] sm:$0xff]
    %v4225 = vld [vmem:[%s3903 + $0xa08] sm:$0xff]
    %v4226 = vld [vmem:[%s3903 + $0xa10] sm:$0xff]
    %v4227 = vld [vmem:[%s3903 + $0xa18] sm:$0xff]
    %v4228 = vld [vmem:[%s3903 + $0xa20] sm:$0xff]
    %v4229 = vld [vmem:[%s3903 + $0xa28] sm:$0xff]
    %v4230 = vld [vmem:[%s3903 + $0xa30] sm:$0xff]
    %v4231 = vld [vmem:[%s3903 + $0xa38] sm:$0xff]
    %v4232 = vld [vmem:[%s3903 + $0xa40] sm:$0xff]
    %v4233 = vld [vmem:[%s3903 + $0xa48] sm:$0xff]
    %v4234 = vld [vmem:[%s3903 + $0xa50] sm:$0xff]
    %v4235 = vld [vmem:[%s3903 + $0xa58] sm:$0xff]
    %v4236 = vld [vmem:[%s3903 + $0xa60] sm:$0xff]
    %v4237 = vld [vmem:[%s3903 + $0xa68] sm:$0xff]
    %v4238 = vld [vmem:[%s3903 + $0xa70] sm:$0xff]
    %v4239 = vld [vmem:[%s3903 + $0xa78] sm:$0xff]
    %v4240 = vld [vmem:[%s3903 + $0xa80] sm:$0xff]
    %v4241 = vld [vmem:[%s3903 + $0xa88] sm:$0xff]
    %v4242 = vld [vmem:[%s3903 + $0xa90] sm:$0xff]
    %v4243 = vld [vmem:[%s3903 + $0xa98] sm:$0xff]
    %v4244 = vld [vmem:[%s3903 + $0xaa0] sm:$0xff]
    %v4245 = vld [vmem:[%s3903 + $0xaa8] sm:$0xff]
    %v4246 = vld [vmem:[%s3903 + $0xab0] sm:$0xff]
    %v4247 = vld [vmem:[%s3903 + $0xab8] sm:$0xff]
    %v4248 = vld [vmem:[%s3903 + $0xac0] sm:$0xff]
    %v4249 = vld [vmem:[%s3903 + $0xac8] sm:$0xff]
    %v4250 = vld [vmem:[%s3903 + $0xad0] sm:$0xff]
    %v4251 = vld [vmem:[%s3903 + $0xad8] sm:$0xff]
    %v4252 = vld [vmem:[%s3903 + $0xae0] sm:$0xff]
    %v4253 = vld [vmem:[%s3903 + $0xae8] sm:$0xff]
    %v4254 = vld [vmem:[%s3903 + $0xaf0] sm:$0xff]
    %v4255 = vld [vmem:[%s3903 + $0xaf8] sm:$0xff]
    %v4256 = vld [vmem:[%s3903 + $0xb00] sm:$0xff]
    %v4257 = vld [vmem:[%s3903 + $0xb08] sm:$0xff]
    %v4258 = vld [vmem:[%s3903 + $0xb10] sm:$0xff]
    %v4259 = vld [vmem:[%s3903 + $0xb18] sm:$0xff]
    %v4260 = vld [vmem:[%s3903 + $0xb20] sm:$0xff]
    %v4261 = vld [vmem:[%s3903 + $0xb28] sm:$0xff]
    %v4262 = vld [vmem:[%s3903 + $0xb30] sm:$0xff]
    %v4263 = vld [vmem:[%s3903 + $0xb38] sm:$0xff]
    %v4264 = vld [vmem:[%s3903 + $0xb40] sm:$0xff]
    %v4265 = vld [vmem:[%s3903 + $0xb48] sm:$0xff]
    %v4266 = vld [vmem:[%s3903 + $0xb50] sm:$0xff]
    %v4267 = vld [vmem:[%s3903 + $0xb58] sm:$0xff]
    %v4268 = vld [vmem:[%s3903 + $0xb60] sm:$0xff]
    %v4269 = vld [vmem:[%s3903 + $0xb68] sm:$0xff]
    %v4270 = vld [vmem:[%s3903 + $0xb70] sm:$0xff]
    %v4271 = vld [vmem:[%s3903 + $0xb78] sm:$0xff]
    %v4272 = vld [vmem:[%s3903 + $0xb80] sm:$0xff]
    %v4273 = vld [vmem:[%s3903 + $0xb88] sm:$0xff]
    %v4274 = vld [vmem:[%s3903 + $0xb90] sm:$0xff]
    %v4275 = vld [vmem:[%s3903 + $0xb98] sm:$0xff]
    %v4276 = vld [vmem:[%s3903 + $0xba0] sm:$0xff]
    %v4277 = vld [vmem:[%s3903 + $0xba8] sm:$0xff]
    %v4278 = vld [vmem:[%s3903 + $0xbb0] sm:$0xff]
    %v4279 = vld [vmem:[%s3903 + $0xbb8] sm:$0xff]
    %v4280 = vld [vmem:[%s3903 + $0xbc0] sm:$0xff]
    %v4281 = vld [vmem:[%s3903 + $0xbc8] sm:$0xff]
    %v4282 = vld [vmem:[%s3903 + $0xbd0] sm:$0xff]
    %v4283 = vld [vmem:[%s3903 + $0xbd8] sm:$0xff]
    %v4284 = vld [vmem:[%s3903 + $0xbe0] sm:$0xff]
    %v4285 = vld [vmem:[%s3903 + $0xbe8] sm:$0xff]
    %v4286 = vld [vmem:[%s3903 + $0xbf0] sm:$0xff]
    %v4287 = vld [vmem:[%s3903 + $0xbf8] sm:$0xff]
    %s4288 = scalar_lea.vmem [#allocation10], 18
    %v4289 = vld [vmem:[%s4288] sm:$0x3f]
    %v4291 = vlaneseq
    %v4292 = vshrl.u32 %v4291, 7
    %v4293 = vsub.s32 0, %v4292
    %v4294 = vrot.slane %v4289, %v4293
    %v4295 = vlaneseq
    %v4296 = vshrl.u32 %v4295, 7
    %v4297 = vsub.s32 1, %v4296
    %v4298 = vrot.slane %v4289, %v4297
    %v4299 = vlaneseq
    %v4300 = vshrl.u32 %v4299, 7
    %v4301 = vsub.s32 2, %v4300
    %v4302 = vrot.slane %v4289, %v4301
    %v4303 = vlaneseq
    %v4304 = vshrl.u32 %v4303, 7
    %v4305 = vsub.s32 3, %v4304
    %v4306 = vrot.slane %v4289, %v4305
    %v4307 = vlaneseq
    %v4308 = vshrl.u32 %v4307, 7
    %v4309 = vsub.s32 4, %v4308
    %v4310 = vrot.slane %v4289, %v4309
    %v4311 = vlaneseq
    %v4312 = vshrl.u32 %v4311, 7
    %v4313 = vsub.s32 5, %v4312
    %v4314 = vrot.slane %v4289, %v4313
    %4321 = vmatprep.subr.mxu0 %v3995
    %4322 = vmatpush1.msra.mxu0 %v3994
    %4323 = vmatprep.subr.mxu0 %v3989
    %4324 = vmatpush1.msra.mxu0 %v3988
    %4325 = vmatprep.subr.mxu0 %v3983
    %4326 = vmatpush1.msra.mxu0 %v3982
    %4327 = vmatprep.subr.mxu0 %v3977
    %4328 = vmatpush1.msra.mxu0 %v3976
    %4329 = vmatprep.subr.mxu0 %v3971
    %4330 = vmatpush1.msra.mxu0 %v3970
    %4331 = vmatprep.subr.mxu0 %v3965
    %4332 = vmatpush1.msra.mxu0 %v3964
    %4333 = vmatprep.subr.mxu0 %v3959
    %4334 = vmatpush1.msra.mxu0 %v3958
    %4335 = vmatprep.subr.mxu0 %v3953
    %4336 = vmatpush1.msra.mxu0 %v3952
    %4337 = vmatprep.subr.mxu0 %v3947
    %4338 = vmatpush1.msra.mxu0 %v3946
    %4339 = vmatprep.subr.mxu0 %v3941
    %4340 = vmatpush1.msra.mxu0 %v3940
    %4341 = vmatprep.subr.mxu0 %v3935
    %4342 = vmatpush1.msra.mxu0 %v3934
    %4343 = vmatprep.subr.mxu0 %v3929
    %4344 = vmatpush1.msra.mxu0 %v3928
    %4345 = vmatprep.subr.mxu0 %v3923
    %4346 = vmatpush1.msra.mxu0 %v3922
    %4347 = vmatprep.subr.mxu0 %v3917
    %4348 = vmatpush1.msra.mxu0 %v3916
    %4349 = vmatprep.subr.mxu0 %v3911
    %4350 = vmatpush1.msra.mxu0 %v3910
    %4351 = vmatprep.subr.mxu0 %v3905
    %4352 = vmatpush1.msra.mxu0 %v3904
    %4353 = vmatprep.subr.mxu0 %v4091
    %4354 = vmatpush2.msra.mxu0 %v4090
    %4355 = vmatprep.subr.mxu0 %v4085
    %4356 = vmatpush2.msra.mxu0 %v4084
    %4357 = vmatprep.subr.mxu0 %v4079
    %4358 = vmatpush2.msra.mxu0 %v4078
    %4359 = vmatprep.subr.mxu0 %v4073
    %4360 = vmatpush2.msra.mxu0 %v4072
    %4361 = vmatprep.subr.mxu0 %v4067
    %4362 = vmatpush2.msra.mxu0 %v4066
    %4363 = vmatprep.subr.mxu0 %v4061
    %4364 = vmatpush2.msra.mxu0 %v4060
    %4365 = vmatprep.subr.mxu0 %v4055
    %4366 = vmatpush2.msra.mxu0 %v4054
    %4367 = vmatprep.subr.mxu0 %v4049
    %4368 = vmatpush2.msra.mxu0 %v4048
    %4369 = vmatprep.subr.mxu0 %v4043
    %4370 = vmatpush2.msra.mxu0 %v4042
    %4371 = vmatprep.subr.mxu0 %v4037
    %4372 = vmatpush2.msra.mxu0 %v4036
    %4373 = vmatprep.subr.mxu0 %v4031
    %4374 = vmatpush2.msra.mxu0 %v4030
    %4375 = vmatprep.subr.mxu0 %v4025
    %4376 = vmatpush2.msra.mxu0 %v4024
    %4377 = vmatprep.subr.mxu0 %v4019
    %4378 = vmatpush2.msra.mxu0 %v4018
    %4379 = vmatprep.subr.mxu0 %v4013
    %4380 = vmatpush2.msra.mxu0 %v4012
    %4381 = vmatprep.subr.mxu0 %v4007
    %4382 = vmatpush2.msra.mxu0 %v4006
    %4383 = vmatprep.subr.mxu0 %v4001
    %4384 = vmatpush2.msra.mxu0 %v4000
    %4385 = vmatprep.mubr.f32.mxu0 %v3900
    %4386 = vmatmul.mubr.f32.gmra.mxu0 %v3899
    %v4387 = vpop.f32.mrf.mxu0
    %v4388 = vadd.f32 %v4294, %v4387
    %v4389 = vpop.f32.mrf.mxu0
    %v4390 = vadd.f32 %v4298, %v4389
    %4391 = vdwg.mxu0
    %4392 = vmatprep.subr.mxu0 %v4187
    %4393 = vmatpush1.msra.mxu0 %v4186
    %4394 = vmatprep.subr.mxu0 %v4181
    %4395 = vmatpush1.msra.mxu0 %v4180
    %4396 = vmatprep.subr.mxu0 %v4175
    %4397 = vmatpush1.msra.mxu0 %v4174
    %4398 = vmatprep.subr.mxu0 %v4169
    %4399 = vmatpush1.msra.mxu0 %v4168
    %4400 = vmatprep.subr.mxu0 %v4163
    %4401 = vmatpush1.msra.mxu0 %v4162
    %4402 = vmatprep.subr.mxu0 %v4157
    %4403 = vmatpush1.msra.mxu0 %v4156
    %4404 = vmatprep.subr.mxu0 %v4151
    %4405 = vmatpush1.msra.mxu0 %v4150
    %4406 = vmatprep.subr.mxu0 %v4145
    %4407 = vmatpush1.msra.mxu0 %v4144
    %4408 = vmatprep.subr.mxu0 %v4139
    %4409 = vmatpush1.msra.mxu0 %v4138
    %4410 = vmatprep.subr.mxu0 %v4133
    %4411 = vmatpush1.msra.mxu0 %v4132
    %4412 = vmatprep.subr.mxu0 %v4127
    %4413 = vmatpush1.msra.mxu0 %v4126
    %4414 = vmatprep.subr.mxu0 %v4121
    %4415 = vmatpush1.msra.mxu0 %v4120
    %4416 = vmatprep.subr.mxu0 %v4115
    %4417 = vmatpush1.msra.mxu0 %v4114
    %4418 = vmatprep.subr.mxu0 %v4109
    %4419 = vmatpush1.msra.mxu0 %v4108
    %4420 = vmatprep.subr.mxu0 %v4103
    %4421 = vmatpush1.msra.mxu0 %v4102
    %4422 = vmatprep.subr.mxu0 %v4097
    %4423 = vmatpush1.msra.mxu0 %v4096
    %4424 = vmatprep.subr.mxu0 %v4283
    %4425 = vmatpush2.msra.mxu0 %v4282
    %4426 = vmatprep.subr.mxu0 %v4277
    %4427 = vmatpush2.msra.mxu0 %v4276
    %4428 = vmatprep.subr.mxu0 %v4271
    %4429 = vmatpush2.msra.mxu0 %v4270
    %4430 = vmatprep.subr.mxu0 %v4265
    %4431 = vmatpush2.msra.mxu0 %v4264
    %4432 = vmatprep.subr.mxu0 %v4259
    %4433 = vmatpush2.msra.mxu0 %v4258
    %4434 = vmatprep.subr.mxu0 %v4253
    %4435 = vmatpush2.msra.mxu0 %v4252
    %4436 = vmatprep.subr.mxu0 %v4247
    %4437 = vmatpush2.msra.mxu0 %v4246
    %4438 = vmatprep.subr.mxu0 %v4241
    %4439 = vmatpush2.msra.mxu0 %v4240
    %4440 = vmatprep.subr.mxu0 %v4235
    %4441 = vmatpush2.msra.mxu0 %v4234
    %4442 = vmatprep.subr.mxu0 %v4229
    %4443 = vmatpush2.msra.mxu0 %v4228
    %4444 = vmatprep.subr.mxu0 %v4223
    %4445 = vmatpush2.msra.mxu0 %v4222
    %4446 = vmatprep.subr.mxu0 %v4217
    %4447 = vmatpush2.msra.mxu0 %v4216
    %4448 = vmatprep.subr.mxu0 %v4211
    %4449 = vmatpush2.msra.mxu0 %v4210
    %4450 = vmatprep.subr.mxu0 %v4205
    %4451 = vmatpush2.msra.mxu0 %v4204
    %4452 = vmatprep.subr.mxu0 %v4199
    %4453 = vmatpush2.msra.mxu0 %v4198
    %4454 = vmatprep.subr.mxu0 %v4193
    %4455 = vmatpush2.msra.mxu0 %v4192
    %4456 = vmatprep.mubr.f32.mxu0 %v3902
    %4457 = vmatmul.mubr.f32.gmra.mxu0 %v3901
    %v4458 = vpop.f32.mrf.mxu0
    %v4459 = vadd.f32 %v4388, %v4458
    %v4460 = vpop.f32.mrf.mxu0
    %v4461 = vadd.f32 %v4390, %v4460
    %4462 = vdwg.mxu0
    %4463 = vmatprep.subr.mxu0 %v3997
    %4464 = vmatpush1.msra.mxu0 %v3996
    %4465 = vmatprep.subr.mxu0 %v3991
    %4466 = vmatpush1.msra.mxu0 %v3990
    %4467 = vmatprep.subr.mxu0 %v3985
    %4468 = vmatpush1.msra.mxu0 %v3984
    %4469 = vmatprep.subr.mxu0 %v3979
    %4470 = vmatpush1.msra.mxu0 %v3978
    %4471 = vmatprep.subr.mxu0 %v3973
    %4472 = vmatpush1.msra.mxu0 %v3972
    %4473 = vmatprep.subr.mxu0 %v3967
    %4474 = vmatpush1.msra.mxu0 %v3966
    %4475 = vmatprep.subr.mxu0 %v3961
    %4476 = vmatpush1.msra.mxu0 %v3960
    %4477 = vmatprep.subr.mxu0 %v3955
    %4478 = vmatpush1.msra.mxu0 %v3954
    %4479 = vmatprep.subr.mxu0 %v3949
    %4480 = vmatpush1.msra.mxu0 %v3948
    %4481 = vmatprep.subr.mxu0 %v3943
    %4482 = vmatpush1.msra.mxu0 %v3942
    %4483 = vmatprep.subr.mxu0 %v3937
    %4484 = vmatpush1.msra.mxu0 %v3936
    %4485 = vmatprep.subr.mxu0 %v3931
    %4486 = vmatpush1.msra.mxu0 %v3930
    %4487 = vmatprep.subr.mxu0 %v3925
    %4488 = vmatpush1.msra.mxu0 %v3924
    %4489 = vmatprep.subr.mxu0 %v3919
    %4490 = vmatpush1.msra.mxu0 %v3918
    %4491 = vmatprep.subr.mxu0 %v3913
    %4492 = vmatpush1.msra.mxu0 %v3912
    %4493 = vmatprep.subr.mxu0 %v3907
    %4494 = vmatpush1.msra.mxu0 %v3906
    %4495 = vmatprep.subr.mxu0 %v4093
    %4496 = vmatpush2.msra.mxu0 %v4092
    %4497 = vmatprep.subr.mxu0 %v4087
    %4498 = vmatpush2.msra.mxu0 %v4086
    %4499 = vmatprep.subr.mxu0 %v4081
    %4500 = vmatpush2.msra.mxu0 %v4080
    %4501 = vmatprep.subr.mxu0 %v4075
    %4502 = vmatpush2.msra.mxu0 %v4074
    %4503 = vmatprep.subr.mxu0 %v4069
    %4504 = vmatpush2.msra.mxu0 %v4068
    %4505 = vmatprep.subr.mxu0 %v4063
    %4506 = vmatpush2.msra.mxu0 %v4062
    %4507 = vmatprep.subr.mxu0 %v4057
    %4508 = vmatpush2.msra.mxu0 %v4056
    %4509 = vmatprep.subr.mxu0 %v4051
    %4510 = vmatpush2.msra.mxu0 %v4050
    %4511 = vmatprep.subr.mxu0 %v4045
    %4512 = vmatpush2.msra.mxu0 %v4044
    %4513 = vmatprep.subr.mxu0 %v4039
    %4514 = vmatpush2.msra.mxu0 %v4038
    %4515 = vmatprep.subr.mxu0 %v4033
    %4516 = vmatpush2.msra.mxu0 %v4032
    %4517 = vmatprep.subr.mxu0 %v4027
    %4518 = vmatpush2.msra.mxu0 %v4026
    %4519 = vmatprep.subr.mxu0 %v4021
    %4520 = vmatpush2.msra.mxu0 %v4020
    %4521 = vmatprep.subr.mxu0 %v4015
    %4522 = vmatpush2.msra.mxu0 %v4014
    %4523 = vmatprep.subr.mxu0 %v4009
    %4524 = vmatpush2.msra.mxu0 %v4008
    %4525 = vmatprep.subr.mxu0 %v4003
    %4526 = vmatpush2.msra.mxu0 %v4002
    %4527 = vmatprep.mubr.f32.mxu0 %v3900
    %4528 = vmatmul.mubr.f32.gmra.mxu0 %v3899
    %v4529 = vpop.f32.mrf.mxu0
    %v4530 = vadd.f32 %v4302, %v4529
    %v4531 = vpop.f32.mrf.mxu0
    %v4532 = vadd.f32 %v4306, %v4531
    %4533 = vdwg.mxu0
    %4534 = vmatprep.subr.mxu0 %v4189
    %4535 = vmatpush1.msra.mxu0 %v4188
    %4536 = vmatprep.subr.mxu0 %v4183
    %4537 = vmatpush1.msra.mxu0 %v4182
    %4538 = vmatprep.subr.mxu0 %v4177
    %4539 = vmatpush1.msra.mxu0 %v4176
    %4540 = vmatprep.subr.mxu0 %v4171
    %4541 = vmatpush1.msra.mxu0 %v4170
    %4542 = vmatprep.subr.mxu0 %v4165
    %4543 = vmatpush1.msra.mxu0 %v4164
    %4544 = vmatprep.subr.mxu0 %v4159
    %4545 = vmatpush1.msra.mxu0 %v4158
    %4546 = vmatprep.subr.mxu0 %v4153
    %4547 = vmatpush1.msra.mxu0 %v4152
    %4548 = vmatprep.subr.mxu0 %v4147
    %4549 = vmatpush1.msra.mxu0 %v4146
    %4550 = vmatprep.subr.mxu0 %v4141
    %4551 = vmatpush1.msra.mxu0 %v4140
    %4552 = vmatprep.subr.mxu0 %v4135
    %4553 = vmatpush1.msra.mxu0 %v4134
    %4554 = vmatprep.subr.mxu0 %v4129
    %4555 = vmatpush1.msra.mxu0 %v4128
    %4556 = vmatprep.subr.mxu0 %v4123
    %4557 = vmatpush1.msra.mxu0 %v4122
    %4558 = vmatprep.subr.mxu0 %v4117
    %4559 = vmatpush1.msra.mxu0 %v4116
    %4560 = vmatprep.subr.mxu0 %v4111
    %4561 = vmatpush1.msra.mxu0 %v4110
    %4562 = vmatprep.subr.mxu0 %v4105
    %4563 = vmatpush1.msra.mxu0 %v4104
    %4564 = vmatprep.subr.mxu0 %v4099
    %4565 = vmatpush1.msra.mxu0 %v4098
    %4566 = vmatprep.subr.mxu0 %v4285
    %4567 = vmatpush2.msra.mxu0 %v4284
    %4568 = vmatprep.subr.mxu0 %v4279
    %4569 = vmatpush2.msra.mxu0 %v4278
    %4570 = vmatprep.subr.mxu0 %v4273
    %4571 = vmatpush2.msra.mxu0 %v4272
    %4572 = vmatprep.subr.mxu0 %v4267
    %4573 = vmatpush2.msra.mxu0 %v4266
    %4574 = vmatprep.subr.mxu0 %v4261
    %4575 = vmatpush2.msra.mxu0 %v4260
    %4576 = vmatprep.subr.mxu0 %v4255
    %4577 = vmatpush2.msra.mxu0 %v4254
    %4578 = vmatprep.subr.mxu0 %v4249
    %4579 = vmatpush2.msra.mxu0 %v4248
    %4580 = vmatprep.subr.mxu0 %v4243
    %4581 = vmatpush2.msra.mxu0 %v4242
    %4582 = vmatprep.subr.mxu0 %v4237
    %4583 = vmatpush2.msra.mxu0 %v4236
    %4584 = vmatprep.subr.mxu0 %v4231
    %4585 = vmatpush2.msra.mxu0 %v4230
    %4586 = vmatprep.subr.mxu0 %v4225
    %4587 = vmatpush2.msra.mxu0 %v4224
    %4588 = vmatprep.subr.mxu0 %v4219
    %4589 = vmatpush2.msra.mxu0 %v4218
    %4590 = vmatprep.subr.mxu0 %v4213
    %4591 = vmatpush2.msra.mxu0 %v4212
    %4592 = vmatprep.subr.mxu0 %v4207
    %4593 = vmatpush2.msra.mxu0 %v4206
    %4594 = vmatprep.subr.mxu0 %v4201
    %4595 = vmatpush2.msra.mxu0 %v4200
    %4596 = vmatprep.subr.mxu0 %v4195
    %4597 = vmatpush2.msra.mxu0 %v4194
    %4598 = vmatprep.mubr.f32.mxu0 %v3902
    %4599 = vmatmul.mubr.f32.gmra.mxu0 %v3901
    %v4600 = vpop.f32.mrf.mxu0
    %v4601 = vadd.f32 %v4530, %v4600
    %v4602 = vpop.f32.mrf.mxu0
    %v4603 = vadd.f32 %v4532, %v4602
    %4604 = vdwg.mxu0
    %4605 = vmatprep.subr.mxu0 %v3999
    %4606 = vmatpush1.msra.mxu0 %v3998
    %4607 = vmatprep.subr.mxu0 %v3993
    %4608 = vmatpush1.msra.mxu0 %v3992
    %4609 = vmatprep.subr.mxu0 %v3987
    %4610 = vmatpush1.msra.mxu0 %v3986
    %4611 = vmatprep.subr.mxu0 %v3981
    %4612 = vmatpush1.msra.mxu0 %v3980
    %4613 = vmatprep.subr.mxu0 %v3975
    %4614 = vmatpush1.msra.mxu0 %v3974
    %4615 = vmatprep.subr.mxu0 %v3969
    %4616 = vmatpush1.msra.mxu0 %v3968
    %4617 = vmatprep.subr.mxu0 %v3963
    %4618 = vmatpush1.msra.mxu0 %v3962
    %4619 = vmatprep.subr.mxu0 %v3957
    %4620 = vmatpush1.msra.mxu0 %v3956
    %4621 = vmatprep.subr.mxu0 %v3951
    %4622 = vmatpush1.msra.mxu0 %v3950
    %4623 = vmatprep.subr.mxu0 %v3945
    %4624 = vmatpush1.msra.mxu0 %v3944
    %4625 = vmatprep.subr.mxu0 %v3939
    %4626 = vmatpush1.msra.mxu0 %v3938
    %4627 = vmatprep.subr.mxu0 %v3933
    %4628 = vmatpush1.msra.mxu0 %v3932
    %4629 = vmatprep.subr.mxu0 %v3927
    %4630 = vmatpush1.msra.mxu0 %v3926
    %4631 = vmatprep.subr.mxu0 %v3921
    %4632 = vmatpush1.msra.mxu0 %v3920
    %4633 = vmatprep.subr.mxu0 %v3915
    %4634 = vmatpush1.msra.mxu0 %v3914
    %4635 = vmatprep.subr.mxu0 %v3909
    %4636 = vmatpush1.msra.mxu0 %v3908
    %4637 = vmatprep.subr.mxu0 %v4095
    %4638 = vmatpush2.msra.mxu0 %v4094
    %4639 = vmatprep.subr.mxu0 %v4089
    %4640 = vmatpush2.msra.mxu0 %v4088
    %4641 = vmatprep.subr.mxu0 %v4083
    %4642 = vmatpush2.msra.mxu0 %v4082
    %4643 = vmatprep.subr.mxu0 %v4077
    %4644 = vmatpush2.msra.mxu0 %v4076
    %4645 = vmatprep.subr.mxu0 %v4071
    %4646 = vmatpush2.msra.mxu0 %v4070
    %4647 = vmatprep.subr.mxu0 %v4065
    %4648 = vmatpush2.msra.mxu0 %v4064
    %4649 = vmatprep.subr.mxu0 %v4059
    %4650 = vmatpush2.msra.mxu0 %v4058
    %4651 = vmatprep.subr.mxu0 %v4053
    %4652 = vmatpush2.msra.mxu0 %v4052
    %4653 = vmatprep.subr.mxu0 %v4047
    %4654 = vmatpush2.msra.mxu0 %v4046
    %4655 = vmatprep.subr.mxu0 %v4041
    %4656 = vmatpush2.msra.mxu0 %v4040
    %4657 = vmatprep.subr.mxu0 %v4035
    %4658 = vmatpush2.msra.mxu0 %v4034
    %4659 = vmatprep.subr.mxu0 %v4029
    %4660 = vmatpush2.msra.mxu0 %v4028
    %4661 = vmatprep.subr.mxu0 %v4023
    %4662 = vmatpush2.msra.mxu0 %v4022
    %4663 = vmatprep.subr.mxu0 %v4017
    %4664 = vmatpush2.msra.mxu0 %v4016
    %4665 = vmatprep.subr.mxu0 %v4011
    %4666 = vmatpush2.msra.mxu0 %v4010
    %4667 = vmatprep.subr.mxu0 %v4005
    %4668 = vmatpush2.msra.mxu0 %v4004
    %4669 = vmatprep.mubr.f32.mxu0 %v3900
    %4670 = vmatmul.mubr.f32.gmra.mxu0 %v3899
    %v4671 = vpop.f32.mrf.mxu0
    %v4672 = vadd.f32 %v4310, %v4671
    %v4673 = vpop.f32.mrf.mxu0
    %v4674 = vadd.f32 %v4314, %v4673
    %4675 = vdwg.mxu0
    %4676 = vmatprep.subr.mxu0 %v4191
    %4677 = vmatpush1.msra.mxu0 %v4190
    %4678 = vmatprep.subr.mxu0 %v4185
    %4679 = vmatpush1.msra.mxu0 %v4184
    %4680 = vmatprep.subr.mxu0 %v4179
    %4681 = vmatpush1.msra.mxu0 %v4178
    %4682 = vmatprep.subr.mxu0 %v4173
    %4683 = vmatpush1.msra.mxu0 %v4172
    %4684 = vmatprep.subr.mxu0 %v4167
    %4685 = vmatpush1.msra.mxu0 %v4166
    %4686 = vmatprep.subr.mxu0 %v4161
    %4687 = vmatpush1.msra.mxu0 %v4160
    %4688 = vmatprep.subr.mxu0 %v4155
    %4689 = vmatpush1.msra.mxu0 %v4154
    %4690 = vmatprep.subr.mxu0 %v4149
    %4691 = vmatpush1.msra.mxu0 %v4148
    %4692 = vmatprep.subr.mxu0 %v4143
    %4693 = vmatpush1.msra.mxu0 %v4142
    %4694 = vmatprep.subr.mxu0 %v4137
    %4695 = vmatpush1.msra.mxu0 %v4136
    %4696 = vmatprep.subr.mxu0 %v4131
    %4697 = vmatpush1.msra.mxu0 %v4130
    %4698 = vmatprep.subr.mxu0 %v4125
    %4699 = vmatpush1.msra.mxu0 %v4124
    %4700 = vmatprep.subr.mxu0 %v4119
    %4701 = vmatpush1.msra.mxu0 %v4118
    %4702 = vmatprep.subr.mxu0 %v4113
    %4703 = vmatpush1.msra.mxu0 %v4112
    %4704 = vmatprep.subr.mxu0 %v4107
    %4705 = vmatpush1.msra.mxu0 %v4106
    %4706 = vmatprep.subr.mxu0 %v4101
    %4707 = vmatpush1.msra.mxu0 %v4100
    %4708 = vmatprep.subr.mxu0 %v4287
    %4709 = vmatpush2.msra.mxu0 %v4286
    %4710 = vmatprep.subr.mxu0 %v4281
    %4711 = vmatpush2.msra.mxu0 %v4280
    %4712 = vmatprep.subr.mxu0 %v4275
    %4713 = vmatpush2.msra.mxu0 %v4274
    %4714 = vmatprep.subr.mxu0 %v4269
    %4715 = vmatpush2.msra.mxu0 %v4268
    %4716 = vmatprep.subr.mxu0 %v4263
    %4717 = vmatpush2.msra.mxu0 %v4262
    %4718 = vmatprep.subr.mxu0 %v4257
    %4719 = vmatpush2.msra.mxu0 %v4256
    %4720 = vmatprep.subr.mxu0 %v4251
    %4721 = vmatpush2.msra.mxu0 %v4250
    %4722 = vmatprep.subr.mxu0 %v4245
    %4723 = vmatpush2.msra.mxu0 %v4244
    %4724 = vmatprep.subr.mxu0 %v4239
    %4725 = vmatpush2.msra.mxu0 %v4238
    %4726 = vmatprep.subr.mxu0 %v4233
    %4727 = vmatpush2.msra.mxu0 %v4232
    %4728 = vmatprep.subr.mxu0 %v4227
    %4729 = vmatpush2.msra.mxu0 %v4226
    %4730 = vmatprep.subr.mxu0 %v4221
    %4731 = vmatpush2.msra.mxu0 %v4220
    %4732 = vmatprep.subr.mxu0 %v4215
    %4733 = vmatpush2.msra.mxu0 %v4214
    %4734 = vmatprep.subr.mxu0 %v4209
    %4735 = vmatpush2.msra.mxu0 %v4208
    %4736 = vmatprep.subr.mxu0 %v4203
    %4737 = vmatpush2.msra.mxu0 %v4202
    %4738 = vmatprep.subr.mxu0 %v4197
    %4739 = vmatpush2.msra.mxu0 %v4196
    %4740 = vmatprep.mubr.f32.mxu0 %v3902
    %4741 = vmatmul.mubr.f32.gmra.mxu0 %v3901
    %v4742 = vpop.f32.mrf.mxu0
    %v4743 = vadd.f32 %v4672, %v4742
    %v4744 = vpop.f32.mrf.mxu0
    %v4745 = vadd.f32 %v4674, %v4744
    %4746 = vdwg.mxu0
    %v4747 = vmax.f32 %v4459, 0.0
    %v4748 = vmax.f32 %v4461, 0.0
    %v4749 = vmax.f32 %v4601, 0.0
    %v4750 = vmax.f32 %v4603, 0.0
    %v4751 = vmax.f32 %v4743, 0.0
    %v4752 = vmax.f32 %v4745, 0.0
    %v4753 = vadd.f32 %v4747, %v4749
    %v4754 = vadd.f32 %v4748, %v4750
    %v4755 = vadd.f32 %v4753, %v4751
    %v4756 = vadd.f32 %v4754, %v4752
    %v4757 = vld [vmem:[#allocation11] sm:$0xff]
    %v4758 = vld [vmem:[#allocation11 + $0x8] sm:$0xff]
    %v4759 = vld [vmem:[#allocation11 + $0x10] sm:$0xff]
    %v4760 = vld [vmem:[#allocation11 + $0x18] sm:$0xff]
    %v4761 = vld [vmem:[#allocation11 + $0x20] sm:$0xff]
    %v4762 = vld [vmem:[#allocation11 + $0x28] sm:$0xff]
    %v4763 = vld [vmem:[#allocation11 + $0x30] sm:$0xff]
    %v4764 = vld [vmem:[#allocation11 + $0x38] sm:$0xff]
    %v4765 = vld [vmem:[#allocation11 + $0x40] sm:$0xff]
    %v4766 = vld [vmem:[#allocation11 + $0x48] sm:$0xff]
    %v4767 = vld [vmem:[#allocation11 + $0x50] sm:$0xff]
    %v4768 = vld [vmem:[#allocation11 + $0x58] sm:$0xff]
    %v4769 = vld [vmem:[#allocation11 + $0x60] sm:$0xff]
    %v4770 = vld [vmem:[#allocation11 + $0x68] sm:$0xff]
    %v4771 = vld [vmem:[#allocation11 + $0x70] sm:$0xff]
    %v4772 = vld [vmem:[#allocation11 + $0x78] sm:$0xff]
    %v4773 = vld [vmem:[#allocation11 + $0x80] sm:$0xff]
    %v4774 = vld [vmem:[#allocation11 + $0x88] sm:$0xff]
    %v4775 = vld [vmem:[#allocation11 + $0x90] sm:$0xff]
    %v4776 = vld [vmem:[#allocation11 + $0x98] sm:$0xff]
    %v4777 = vld [vmem:[#allocation11 + $0xa0] sm:$0xff]
    %v4778 = vld [vmem:[#allocation11 + $0xa8] sm:$0xff]
    %v4779 = vld [vmem:[#allocation11 + $0xb0] sm:$0xff]
    %v4780 = vld [vmem:[#allocation11 + $0xb8] sm:$0xff]
    %v4781 = vld [vmem:[#allocation11 + $0xc0] sm:$0xff]
    %v4782 = vld [vmem:[#allocation11 + $0xc8] sm:$0xff]
    %v4783 = vld [vmem:[#allocation11 + $0xd0] sm:$0xff]
    %v4784 = vld [vmem:[#allocation11 + $0xd8] sm:$0xff]
    %v4785 = vld [vmem:[#allocation11 + $0xe0] sm:$0xff]
    %v4786 = vld [vmem:[#allocation11 + $0xe8] sm:$0xff]
    %v4787 = vld [vmem:[#allocation11 + $0xf0] sm:$0xff]
    %v4788 = vld [vmem:[#allocation11 + $0xf8] sm:$0xff]
    %v4789 = vld [vmem:[#allocation11 + $0x100] sm:$0xff]
    %v4790 = vld [vmem:[#allocation11 + $0x108] sm:$0xff]
    %v4791 = vld [vmem:[#allocation11 + $0x110] sm:$0xff]
    %v4792 = vld [vmem:[#allocation11 + $0x118] sm:$0xff]
    %v4793 = vld [vmem:[#allocation11 + $0x120] sm:$0xff]
    %v4794 = vld [vmem:[#allocation11 + $0x128] sm:$0xff]
    %v4795 = vld [vmem:[#allocation11 + $0x130] sm:$0xff]
    %v4796 = vld [vmem:[#allocation11 + $0x138] sm:$0xff]
    %v4797 = vld [vmem:[#allocation11 + $0x140] sm:$0xff]
    %v4798 = vld [vmem:[#allocation11 + $0x148] sm:$0xff]
    %v4799 = vld [vmem:[#allocation11 + $0x150] sm:$0xff]
    %v4800 = vld [vmem:[#allocation11 + $0x158] sm:$0xff]
    %v4801 = vld [vmem:[#allocation11 + $0x160] sm:$0xff]
    %v4802 = vld [vmem:[#allocation11 + $0x168] sm:$0xff]
    %v4803 = vld [vmem:[#allocation11 + $0x170] sm:$0xff]
    %v4804 = vld [vmem:[#allocation11 + $0x178] sm:$0xff]
    %v4805 = vld [vmem:[#allocation11 + $0x180] sm:$0xff]
    %v4806 = vld [vmem:[#allocation11 + $0x188] sm:$0xff]
    %v4807 = vld [vmem:[#allocation11 + $0x190] sm:$0xff]
    %v4808 = vld [vmem:[#allocation11 + $0x198] sm:$0xff]
    %v4809 = vld [vmem:[#allocation11 + $0x1a0] sm:$0xff]
    %v4810 = vld [vmem:[#allocation11 + $0x1a8] sm:$0xff]
    %v4811 = vld [vmem:[#allocation11 + $0x1b0] sm:$0xff]
    %v4812 = vld [vmem:[#allocation11 + $0x1b8] sm:$0xff]
    %v4813 = vld [vmem:[#allocation11 + $0x1c0] sm:$0xff]
    %v4814 = vld [vmem:[#allocation11 + $0x1c8] sm:$0xff]
    %v4815 = vld [vmem:[#allocation11 + $0x1d0] sm:$0xff]
    %v4816 = vld [vmem:[#allocation11 + $0x1d8] sm:$0xff]
    %v4817 = vld [vmem:[#allocation11 + $0x1e0] sm:$0xff]
    %v4818 = vld [vmem:[#allocation11 + $0x1e8] sm:$0xff]
    %v4819 = vld [vmem:[#allocation11 + $0x1f0] sm:$0xff]
    %v4820 = vld [vmem:[#allocation11 + $0x1f8] sm:$0xff]
    %4821 = vmatprep.subr.mxu0 %v4788
    %4822 = vmatpush1.msra.mxu0 %v4787
    %4823 = vmatprep.subr.mxu0 %v4786
    %4824 = vmatpush1.msra.mxu0 %v4785
    %4825 = vmatprep.subr.mxu0 %v4784
    %4826 = vmatpush1.msra.mxu0 %v4783
    %4827 = vmatprep.subr.mxu0 %v4782
    %4828 = vmatpush1.msra.mxu0 %v4781
    %4829 = vmatprep.subr.mxu0 %v4780
    %4830 = vmatpush1.msra.mxu0 %v4779
    %4831 = vmatprep.subr.mxu0 %v4778
    %4832 = vmatpush1.msra.mxu0 %v4777
    %4833 = vmatprep.subr.mxu0 %v4776
    %4834 = vmatpush1.msra.mxu0 %v4775
    %4835 = vmatprep.subr.mxu0 %v4774
    %4836 = vmatpush1.msra.mxu0 %v4773
    %4837 = vmatprep.subr.mxu0 %v4772
    %4838 = vmatpush1.msra.mxu0 %v4771
    %4839 = vmatprep.subr.mxu0 %v4770
    %4840 = vmatpush1.msra.mxu0 %v4769
    %4841 = vmatprep.subr.mxu0 %v4768
    %4842 = vmatpush1.msra.mxu0 %v4767
    %4843 = vmatprep.subr.mxu0 %v4766
    %4844 = vmatpush1.msra.mxu0 %v4765
    %4845 = vmatprep.subr.mxu0 %v4764
    %4846 = vmatpush1.msra.mxu0 %v4763
    %4847 = vmatprep.subr.mxu0 %v4762
    %4848 = vmatpush1.msra.mxu0 %v4761
    %4849 = vmatprep.subr.mxu0 %v4760
    %4850 = vmatpush1.msra.mxu0 %v4759
    %4851 = vmatprep.subr.mxu0 %v4758
    %4852 = vmatpush1.msra.mxu0 %v4757
    %4853 = vmatprep.subr.mxu0 %v4820
    %4854 = vmatpush2.msra.mxu0 %v4819
    %4855 = vmatprep.subr.mxu0 %v4818
    %4856 = vmatpush2.msra.mxu0 %v4817
    %4857 = vmatprep.subr.mxu0 %v4816
    %4858 = vmatpush2.msra.mxu0 %v4815
    %4859 = vmatprep.subr.mxu0 %v4814
    %4860 = vmatpush2.msra.mxu0 %v4813
    %4861 = vmatprep.subr.mxu0 %v4812
    %4862 = vmatpush2.msra.mxu0 %v4811
    %4863 = vmatprep.subr.mxu0 %v4810
    %4864 = vmatpush2.msra.mxu0 %v4809
    %4865 = vmatprep.subr.mxu0 %v4808
    %4866 = vmatpush2.msra.mxu0 %v4807
    %4867 = vmatprep.subr.mxu0 %v4806
    %4868 = vmatpush2.msra.mxu0 %v4805
    %4869 = vmatprep.subr.mxu0 %v4804
    %4870 = vmatpush2.msra.mxu0 %v4803
    %4871 = vmatprep.subr.mxu0 %v4802
    %4872 = vmatpush2.msra.mxu0 %v4801
    %4873 = vmatprep.subr.mxu0 %v4800
    %4874 = vmatpush2.msra.mxu0 %v4799
    %4875 = vmatprep.subr.mxu0 %v4798
    %4876 = vmatpush2.msra.mxu0 %v4797
    %4877 = vmatprep.subr.mxu0 %v4796
    %4878 = vmatpush2.msra.mxu0 %v4795
    %4879 = vmatprep.subr.mxu0 %v4794
    %4880 = vmatpush2.msra.mxu0 %v4793
    %4881 = vmatprep.subr.mxu0 %v4792
    %4882 = vmatpush2.msra.mxu0 %v4791
    %4883 = vmatprep.subr.mxu0 %v4790
    %4884 = vmatpush2.msra.mxu0 %v4789
    %4885 = vmatprep.mubr.f32.mxu0 %v152
    %4886 = vmatmul.mubr.f32.gmra.mxu0 %v151
    %v4887 = vpop.f32.mrf.mxu0
    %v4888 = vadd.f32 0.0, %v4887
    %v4889 = vpop.f32.mrf.mxu0
    %v4890 = vadd.f32 0.0, %v4889
    %4891 = vdwg.mxu0
    %v4892 = vxor.u32 %v4890, 2147483648
    %v4893 = vmul.f32 %v4892, 1.442695
    %v4894 = vpow.pop %v4893
    %v4895 = vadd.f32 %v4894, 1.0
    %v4896 = vrcp.pop %v4895
    %v4897 = vmul.f32 1.0, %v4896
    %v4898 = vmul.f32 %v4888, %v4897
    %v4899 = vld [vmem:[#allocation13] sm:$0xff]
    %v4900 = vld [vmem:[#allocation13 + $0x8] sm:$0xff]
    %v4901 = vld [vmem:[#allocation13 + $0x10] sm:$0xff]
    %v4902 = vld [vmem:[#allocation13 + $0x18] sm:$0xff]
    %v4903 = vld [vmem:[#allocation13 + $0x20] sm:$0xff]
    %v4904 = vld [vmem:[#allocation13 + $0x28] sm:$0xff]
    %v4905 = vld [vmem:[#allocation13 + $0x30] sm:$0xff]
    %v4906 = vld [vmem:[#allocation13 + $0x38] sm:$0xff]
    %v4907 = vld [vmem:[#allocation13 + $0x40] sm:$0xff]
    %v4908 = vld [vmem:[#allocation13 + $0x48] sm:$0xff]
    %v4909 = vld [vmem:[#allocation13 + $0x50] sm:$0xff]
    %v4910 = vld [vmem:[#allocation13 + $0x58] sm:$0xff]
    %v4911 = vld [vmem:[#allocation13 + $0x60] sm:$0xff]
    %v4912 = vld [vmem:[#allocation13 + $0x68] sm:$0xff]
    %v4913 = vld [vmem:[#allocation13 + $0x70] sm:$0xff]
    %v4914 = vld [vmem:[#allocation13 + $0x78] sm:$0xff]
    %v4915 = vld [vmem:[#allocation13 + $0x80] sm:$0xff]
    %v4916 = vld [vmem:[#allocation13 + $0x88] sm:$0xff]
    %v4917 = vld [vmem:[#allocation13 + $0x90] sm:$0xff]
    %v4918 = vld [vmem:[#allocation13 + $0x98] sm:$0xff]
    %v4919 = vld [vmem:[#allocation13 + $0xa0] sm:$0xff]
    %v4920 = vld [vmem:[#allocation13 + $0xa8] sm:$0xff]
    %v4921 = vld [vmem:[#allocation13 + $0xb0] sm:$0xff]
    %v4922 = vld [vmem:[#allocation13 + $0xb8] sm:$0xff]
    %v4923 = vld [vmem:[#allocation13 + $0xc0] sm:$0xff]
    %v4924 = vld [vmem:[#allocation13 + $0xc8] sm:$0xff]
    %v4925 = vld [vmem:[#allocation13 + $0xd0] sm:$0xff]
    %v4926 = vld [vmem:[#allocation13 + $0xd8] sm:$0xff]
    %v4927 = vld [vmem:[#allocation13 + $0xe0] sm:$0xff]
    %v4928 = vld [vmem:[#allocation13 + $0xe8] sm:$0xff]
    %v4929 = vld [vmem:[#allocation13 + $0xf0] sm:$0xff]
    %v4930 = vld [vmem:[#allocation13 + $0xf8] sm:$0xff]
    %v4931 = vld [vmem:[#allocation14] sm:$0xff]
    %v4932 = vld [vmem:[#allocation14 + $0x8] sm:$0xff]
    %v4933 = vld [vmem:[#allocation14 + $0x10] sm:$0xff]
    %v4934 = vld [vmem:[#allocation14 + $0x18] sm:$0xff]
    %v4935 = vld [vmem:[#allocation14 + $0x20] sm:$0xff]
    %v4936 = vld [vmem:[#allocation14 + $0x28] sm:$0xff]
    %v4937 = vld [vmem:[#allocation14 + $0x30] sm:$0xff]
    %v4938 = vld [vmem:[#allocation14 + $0x38] sm:$0xff]
    %v4939 = vld [vmem:[#allocation14 + $0x40] sm:$0xff]
    %v4940 = vld [vmem:[#allocation14 + $0x48] sm:$0xff]
    %v4941 = vld [vmem:[#allocation14 + $0x50] sm:$0xff]
    %v4942 = vld [vmem:[#allocation14 + $0x58] sm:$0xff]
    %v4943 = vld [vmem:[#allocation14 + $0x60] sm:$0xff]
    %v4944 = vld [vmem:[#allocation14 + $0x68] sm:$0xff]
    %v4945 = vld [vmem:[#allocation14 + $0x70] sm:$0xff]
    %v4946 = vld [vmem:[#allocation14 + $0x78] sm:$0xff]
    %4947 = vmatprep.subr.mxu0 0.0
    %4948 = vmatpush1.msra.mxu0 %v4946
    %4949 = vmatprep.subr.mxu0 0.0
    %4950 = vmatpush1.msra.mxu0 %v4945
    %4951 = vmatprep.subr.mxu0 0.0
    %4952 = vmatpush1.msra.mxu0 %v4944
    %4953 = vmatprep.subr.mxu0 0.0
    %4954 = vmatpush1.msra.mxu0 %v4943
    %4955 = vmatprep.subr.mxu0 0.0
    %4956 = vmatpush1.msra.mxu0 %v4942
    %4957 = vmatprep.subr.mxu0 0.0
    %4958 = vmatpush1.msra.mxu0 %v4941
    %4959 = vmatprep.subr.mxu0 0.0
    %4960 = vmatpush1.msra.mxu0 %v4940
    %4961 = vmatprep.subr.mxu0 0.0
    %4962 = vmatpush1.msra.mxu0 %v4939
    %4963 = vmatprep.subr.mxu0 0.0
    %4964 = vmatpush1.msra.mxu0 %v4938
    %4965 = vmatprep.subr.mxu0 0.0
    %4966 = vmatpush1.msra.mxu0 %v4937
    %4967 = vmatprep.subr.mxu0 0.0
    %4968 = vmatpush1.msra.mxu0 %v4936
    %4969 = vmatprep.subr.mxu0 0.0
    %4970 = vmatpush1.msra.mxu0 %v4935
    %4971 = vmatprep.subr.mxu0 0.0
    %4972 = vmatpush1.msra.mxu0 %v4934
    %4973 = vmatprep.subr.mxu0 0.0
    %4974 = vmatpush1.msra.mxu0 %v4933
    %4975 = vmatprep.subr.mxu0 0.0
    %4976 = vmatpush1.msra.mxu0 %v4932
    %4977 = vmatprep.subr.mxu0 0.0
    %4978 = vmatpush1.msra.mxu0 %v4931
    %4979 = vmatprep.subr.mxu0 0.0
    %4980 = vmatpush2.msra.mxu0 0.0
    %4981 = vmatprep.subr.mxu0 0.0
    %4982 = vmatpush2.msra.mxu0 0.0
    %4983 = vmatprep.subr.mxu0 0.0
    %4984 = vmatpush2.msra.mxu0 0.0
    %4985 = vmatprep.subr.mxu0 0.0
    %4986 = vmatpush2.msra.mxu0 0.0
    %4987 = vmatprep.subr.mxu0 0.0
    %4988 = vmatpush2.msra.mxu0 0.0
    %4989 = vmatprep.subr.mxu0 0.0
    %4990 = vmatpush2.msra.mxu0 0.0
    %4991 = vmatprep.subr.mxu0 0.0
    %4992 = vmatpush2.msra.mxu0 0.0
    %4993 = vmatprep.subr.mxu0 0.0
    %4994 = vmatpush2.msra.mxu0 0.0
    %4995 = vmatprep.subr.mxu0 0.0
    %4996 = vmatpush2.msra.mxu0 0.0
    %4997 = vmatprep.subr.mxu0 0.0
    %4998 = vmatpush2.msra.mxu0 0.0
    %4999 = vmatprep.subr.mxu0 0.0
    %5000 = vmatpush2.msra.mxu0 0.0
    %5001 = vmatprep.subr.mxu0 0.0
    %5002 = vmatpush2.msra.mxu0 0.0
    %5003 = vmatprep.subr.mxu0 0.0
    %5004 = vmatpush2.msra.mxu0 0.0
    %5005 = vmatprep.subr.mxu0 0.0
    %5006 = vmatpush2.msra.mxu0 0.0
    %5007 = vmatprep.subr.mxu0 0.0
    %5008 = vmatpush2.msra.mxu0 0.0
    %5009 = vmatprep.subr.mxu0 0.0
    %5010 = vmatpush2.msra.mxu0 0.0
    %5011 = vmatprep.mubr.f32.mxu0 0.0
    %5012 = vmatmul.mubr.f32.gmra.mxu0 %v4898
    %v5013 = vpop.f32.mrf.mxu0
    %v5014 = vadd.f32 0.0, %v5013
    %v5015 = vpop.f32.mrf.mxu0
    %5016 = vdwg.mxu0
    %5017 = vmatprep.subr.mxu0 0.0
    %5018 = vmatpush1.msra.mxu0 %v4914
    %5019 = vmatprep.subr.mxu0 0.0
    %5020 = vmatpush1.msra.mxu0 %v4913
    %5021 = vmatprep.subr.mxu0 0.0
    %5022 = vmatpush1.msra.mxu0 %v4912
    %5023 = vmatprep.subr.mxu0 0.0
    %5024 = vmatpush1.msra.mxu0 %v4911
    %5025 = vmatprep.subr.mxu0 0.0
    %5026 = vmatpush1.msra.mxu0 %v4910
    %5027 = vmatprep.subr.mxu0 0.0
    %5028 = vmatpush1.msra.mxu0 %v4909
    %5029 = vmatprep.subr.mxu0 0.0
    %5030 = vmatpush1.msra.mxu0 %v4908
    %5031 = vmatprep.subr.mxu0 0.0
    %5032 = vmatpush1.msra.mxu0 %v4907
    %5033 = vmatprep.subr.mxu0 0.0
    %5034 = vmatpush1.msra.mxu0 %v4906
    %5035 = vmatprep.subr.mxu0 0.0
    %5036 = vmatpush1.msra.mxu0 %v4905
    %5037 = vmatprep.subr.mxu0 0.0
    %5038 = vmatpush1.msra.mxu0 %v4904
    %5039 = vmatprep.subr.mxu0 0.0
    %5040 = vmatpush1.msra.mxu0 %v4903
    %5041 = vmatprep.subr.mxu0 0.0
    %5042 = vmatpush1.msra.mxu0 %v4902
    %5043 = vmatprep.subr.mxu0 0.0
    %5044 = vmatpush1.msra.mxu0 %v4901
    %5045 = vmatprep.subr.mxu0 0.0
    %5046 = vmatpush1.msra.mxu0 %v4900
    %5047 = vmatprep.subr.mxu0 0.0
    %5048 = vmatpush1.msra.mxu0 %v4899
    %5049 = vmatprep.subr.mxu0 0.0
    %5050 = vmatpush2.msra.mxu0 %v4930
    %5051 = vmatprep.subr.mxu0 0.0
    %5052 = vmatpush2.msra.mxu0 %v4929
    %5053 = vmatprep.subr.mxu0 0.0
    %5054 = vmatpush2.msra.mxu0 %v4928
    %5055 = vmatprep.subr.mxu0 0.0
    %5056 = vmatpush2.msra.mxu0 %v4927
    %5057 = vmatprep.subr.mxu0 0.0
    %5058 = vmatpush2.msra.mxu0 %v4926
    %5059 = vmatprep.subr.mxu0 0.0
    %5060 = vmatpush2.msra.mxu0 %v4925
    %5061 = vmatprep.subr.mxu0 0.0
    %5062 = vmatpush2.msra.mxu0 %v4924
    %5063 = vmatprep.subr.mxu0 0.0
    %5064 = vmatpush2.msra.mxu0 %v4923
    %5065 = vmatprep.subr.mxu0 0.0
    %5066 = vmatpush2.msra.mxu0 %v4922
    %5067 = vmatprep.subr.mxu0 0.0
    %5068 = vmatpush2.msra.mxu0 %v4921
    %5069 = vmatprep.subr.mxu0 0.0
    %5070 = vmatpush2.msra.mxu0 %v4920
    %5071 = vmatprep.subr.mxu0 0.0
    %5072 = vmatpush2.msra.mxu0 %v4919
    %5073 = vmatprep.subr.mxu0 0.0
    %5074 = vmatpush2.msra.mxu0 %v4918
    %5075 = vmatprep.subr.mxu0 0.0
    %5076 = vmatpush2.msra.mxu0 %v4917
    %5077 = vmatprep.subr.mxu0 0.0
    %5078 = vmatpush2.msra.mxu0 %v4916
    %5079 = vmatprep.subr.mxu0 0.0
    %5080 = vmatpush2.msra.mxu0 %v4915
    %5081 = vmatprep.mubr.f32.mxu0 %v4756
    %5082 = vmatmul.mubr.f32.gmra.mxu0 %v4755
    %v5083 = vpop.f32.mrf.mxu0
    %v5084 = vadd.f32 %v5014, %v5083
    %v5085 = vpop.f32.mrf.mxu0
    %5086 = vdwg.mxu0
    %v5087 = vld [vmem:[#allocation16] sm:$0x1]
    %v5089 = vlaneseq
    %v5090 = vshrl.u32 %v5089, 7
    %v5091 = vsub.s32 0, %v5090
    %v5092 = vrot.slane %v5087, %v5091
    %v5094 = vadd.f32 %v5084, %v5092
    %5095 = vst [vmem:[#allocation17] sm:$0xff] %v5094
    // Predicated region
    $region74: #{tpu_custom_call.1} parent=1 // pred_check
      _
    $region75: #{tpu_custom_call.1} parent=1 // pred_check_branch
      %5097 = sbr.rel (0) target = $region77
    $region76: #{tpu_custom_call.1} parent=1 // pred_region
      %s5099 = ssub.s32 128, 128
      %5100 = vsyncadd [#allocation4], %s5099
      %s5102 = sshll.u32 [#allocation17], 4
      %s5103 = int_to_ptr.vmem [resolvable:$true] %s5102
      %5105 = dma.vmem_to_hbm [thread:$0]  %s5103, 128, %s9, [#allocation4]
    $region77: #{tpu_custom_call.1} parent=1 // pred_fallthru
      _
    // Predicated region
    $region78: #{tpu_custom_call.1} parent=1 // pred_check
      _
    $region79: #{tpu_custom_call.1} parent=1 // pred_check_branch
      %5107 = sbr.rel (0) target = $region81
    $region80: #{tpu_custom_call.1} parent=1 // pred_region
      %5108 = dma.done [#allocation4], 128
    $region81: #{tpu_custom_call.1} parent=1 // pred_fallthru
      _
    %5109 = vsyncpa [#allocation3], 1
    %5110 = vsyncpa [#allocation6], 1
    %5111 = vsyncpa [#allocation9], 1
    %5112 = vsyncpa [#allocation12], 1
    %5113 = vsyncpa [#allocation15], 1
    %5114 = vsyncpa [#allocation4], 1

</llo_original>
